<compile_context>
chip_gen: v7x
topology: tpu7x:2x2x1
jax: 0.10.0
libtpu: 0.0.40
codegen_flags: <defaults>
</compile_context>

<pallas_src>
import numpy as np
import jax
import jax.numpy as jnp
from jax.experimental import pallas as pl
from jax.experimental.pallas import tpu as pltpu

# ---- model config (PyTorch defaults, with synthetic action-space sizes) ----
INPUT_DIM = 27
HIDDEN_DIM = 256          # nn.Module default hidden_dim
NUM_ATOMS = 51            # RAINBOW_CONFIG['num_atoms'] (canonical C51)
V_MIN, V_MAX = -10.0, 10.0
# TODO(synk): TemporalActionSpace sizes are not given in the source; synthetic values used.
N_HEALTHCARE = 5
N_TIME_HORIZONS = 4
N_TIMES_OF_DAY = 3
N_COMMUNICATION = 3
N_ACTIONS = (N_HEALTHCARE, N_TIME_HORIZONS, N_TIMES_OF_DAY, N_COMMUNICATION)
HEAD_NAMES = ("healthcare", "timing", "schedule", "communication")
N_SEG = sum(N_ACTIONS)                 # 15 real (action, head) segments
TOTAL_OUT = N_SEG * NUM_ATOMS          # 765 real out-features
N_SEG_PAD = 16                         # +1 pad segment
TOTAL_PAD = 768                        # 765 + 3 pad lanes  (6 * 128, lane-dense)


# --------------------------- Pallas kernel ---------------------------
def _segment_masks():
    """One-hot segment matrices built in-kernel (no constant DMA, no integer division)."""
    f32 = jnp.float32
    lane = jax.lax.broadcasted_iota(jnp.int32, (TOTAL_PAD, N_SEG_PAD), 0)
    col = jax.lax.broadcasted_iota(jnp.int32, (TOTAL_PAD, N_SEG_PAD), 1)
    lo = col * NUM_ATOMS
    seg = jnp.logical_and(lane >= lo, lane < lo + NUM_ATOMS).astype(f32)      # (768, 16)
    lane_t = jax.lax.broadcasted_iota(jnp.int32, (N_SEG_PAD, TOTAL_PAD), 1)
    row_t = jax.lax.broadcasted_iota(jnp.int32, (N_SEG_PAD, TOTAL_PAD), 0)
    lo_t = row_t * NUM_ATOMS
    seg_t = jnp.logical_and(lane_t >= lo_t, lane_t < lo_t + NUM_ATOMS).astype(f32)  # (16, 768)
    return seg, seg_t


def _dqn_kernel(x_ref, w1_ref, b1_ref, w2_ref, b2_ref, w3_ref, b3_ref,
                wh_ref, bh_ref, out_ref):
    f32 = jnp.float32
    bf16 = jnp.bfloat16
    hi = jax.lax.Precision.HIGHEST

    # shared feature extractor: 3 x (Linear + ReLU), bf16 MXU operands / f32 accumulation
    h = jnp.dot(x_ref[...], w1_ref[...], preferred_element_type=f32) + b1_ref[...]
    h = jnp.maximum(h, 0.0)
    h = jnp.dot(h.astype(bf16), w2_ref[...], preferred_element_type=f32) + b2_ref[...]
    h = jnp.maximum(h, 0.0)
    feat = jnp.dot(h.astype(bf16), w3_ref[...], preferred_element_type=f32) + b3_ref[...]
    feat = jnp.maximum(feat, 0.0)

    # all 4 dueling/distributional heads as ONE lane-dense matmul (dueling combine pre-folded
    # into wh/bh in glue):  (B, H) @ (H, 768) -> (B, 768)
    logits = jnp.dot(feat.astype(bf16), wh_ref[...], preferred_element_type=f32) + bh_ref[...]

    # segmented C51 softmax over each 51-atom group, fully lane-dense.
    seg_oh, seg_oh_t = _segment_masks()
    m = jnp.max(logits, axis=-1, keepdims=True)            # row-wide max: per-segment invariant
    # clamp guards a fully-underflowed segment (denominator would be 0 -> inf/NaN)
    e = jnp.exp(jnp.maximum(logits - m, -60.0))             # (B, 768) f32, EUP
    # per-segment sums via the one-hot matmul (exact at HIGHEST precision): (B, 768)->(B, 16)
    seg_sum = jnp.dot(e, seg_oh, preferred_element_type=f32, precision=hi)
    inv = 1.0 / seg_sum                                      # exact reciprocal on the narrow array
    # expand 1/denominator back to all lanes of its segment and normalize
    inv_wide = jnp.dot(inv, seg_oh_t, preferred_element_type=f32, precision=hi)
    out_ref[...] = (e * inv_wide).astype(out_ref.dtype)


# --------------------------- wrapper ---------------------------
def _vmem_spec():
    return pl.BlockSpec(memory_space=pltpu.MemorySpace.VMEM)


def _const_block(a):
    nd = a.ndim
    return pl.BlockSpec(a.shape, lambda i, nd=nd: (0,) * nd)


def temporal_factored_dqn_forward(x, kparams, *, batch_tile=None, out_dtype=jnp.float32):
    """Returns {head: (B, n_actions, NUM_ATOMS)} C51 distributions (PyTorch layout)."""
    B = x.shape[0]
    xb = x.astype(jnp.bfloat16)
    inputs = [xb, kparams["w1"], kparams["b1"], kparams["w2"], kparams["b2"],
              kparams["w3"], kparams["b3"], kparams["w_heads"], kparams["b_heads"]]
    out_shape = jax.ShapeDtypeStruct((B, TOTAL_PAD), out_dtype)

    if batch_tile is None or B <= batch_tile:
        # single invocation, no grid: everything (<1 MiB of weights) lives in VMEM.
        flat = pl.pallas_call(
            _dqn_kernel,
            out_shape=out_shape,
            in_specs=[_vmem_spec() for _ in inputs],
            out_specs=_vmem_spec(),
        )(*inputs)
    else:
        # batch-tiled path: weights use constant block indices (stay VMEM-resident),
        # batch axis marked parallel so v7x's two TensorCores split it.  Pick batch_tile so
        # the grid gives each core >= 2 steps (pipelining); VMEM at tile=256 is ~3 MiB.
        assert B % batch_tile == 0 and batch_tile % 16 == 0
        in_specs = ([pl.BlockSpec((batch_tile, INPUT_DIM), lambda i: (i, 0))] +
                    [_const_block(a) for a in inputs[1:]])
        flat = pl.pallas_call(
            _dqn_kernel,
            out_shape=out_shape,
            grid=(B // batch_tile,),
            in_specs=in_specs,
            out_specs=pl.BlockSpec((batch_tile, TOTAL_PAD), lambda i: (i, 0)),
            compiler_params=pltpu.CompilerParams(dimension_semantics=("parallel",)),
        )(*inputs)

    # split the lane-dense slab (first 765 lanes are real) into per-head (B, n_actions, atoms)
    out, off = {}, 0
    for name, n in zip(HEAD_NAMES, N_ACTIONS):
        out[name] = flat[:, off: off + n * NUM_ATOMS].reshape(B, n, NUM_ATOMS)
        off += n * NUM_ATOMS
    return out


# --------------------------- parameter init (deterministic, in-script) ---------------------------
def _linear_init(key, fan_in, fan_out):
    kw, kb = jax.random.split(key)
    bound = 1.0 / np.sqrt(fan_in)
    w = jax.random.uniform(kw, (fan_in, fan_out), jnp.float32, -bound, bound)
    b = jax.random.uniform(kb, (1, fan_out), jnp.float32, -bound, bound)
    return w, b


def _noisy_linear_effective(key, fan_in, fan_out, sigma0=0.5):
    # NoisyLinear effective forward weights (mu + sigma * factored Gaussian noise).
    kmw, kmb, kei, keo = jax.random.split(key, 4)
    mu_bound = 1.0 / np.sqrt(fan_in)
    w_mu = jax.random.uniform(kmw, (fan_in, fan_out), jnp.float32, -mu_bound, mu_bound)
    b_mu = jax.random.uniform(kmb, (1, fan_out), jnp.float32, -mu_bound, mu_bound)
    sig = sigma0 / np.sqrt(fan_in)
    f = lambda e: jnp.sign(e) * jnp.sqrt(jnp.abs(e))
    eps_in = f(jax.random.normal(kei, (fan_in,), jnp.float32))
    eps_out = f(jax.random.normal(keo, (fan_out,), jnp.float32))
    w = w_mu + sig * jnp.outer(eps_in, eps_out)
    b = b_mu + sig * eps_out[None, :]
    return w, b


def init_params(key):
    """Canonical f32 model parameters (the 'PyTorch' weights)."""
    keys = jax.random.split(key, 3 + 2 * len(HEAD_NAMES))
    params = {}
    params["w1"], params["b1"] = _linear_init(keys[0], INPUT_DIM, HIDDEN_DIM)
    params["w2"], params["b2"] = _linear_init(keys[1], HIDDEN_DIM, HIDDEN_DIM)
    params["w3"], params["b3"] = _linear_init(keys[2], HIDDEN_DIM, HIDDEN_DIM)
    for i, (name, n_act) in enumerate(zip(HEAD_NAMES, N_ACTIONS)):
        kv, ka = keys[3 + 2 * i], keys[4 + 2 * i]
        wv, bv = _noisy_linear_effective(kv, HIDDEN_DIM, NUM_ATOMS)
        wa_flat, ba_flat = _noisy_linear_effective(ka, HIDDEN_DIM, n_act * NUM_ATOMS)
        # PyTorch view(batch, n_act, atoms) is action-major over out-features:
        wa = jnp.transpose(wa_flat.reshape(HIDDEN_DIM, n_act, NUM_ATOMS), (1, 0, 2))
        ba = ba_flat.reshape(n_act, NUM_ATOMS)[:, None, :]
        params[name] = {"wv": wv, "bv": bv, "wa": wa, "ba": ba}
    return params


def pack_params(params):
    """Fold dueling combine into the head weights, pad to 768 lanes, cast matmul weights bf16."""
    w_list, b_list = [], []
    for name, n in zip(HEAD_NAMES, N_ACTIONS):
        p = params[name]
        wv, bv, wa, ba = p["wv"], p["bv"], p["wa"], p["ba"]   # (H,A),(1,A),(n,H,A),(n,1,A)
        w_eff = wa + wv[None] - jnp.mean(wa, axis=0, keepdims=True)   # (n,H,A)
        b_eff = ba + bv[None] - jnp.mean(ba, axis=0, keepdims=True)   # (n,1,A)
        w_list.append(jnp.transpose(w_eff, (1, 0, 2)).reshape(HIDDEN_DIM, n * NUM_ATOMS))
        b_list.append(b_eff.reshape(1, n * NUM_ATOMS))
    w_heads = jnp.concatenate(w_list, axis=1)                  # (H, 765), action-major per head
    b_heads = jnp.concatenate(b_list, axis=1)                  # (1, 765)
    pad = TOTAL_PAD - TOTAL_OUT
    w_heads = jnp.pad(w_heads, ((0, 0), (0, pad)))             # zero pad -> pad logits are 0
    b_heads = jnp.pad(b_heads, ((0, 0), (0, pad)))
    bf16 = jnp.bfloat16
    return {
        "w1": params["w1"].astype(bf16), "b1": params["b1"],
        "w2": params["w2"].astype(bf16), "b2": params["b2"],
        "w3": params["w3"].astype(bf16), "b3": params["b3"],
        "w_heads": w_heads.astype(bf16), "b_heads": b_heads,
    }


# --------------------------- pure-JAX f32 reference (for verification) ---------------------------
def reference_forward(x, params):
    h = jax.nn.relu(x @ params["w1"] + params["b1"])
    h = jax.nn.relu(h @ params["w2"] + params["b2"])
    feat = jax.nn.relu(h @ params["w3"] + params["b3"])
    out = {}
    for name, n_act in zip(HEAD_NAMES, N_ACTIONS):
        p = params[name]
        v = feat @ p["wv"] + p["bv"]                                     # (B, A)
        adv = jnp.einsum("bh,nha->bna", feat, p["wa"]) + jnp.transpose(p["ba"], (1, 0, 2))
        q = v[:, None, :] + adv - adv.mean(axis=1, keepdims=True)
        out[name] = jax.nn.softmax(q, axis=-1)
    return out


def _check(outs, ref, B):
    for name, n_act in zip(HEAD_NAMES, N_ACTIONS):
        got = np.asarray(outs[name], np.float32)
        exp = np.asarray(ref[name], np.float32)
        assert got.shape == (B, n_act, NUM_ATOMS)
        # bf16 weights/activations on the matmul path -> small, bounded drift vs f32 reference
        np.testing.assert_allclose(got, exp, rtol=1e-2, atol=1e-3)
        # exact normalization (exact reciprocal + HIGHEST-precision one-hot matmuls)
        np.testing.assert_allclose(got.sum(axis=-1), 1.0, atol=2e-3)


if __name__ == "__main__":
    key = jax.random.PRNGKey(0)
    kx, kp = jax.random.split(key)
    params = init_params(kp)
    kparams = pack_params(params)

    # --- small batch: no-grid, single VMEM block path ---
    B = 8
    x = jax.random.normal(kx, (B, INPUT_DIM), jnp.float32)
    outs = temporal_factored_dqn_forward(x, kparams)
    outs = {k: jax.block_until_ready(v) for k, v in outs.items()}
    _check(outs, reference_forward(x, params), B)

    # --- larger batch: batch-tiled parallel-grid path (>=2 steps per core, weights resident) ---
    B2, TILE = 1024, 256
    x2 = jax.random.normal(jax.random.PRNGKey(1), (B2, INPUT_DIM), jnp.float32)
    outs2 = temporal_factored_dqn_forward(x2, kparams, batch_tile=TILE)
    outs2 = {k: jax.block_until_ready(v) for k, v in outs2.items()}
    _check(outs2, reference_forward(x2, params), B2)

    print("KERNEL_OK")
</pallas_src>

<mosaic_0001>
module attributes {stable_mosaic.version = 11 : i64} {
  func.func @_dqn_kernel(%arg0: memref<8x27xbf16, #tpu.memory_space<vmem>>, %arg1: memref<27x256xbf16, #tpu.memory_space<vmem>>, %arg2: memref<1x256xf32, #tpu.memory_space<vmem>>, %arg3: memref<256x256xbf16, #tpu.memory_space<vmem>>, %arg4: memref<1x256xf32, #tpu.memory_space<vmem>>, %arg5: memref<256x256xbf16, #tpu.memory_space<vmem>>, %arg6: memref<1x256xf32, #tpu.memory_space<vmem>>, %arg7: memref<256x768xbf16, #tpu.memory_space<vmem>>, %arg8: memref<1x768xf32, #tpu.memory_space<vmem>>, %arg9: memref<8x768xf32, #tpu.memory_space<vmem>>) attributes {dimension_semantics = [], scalar_prefetch = 0 : i64, scratch_operands = 0 : i64, tpu.core_type = #tpu.core_type<tc>} {
    %c0 = arith.constant 0 : index
    %c0_0 = arith.constant 0 : index
    %0 = vector.load %arg0[%c0, %c0_0] : memref<8x27xbf16, #tpu.memory_space<vmem>>, vector<8x27xbf16>
    %c0_1 = arith.constant 0 : index
    %c0_2 = arith.constant 0 : index
    %1 = vector.load %arg1[%c0_1, %c0_2] : memref<27x256xbf16, #tpu.memory_space<vmem>>, vector<27x256xbf16>
    %cst = arith.constant dense<0.000000e+00> : vector<8x256xf32>
    %2 = tpu.matmul %0, %1, %cst {dimension_numbers = #tpu.dot_dimension_numbers<[1], [0], [0], [1], [0, 0, 1, 1], [], []>} : vector<8x27xbf16>, vector<27x256xbf16>, vector<8x256xf32> -> vector<8x256xf32>
    %c0_3 = arith.constant 0 : index
    %c0_4 = arith.constant 0 : index
    %3 = vector.load %arg2[%c0_3, %c0_4] : memref<1x256xf32, #tpu.memory_space<vmem>>, vector<1x256xf32>
    %4 = vector.broadcast %3 : vector<1x256xf32> to vector<8x256xf32>
    %5 = arith.addf %2, %4 : vector<8x256xf32>
    %cst_5 = arith.constant 0.000000e+00 : f32
    %6 = vector.broadcast %cst_5 : f32 to vector<8x256xf32>
    %7 = arith.maximumf %5, %6 : vector<8x256xf32>
    %8 = arith.truncf %7 : vector<8x256xf32> to vector<8x256xbf16>
    %c0_6 = arith.constant 0 : index
    %c0_7 = arith.constant 0 : index
    %9 = vector.load %arg3[%c0_6, %c0_7] : memref<256x256xbf16, #tpu.memory_space<vmem>>, vector<256x256xbf16>
    %cst_8 = arith.constant dense<0.000000e+00> : vector<8x256xf32>
    %10 = tpu.matmul %8, %9, %cst_8 {dimension_numbers = #tpu.dot_dimension_numbers<[1], [0], [0], [1], [0, 0, 1, 1], [], []>} : vector<8x256xbf16>, vector<256x256xbf16>, vector<8x256xf32> -> vector<8x256xf32>
    %c0_9 = arith.constant 0 : index
    %c0_10 = arith.constant 0 : index
    %11 = vector.load %arg4[%c0_9, %c0_10] : memref<1x256xf32, #tpu.memory_space<vmem>>, vector<1x256xf32>
    %12 = vector.broadcast %11 : vector<1x256xf32> to vector<8x256xf32>
    %13 = arith.addf %10, %12 : vector<8x256xf32>
    %cst_11 = arith.constant 0.000000e+00 : f32
    %14 = vector.broadcast %cst_11 : f32 to vector<8x256xf32>
    %15 = arith.maximumf %13, %14 : vector<8x256xf32>
    %16 = arith.truncf %15 : vector<8x256xf32> to vector<8x256xbf16>
    %c0_12 = arith.constant 0 : index
    %c0_13 = arith.constant 0 : index
    %17 = vector.load %arg5[%c0_12, %c0_13] : memref<256x256xbf16, #tpu.memory_space<vmem>>, vector<256x256xbf16>
    %cst_14 = arith.constant dense<0.000000e+00> : vector<8x256xf32>
    %18 = tpu.matmul %16, %17, %cst_14 {dimension_numbers = #tpu.dot_dimension_numbers<[1], [0], [0], [1], [0, 0, 1, 1], [], []>} : vector<8x256xbf16>, vector<256x256xbf16>, vector<8x256xf32> -> vector<8x256xf32>
    %c0_15 = arith.constant 0 : index
    %c0_16 = arith.constant 0 : index
    %19 = vector.load %arg6[%c0_15, %c0_16] : memref<1x256xf32, #tpu.memory_space<vmem>>, vector<1x256xf32>
    %20 = vector.broadcast %19 : vector<1x256xf32> to vector<8x256xf32>
    %21 = arith.addf %18, %20 : vector<8x256xf32>
    %cst_17 = arith.constant 0.000000e+00 : f32
    %22 = vector.broadcast %cst_17 : f32 to vector<8x256xf32>
    %23 = arith.maximumf %21, %22 : vector<8x256xf32>
    %24 = arith.truncf %23 : vector<8x256xf32> to vector<8x256xbf16>
    %c0_18 = arith.constant 0 : index
    %c0_19 = arith.constant 0 : index
    %25 = vector.load %arg7[%c0_18, %c0_19] : memref<256x768xbf16, #tpu.memory_space<vmem>>, vector<256x768xbf16>
    %cst_20 = arith.constant dense<0.000000e+00> : vector<8x768xf32>
    %26 = tpu.matmul %24, %25, %cst_20 {dimension_numbers = #tpu.dot_dimension_numbers<[1], [0], [0], [1], [0, 0, 1, 1], [], []>} : vector<8x256xbf16>, vector<256x768xbf16>, vector<8x768xf32> -> vector<8x768xf32>
    %c0_21 = arith.constant 0 : index
    %c0_22 = arith.constant 0 : index
    %27 = vector.load %arg8[%c0_21, %c0_22] : memref<1x768xf32, #tpu.memory_space<vmem>>, vector<1x768xf32>
    %28 = vector.broadcast %27 : vector<1x768xf32> to vector<8x768xf32>
    %29 = arith.addf %26, %28 : vector<8x768xf32>
    %30 = tpu.iota {dimensions = array<i32: 0>} : vector<768x16xi32>
    %31 = tpu.iota {dimensions = array<i32: 1>} : vector<768x16xi32>
    %c51_i32 = arith.constant 51 : i32
    %32 = vector.broadcast %c51_i32 : i32 to vector<768x16xi32>
    %33 = arith.muli %31, %32 : vector<768x16xi32>
    %34 = arith.cmpi sge, %30, %33 : vector<768x16xi32>
    %c51_i32_23 = arith.constant 51 : i32
    %35 = vector.broadcast %c51_i32_23 : i32 to vector<768x16xi32>
    %36 = arith.addi %33, %35 : vector<768x16xi32>
    %37 = arith.cmpi slt, %30, %36 : vector<768x16xi32>
    %38 = arith.andi %34, %37 : vector<768x16xi1>
    %39 = arith.extui %38 : vector<768x16xi1> to vector<768x16xi32>
    %40 = arith.sitofp %39 : vector<768x16xi32> to vector<768x16xf32>
    %41 = tpu.iota {dimensions = array<i32: 1>} : vector<16x768xi32>
    %42 = tpu.iota {dimensions = array<i32: 0>} : vector<16x768xi32>
    %c51_i32_24 = arith.constant 51 : i32
    %43 = vector.broadcast %c51_i32_24 : i32 to vector<16x768xi32>
    %44 = arith.muli %42, %43 : vector<16x768xi32>
    %45 = arith.cmpi sge, %41, %44 : vector<16x768xi32>
    %c51_i32_25 = arith.constant 51 : i32
    %46 = vector.broadcast %c51_i32_25 : i32 to vector<16x768xi32>
    %47 = arith.addi %44, %46 : vector<16x768xi32>
    %48 = arith.cmpi slt, %41, %47 : vector<16x768xi32>
    %49 = arith.andi %45, %48 : vector<16x768xi1>
    %50 = arith.extui %49 : vector<16x768xi1> to vector<16x768xi32>
    %51 = arith.sitofp %50 : vector<16x768xi32> to vector<16x768xf32>
    %cst_26 = arith.constant dense<0xFF800000> : vector<8xf32>
    %52 = vector.multi_reduction <maximumf>, %29, %cst_26 [1] : vector<8x768xf32> to vector<8xf32>
    %53 = vector.shape_cast %52 : vector<8xf32> to vector<8x1xf32>
    %54 = vector.broadcast %53 : vector<8x1xf32> to vector<8x768xf32>
    %55 = arith.subf %29, %54 : vector<8x768xf32>
    %cst_27 = arith.constant -6.000000e+01 : f32
    %56 = vector.broadcast %cst_27 : f32 to vector<8x768xf32>
    %57 = arith.maximumf %55, %56 : vector<8x768xf32>
    %58 = math.exp %57 : vector<8x768xf32>
    %cst_28 = arith.constant dense<0.000000e+00> : vector<8x16xf32>
    %59 = tpu.matmul %58, %40, %cst_28 {dimension_numbers = #tpu.dot_dimension_numbers<[1], [0], [0], [1], [0, 0, 1, 1], [], []>, precision = #tpu.contract_precision<fp32>} : vector<8x768xf32>, vector<768x16xf32>, vector<8x16xf32> -> vector<8x16xf32>
    %cst_29 = arith.constant 1.000000e+00 : f32
    %60 = vector.broadcast %cst_29 : f32 to vector<8x16xf32>
    %61 = arith.divf %60, %59 : vector<8x16xf32>
    %cst_30 = arith.constant dense<0.000000e+00> : vector<8x768xf32>
    %62 = tpu.matmul %61, %51, %cst_30 {dimension_numbers = #tpu.dot_dimension_numbers<[1], [0], [0], [1], [0, 0, 1, 1], [], []>, precision = #tpu.contract_precision<fp32>} : vector<8x16xf32>, vector<16x768xf32>, vector<8x768xf32> -> vector<8x768xf32>
    %63 = arith.mulf %58, %62 : vector<8x768xf32>
    %c0_31 = arith.constant 0 : index
    %c0_32 = arith.constant 0 : index
    %64 = vector.load %arg9[%c0_31, %c0_32] : memref<8x768xf32, #tpu.memory_space<vmem>>, vector<8x768xf32>
    tpu.vector_store %arg9[%c0_31, %c0_32], %63 {strides = array<i32>} : memref<8x768xf32, #tpu.memory_space<vmem>>, vector<8x768xf32>,
    return
  }
}

</mosaic_0001>

<llo_original>
// kernel: tpu_custom_call.1
$region0: #{tpu_custom_call.1}
  #allocation0 [shape = 'u32[]', space=smem, size = 0x4, offset = 0x4, fixed_abs, tag = 'smem constant byte address 0x4 - core index']
  #allocation1 [shape = 'u32[144,128]{1,0:T(1,128)}', space=vmem, size = 0x12000, scoped, tag = 'internal scratch']
  %s0 = inlined_call_operand.hbm [shape: bf16[8,27], index: 0, kind: input, shape index: {}]
  %s1 = inlined_call_operand.hbm [shape: bf16[27,256], index: 1, kind: input, shape index: {}]
  %s2 = inlined_call_operand.vmem [shape: f32[1,256], index: 2, kind: input, shape index: {}]
  %s3 = inlined_call_operand.hbm [shape: bf16[256,256], index: 3, kind: input, shape index: {}]
  %s4 = inlined_call_operand.vmem [shape: f32[1,256], index: 4, kind: input, shape index: {}]
  %s5 = inlined_call_operand.hbm [shape: bf16[256,256], index: 5, kind: input, shape index: {}]
  %s6 = inlined_call_operand.vmem [shape: f32[1,256], index: 6, kind: input, shape index: {}]
  %s7 = inlined_call_operand.hbm [shape: bf16[256,768], index: 7, kind: input, shape index: {}]
  %s8 = inlined_call_operand.vmem [shape: f32[1,768], index: 8, kind: input, shape index: {}]
  %s9 = inlined_call_operand.hbm [shape: f32[8,768], index: 9, kind: output, shape index: {}]
  %s10 = sld [smem:[#allocation0]]
  $region66: #{tpu_custom_call.1} parent=0
    _
  %s12 = ssub.s32 1, %s10
  %s13 = scalar_select 0, %s12, %s10
  $region1: #{tpu_custom_call.1} parent=0
    #allocation2 [shape = 'u8[2048]{0}', space=vmem, size = 0x800, scoped, tag = 'input window, operand 0, single buffered']
    #allocation3 [shape = 's32[1]{0}', space=sflag, size = 0x4, scoped, tag = 'scoped memory for tpu_custom_call.1']
    #allocation4 [shape = 's32[1]{0}', space=sflag, size = 0x4, scoped, tag = 'scoped memory for tpu_custom_call.1']
    #allocation5 [shape = 'u8[16384]{0}', space=vmem, size = 0x4000, scoped, tag = 'input window, operand 1, single buffered']
    #allocation6 [shape = 's32[1]{0}', space=sflag, size = 0x4, scoped, tag = 'scoped memory for tpu_custom_call.1']
    #allocation7 [shape = 'u8[131072]{0}', space=vmem, size = 0x20000, scoped, tag = 'input window, operand 3, single buffered']
    #allocation8 [shape = 'u8[131072]{0}', space=vmem, size = 0x20000, scoped, tag = 'input window, operand 5, single buffered']
    #allocation9 [shape = 's32[1]{0}', space=sflag, size = 0x4, scoped, tag = 'scoped memory for tpu_custom_call.1']
    #allocation10 [shape = 'u8[393216]{0}', space=vmem, size = 0x60000, scoped, tag = 'input window, operand 7, single buffered']
    #allocation11 [shape = 'u8[24576]{0}', space=vmem, size = 0x6000, scoped, tag = 'output window, operand 0, single buffered']
    %14 = vsyncpa [#allocation3], 0
    %15 = vsyncpa [#allocation6], 0
    %16 = vsyncpa [#allocation9], 0
    %17 = vsyncpa [#allocation4], 0
    // Predicated region
    $region2: #{tpu_custom_call.1} parent=1 // pred_check
      _
    $region3: #{tpu_custom_call.1} parent=1 // pred_check_branch
      %19 = sbr.rel (0) target = $region5
    $region4: #{tpu_custom_call.1} parent=1 // pred_region
      %s21 = ssub.s32 64, 64
      %22 = vsyncadd [#allocation3], %s21
      %s24 = sshll.u32 [#allocation2], 4
      %s25 = int_to_ptr.vmem [resolvable:$true] %s24
      %27 = dma.hbm_to_vmem [thread:$0]  %s0, 64, %s25, [#allocation3]
    $region5: #{tpu_custom_call.1} parent=1 // pred_fallthru
      _
    // Predicated region
    $region6: #{tpu_custom_call.1} parent=1 // pred_check
      _
    $region7: #{tpu_custom_call.1} parent=1 // pred_check_branch
      %29 = sbr.rel (0) target = $region9
    $region8: #{tpu_custom_call.1} parent=1 // pred_region
      %s31 = ssub.s32 512, 512
      %32 = vsyncadd [#allocation6], %s31
      %s33 = sshll.u32 [#allocation5], 4
      %s34 = int_to_ptr.vmem [resolvable:$true] %s33
      %39 = dma.hbm_to_vmem [thread:$0]  %s1, 512, %s34, [#allocation6], 128, 128, 8
    $region9: #{tpu_custom_call.1} parent=1 // pred_fallthru
      _
    // Predicated region
    $region10: #{tpu_custom_call.1} parent=1 // pred_check
      _
    $region11: #{tpu_custom_call.1} parent=1 // pred_check_branch
      %41 = sbr.rel (0) target = $region13
    $region12: #{tpu_custom_call.1} parent=1 // pred_region
      _
    $region13: #{tpu_custom_call.1} parent=1 // pred_fallthru
      _
    // Predicated region
    $region14: #{tpu_custom_call.1} parent=1 // pred_check
      _
    $region15: #{tpu_custom_call.1} parent=1 // pred_check_branch
      %43 = sbr.rel (0) target = $region17
    $region16: #{tpu_custom_call.1} parent=1 // pred_region
      %s45 = ssub.s32 4096, 4096
      %46 = vsyncadd [#allocation6], %s45
      %s47 = sshll.u32 [#allocation7], 4
      %s48 = int_to_ptr.vmem [resolvable:$true] %s47
      %53 = dma.hbm_to_vmem [thread:$0]  %s3, 4096, %s48, [#allocation6], 128, 128, 8
    $region17: #{tpu_custom_call.1} parent=1 // pred_fallthru
      _
    // Predicated region
    $region18: #{tpu_custom_call.1} parent=1 // pred_check
      _
    $region19: #{tpu_custom_call.1} parent=1 // pred_check_branch
      %55 = sbr.rel (0) target = $region21
    $region20: #{tpu_custom_call.1} parent=1 // pred_region
      _
    $region21: #{tpu_custom_call.1} parent=1 // pred_fallthru
      _
    // Predicated region
    $region22: #{tpu_custom_call.1} parent=1 // pred_check
      _
    $region23: #{tpu_custom_call.1} parent=1 // pred_check_branch
      %57 = sbr.rel (0) target = $region25
    $region24: #{tpu_custom_call.1} parent=1 // pred_region
      %s59 = ssub.s32 4096, 4096
      %60 = vsyncadd [#allocation9], %s59
      %s61 = sshll.u32 [#allocation8], 4
      %s62 = int_to_ptr.vmem [resolvable:$true] %s61
      %67 = dma.hbm_to_vmem [thread:$0]  %s5, 4096, %s62, [#allocation9], 128, 128, 8
    $region25: #{tpu_custom_call.1} parent=1 // pred_fallthru
      _
    // Predicated region
    $region26: #{tpu_custom_call.1} parent=1 // pred_check
      _
    $region27: #{tpu_custom_call.1} parent=1 // pred_check_branch
      %69 = sbr.rel (0) target = $region29
    $region28: #{tpu_custom_call.1} parent=1 // pred_region
      _
    $region29: #{tpu_custom_call.1} parent=1 // pred_fallthru
      _
    // Predicated region
    $region30: #{tpu_custom_call.1} parent=1 // pred_check
      _
    $region31: #{tpu_custom_call.1} parent=1 // pred_check_branch
      %71 = sbr.rel (0) target = $region33
    $region32: #{tpu_custom_call.1} parent=1 // pred_region
      %s73 = ssub.s32 12288, 12288
      %74 = vsyncadd [#allocation9], %s73
      %s75 = sshll.u32 [#allocation10], 4
      %s76 = int_to_ptr.vmem [resolvable:$true] %s75
      %81 = dma.hbm_to_vmem [thread:$0]  %s7, 12288, %s76, [#allocation9], 384, 384, 24
    $region33: #{tpu_custom_call.1} parent=1 // pred_fallthru
      _
    // Predicated region
    $region34: #{tpu_custom_call.1} parent=1 // pred_check
      _
    $region35: #{tpu_custom_call.1} parent=1 // pred_check_branch
      %83 = sbr.rel (0) target = $region37
    $region36: #{tpu_custom_call.1} parent=1 // pred_region
      _
    $region37: #{tpu_custom_call.1} parent=1 // pred_fallthru
      _
    // Predicated region
    $region38: #{tpu_custom_call.1} parent=1 // pred_check
      _
    $region39: #{tpu_custom_call.1} parent=1 // pred_check_branch
      %85 = sbr.rel (0) target = $region41
    $region40: #{tpu_custom_call.1} parent=1 // pred_region
      %86 = dma.done [#allocation3], 64
    $region41: #{tpu_custom_call.1} parent=1 // pred_fallthru
      _
    // Predicated region
    $region42: #{tpu_custom_call.1} parent=1 // pred_check
      _
    $region43: #{tpu_custom_call.1} parent=1 // pred_check_branch
      %88 = sbr.rel (0) target = $region45
    $region44: #{tpu_custom_call.1} parent=1 // pred_region
      %89 = dma.done [#allocation6], 512
    $region45: #{tpu_custom_call.1} parent=1 // pred_fallthru
      _
    // Predicated region
    $region46: #{tpu_custom_call.1} parent=1 // pred_check
      _
    $region47: #{tpu_custom_call.1} parent=1 // pred_check_branch
      %91 = sbr.rel (0) target = $region49
    $region48: #{tpu_custom_call.1} parent=1 // pred_region
      %92 = dma.done [#allocation6], 4096
    $region49: #{tpu_custom_call.1} parent=1 // pred_fallthru
      _
    // Predicated region
    $region50: #{tpu_custom_call.1} parent=1 // pred_check
      _
    $region51: #{tpu_custom_call.1} parent=1 // pred_check_branch
      %94 = sbr.rel (0) target = $region53
    $region52: #{tpu_custom_call.1} parent=1 // pred_region
      %95 = dma.done [#allocation9], 4096
    $region53: #{tpu_custom_call.1} parent=1 // pred_fallthru
      _
    // Predicated region
    $region54: #{tpu_custom_call.1} parent=1 // pred_check
      _
    $region55: #{tpu_custom_call.1} parent=1 // pred_check_branch
      %97 = sbr.rel (0) target = $region57
    $region56: #{tpu_custom_call.1} parent=1 // pred_region
      %98 = dma.done [#allocation9], 12288
    $region57: #{tpu_custom_call.1} parent=1 // pred_fallthru
      _
    %v100 = vld [vmem:[#allocation2] sm:$0xf]
    %v101 = vld [vmem:[#allocation5] sm:$0xff]
    %v102 = vld [vmem:[#allocation5 + $0x8] sm:$0xff]
    %v103 = vld [vmem:[#allocation5 + $0x10] sm:$0xff]
    %v104 = vld [vmem:[#allocation5 + $0x18] sm:$0x33]
    %v105 = vld [vmem:[%s2] sm:$0x3]
    %v107 = vlaneseq
    %v108 = vshrl.u32 %v107, 7
    %v109 = vsub.s32 0, %v108
    %v110 = vrot.slane %v105, %v109
    %v111 = vlaneseq
    %v112 = vshrl.u32 %v111, 7
    %v113 = vsub.s32 1, %v112
    %v114 = vrot.slane %v105, %v113
    %v121 = vunpack.c.l.b16 %v101
    %v122 = vunpack.c.h.b16 %v101
    %v123 = vunpack.c.l.b16 %v102
    %v124 = vunpack.c.h.b16 %v102
    %v125 = vunpack.c.l.b16 %v103
    %v126 = vunpack.c.h.b16 %v103
    %v127 = vunpack.c.l.b16 %v104
    %v128 = vunpack.c.h.b16 %v104
    %v129 = vpack.c.b16 %v123, %v121
    %v130 = vpack.c.b16 %v124, %v122
    %v131 = vpack.c.b16 %v127, %v125
    %v132 = vpack.c.b16 %v128, %v126
    %vm135 = vcmask 220160
    %v137 = vsel %vm135, %v100, 0
    %vm139 = vcmask 1044480
    %vm140 = vcmask 1045504
    %v141 = vsel %vm139, 4294967295, 65535
    %v142 = vsel %vm140, %v141, 0
    %v144 = vand.u32 %v131, %v142
    %v147 = vand.u32 %v132, %v142
    %149 = vmatprep.subr.bf16.mxu0 %v130
    %150 = vmatpush1.bf16.msra.mxu0 %v129
    %151 = vmatprep.subr.bf16.mxu0 %v147
    %152 = vmatpush1.bf16.msra.mxu0 %v144
    %153 = vmatprep.subr.bf16.mxu0 0
    %154 = vmatpush1.bf16.msra.mxu0 0
    %155 = vmatprep.subr.bf16.mxu0 0
    %156 = vmatpush1.bf16.msra.mxu0 0
    %157 = vmatprep.subr.bf16.mxu0 0
    %158 = vmatpush1.bf16.msra.mxu0 0
    %159 = vmatprep.subr.bf16.mxu0 0
    %160 = vmatpush1.bf16.msra.mxu0 0
    %161 = vmatprep.subr.bf16.mxu0 0
    %162 = vmatpush1.bf16.msra.mxu0 0
    %163 = vmatprep.subr.bf16.mxu0 0
    %164 = vmatpush1.bf16.msra.mxu0 0
    %165 = vmatprep.subr.bf16.mxu0 0
    %166 = vmatpush1.bf16.msra.mxu0 0
    %167 = vmatprep.subr.bf16.mxu0 0
    %168 = vmatpush1.bf16.msra.mxu0 0
    %169 = vmatprep.subr.bf16.mxu0 0
    %170 = vmatpush1.bf16.msra.mxu0 0
    %171 = vmatprep.subr.bf16.mxu0 0
    %172 = vmatpush1.bf16.msra.mxu0 0
    %173 = vmatprep.subr.bf16.mxu0 0
    %174 = vmatpush1.bf16.msra.mxu0 0
    %175 = vmatprep.subr.bf16.mxu0 0
    %176 = vmatpush1.bf16.msra.mxu0 0
    %177 = vmatprep.subr.bf16.mxu0 0
    %178 = vmatpush1.bf16.msra.mxu0 0
    %179 = vmatprep.subr.bf16.mxu0 0
    %180 = vmatpush1.bf16.msra.mxu0 0
    %181 = vmatprep.mubr.bf16.mxu0 0
    %182 = vmatmul.mubr.bf16.gmra.mrb[0].mxu0 %v137
    %v183 = vpop.f32.mrb[0].mxu0
    %v184 = vadd.f32 %v110, %v183
    %v185 = vpop.f32.mrb[0].mxu0
    %v186 = vadd.f32 %v114, %v185
    %v187 = vpop.f32.mrb[0].mxu0
    %v188 = vpop.f32.mrb[0].mxu0
    %189 = vdwg.mxu0
    %v190 = vmax.f32 %v184, 0.0
    %v191 = vmax.f32 %v186, 0.0
    %v192 = vpack.c.bf16 %v190, %v190
    %v193 = vpack.c.bf16 %v191, %v191
    %v194 = vld [vmem:[#allocation7] sm:$0xff]
    %v195 = vld [vmem:[#allocation7 + $0x8] sm:$0xff]
    %v196 = vld [vmem:[#allocation7 + $0x10] sm:$0xff]
    %v197 = vld [vmem:[#allocation7 + $0x18] sm:$0xff]
    %v198 = vld [vmem:[#allocation7 + $0x20] sm:$0xff]
    %v199 = vld [vmem:[#allocation7 + $0x28] sm:$0xff]
    %v200 = vld [vmem:[#allocation7 + $0x30] sm:$0xff]
    %v201 = vld [vmem:[#allocation7 + $0x38] sm:$0xff]
    %v202 = vld [vmem:[#allocation7 + $0x40] sm:$0xff]
    %v203 = vld [vmem:[#allocation7 + $0x48] sm:$0xff]
    %v204 = vld [vmem:[#allocation7 + $0x50] sm:$0xff]
    %v205 = vld [vmem:[#allocation7 + $0x58] sm:$0xff]
    %v206 = vld [vmem:[#allocation7 + $0x60] sm:$0xff]
    %v207 = vld [vmem:[#allocation7 + $0x68] sm:$0xff]
    %v208 = vld [vmem:[#allocation7 + $0x70] sm:$0xff]
    %v209 = vld [vmem:[#allocation7 + $0x78] sm:$0xff]
    %v210 = vld [vmem:[#allocation7 + $0x80] sm:$0xff]
    %v211 = vld [vmem:[#allocation7 + $0x88] sm:$0xff]
    %v212 = vld [vmem:[#allocation7 + $0x90] sm:$0xff]
    %v213 = vld [vmem:[#allocation7 + $0x98] sm:$0xff]
    %v214 = vld [vmem:[#allocation7 + $0xa0] sm:$0xff]
    %v215 = vld [vmem:[#allocation7 + $0xa8] sm:$0xff]
    %v216 = vld [vmem:[#allocation7 + $0xb0] sm:$0xff]
    %v217 = vld [vmem:[#allocation7 + $0xb8] sm:$0xff]
    %v218 = vld [vmem:[#allocation7 + $0xc0] sm:$0xff]
    %v219 = vld [vmem:[#allocation7 + $0xc8] sm:$0xff]
    %v220 = vld [vmem:[#allocation7 + $0xd0] sm:$0xff]
    %v221 = vld [vmem:[#allocation7 + $0xd8] sm:$0xff]
    %v222 = vld [vmem:[#allocation7 + $0xe0] sm:$0xff]
    %v223 = vld [vmem:[#allocation7 + $0xe8] sm:$0xff]
    %v224 = vld [vmem:[#allocation7 + $0xf0] sm:$0xff]
    %v225 = vld [vmem:[#allocation7 + $0xf8] sm:$0xff]
    %v226 = vld [vmem:[%s4] sm:$0x3]
    %v228 = vlaneseq
    %v229 = vshrl.u32 %v228, 7
    %v230 = vsub.s32 0, %v229
    %v231 = vrot.slane %v226, %v230
    %v232 = vlaneseq
    %v233 = vshrl.u32 %v232, 7
    %v234 = vsub.s32 1, %v233
    %v235 = vrot.slane %v226, %v234
    %v270 = vunpack.c.l.b16 %v194
    %v271 = vunpack.c.h.b16 %v194
    %v272 = vunpack.c.l.b16 %v195
    %v273 = vunpack.c.h.b16 %v195
    %v274 = vunpack.c.l.b16 %v196
    %v275 = vunpack.c.h.b16 %v196
    %v276 = vunpack.c.l.b16 %v197
    %v277 = vunpack.c.h.b16 %v197
    %v278 = vunpack.c.l.b16 %v198
    %v279 = vunpack.c.h.b16 %v198
    %v280 = vunpack.c.l.b16 %v199
    %v281 = vunpack.c.h.b16 %v199
    %v282 = vunpack.c.l.b16 %v200
    %v283 = vunpack.c.h.b16 %v200
    %v284 = vunpack.c.l.b16 %v201
    %v285 = vunpack.c.h.b16 %v201
    %v286 = vunpack.c.l.b16 %v202
    %v287 = vunpack.c.h.b16 %v202
    %v288 = vunpack.c.l.b16 %v203
    %v289 = vunpack.c.h.b16 %v203
    %v290 = vunpack.c.l.b16 %v204
    %v291 = vunpack.c.h.b16 %v204
    %v292 = vunpack.c.l.b16 %v205
    %v293 = vunpack.c.h.b16 %v205
    %v294 = vunpack.c.l.b16 %v206
    %v295 = vunpack.c.h.b16 %v206
    %v296 = vunpack.c.l.b16 %v207
    %v297 = vunpack.c.h.b16 %v207
    %v298 = vunpack.c.l.b16 %v208
    %v299 = vunpack.c.h.b16 %v208
    %v300 = vunpack.c.l.b16 %v209
    %v301 = vunpack.c.h.b16 %v209
    %v302 = vunpack.c.l.b16 %v210
    %v303 = vunpack.c.h.b16 %v210
    %v304 = vunpack.c.l.b16 %v211
    %v305 = vunpack.c.h.b16 %v211
    %v306 = vunpack.c.l.b16 %v212
    %v307 = vunpack.c.h.b16 %v212
    %v308 = vunpack.c.l.b16 %v213
    %v309 = vunpack.c.h.b16 %v213
    %v310 = vunpack.c.l.b16 %v214
    %v311 = vunpack.c.h.b16 %v214
    %v312 = vunpack.c.l.b16 %v215
    %v313 = vunpack.c.h.b16 %v215
    %v314 = vunpack.c.l.b16 %v216
    %v315 = vunpack.c.h.b16 %v216
    %v316 = vunpack.c.l.b16 %v217
    %v317 = vunpack.c.h.b16 %v217
    %v318 = vunpack.c.l.b16 %v218
    %v319 = vunpack.c.h.b16 %v218
    %v320 = vunpack.c.l.b16 %v219
    %v321 = vunpack.c.h.b16 %v219
    %v322 = vunpack.c.l.b16 %v220
    %v323 = vunpack.c.h.b16 %v220
    %v324 = vunpack.c.l.b16 %v221
    %v325 = vunpack.c.h.b16 %v221
    %v326 = vunpack.c.l.b16 %v222
    %v327 = vunpack.c.h.b16 %v222
    %v328 = vunpack.c.l.b16 %v223
    %v329 = vunpack.c.h.b16 %v223
    %v330 = vunpack.c.l.b16 %v224
    %v331 = vunpack.c.h.b16 %v224
    %v332 = vunpack.c.l.b16 %v225
    %v333 = vunpack.c.h.b16 %v225
    %v334 = vpack.c.b16 %v272, %v270
    %v335 = vpack.c.b16 %v273, %v271
    %v336 = vpack.c.b16 %v276, %v274
    %v337 = vpack.c.b16 %v277, %v275
    %v338 = vpack.c.b16 %v280, %v278
    %v339 = vpack.c.b16 %v281, %v279
    %v340 = vpack.c.b16 %v284, %v282
    %v341 = vpack.c.b16 %v285, %v283
    %v342 = vpack.c.b16 %v288, %v286
    %v343 = vpack.c.b16 %v289, %v287
    %v344 = vpack.c.b16 %v292, %v290
    %v345 = vpack.c.b16 %v293, %v291
    %v346 = vpack.c.b16 %v296, %v294
    %v347 = vpack.c.b16 %v297, %v295
    %v348 = vpack.c.b16 %v300, %v298
    %v349 = vpack.c.b16 %v301, %v299
    %v350 = vpack.c.b16 %v304, %v302
    %v351 = vpack.c.b16 %v305, %v303
    %v352 = vpack.c.b16 %v308, %v306
    %v353 = vpack.c.b16 %v309, %v307
    %v354 = vpack.c.b16 %v312, %v310
    %v355 = vpack.c.b16 %v313, %v311
    %v356 = vpack.c.b16 %v316, %v314
    %v357 = vpack.c.b16 %v317, %v315
    %v358 = vpack.c.b16 %v320, %v318
    %v359 = vpack.c.b16 %v321, %v319
    %v360 = vpack.c.b16 %v324, %v322
    %v361 = vpack.c.b16 %v325, %v323
    %v362 = vpack.c.b16 %v328, %v326
    %v363 = vpack.c.b16 %v329, %v327
    %v364 = vpack.c.b16 %v332, %v330
    %v365 = vpack.c.b16 %v333, %v331
    %398 = vmatprep.subr.bf16.mxu0 %v335
    %399 = vmatpush1.bf16.msra.mxu0 %v334
    %400 = vmatprep.subr.bf16.mxu0 %v337
    %401 = vmatpush1.bf16.msra.mxu0 %v336
    %402 = vmatprep.subr.bf16.mxu0 %v339
    %403 = vmatpush1.bf16.msra.mxu0 %v338
    %404 = vmatprep.subr.bf16.mxu0 %v341
    %405 = vmatpush1.bf16.msra.mxu0 %v340
    %406 = vmatprep.subr.bf16.mxu0 %v343
    %407 = vmatpush1.bf16.msra.mxu0 %v342
    %408 = vmatprep.subr.bf16.mxu0 %v345
    %409 = vmatpush1.bf16.msra.mxu0 %v344
    %410 = vmatprep.subr.bf16.mxu0 %v347
    %411 = vmatpush1.bf16.msra.mxu0 %v346
    %412 = vmatprep.subr.bf16.mxu0 %v349
    %413 = vmatpush1.bf16.msra.mxu0 %v348
    %414 = vmatprep.subr.bf16.mxu0 %v351
    %415 = vmatpush1.bf16.msra.mxu0 %v350
    %416 = vmatprep.subr.bf16.mxu0 %v353
    %417 = vmatpush1.bf16.msra.mxu0 %v352
    %418 = vmatprep.subr.bf16.mxu0 %v355
    %419 = vmatpush1.bf16.msra.mxu0 %v354
    %420 = vmatprep.subr.bf16.mxu0 %v357
    %421 = vmatpush1.bf16.msra.mxu0 %v356
    %422 = vmatprep.subr.bf16.mxu0 %v359
    %423 = vmatpush1.bf16.msra.mxu0 %v358
    %424 = vmatprep.subr.bf16.mxu0 %v361
    %425 = vmatpush1.bf16.msra.mxu0 %v360
    %426 = vmatprep.subr.bf16.mxu0 %v363
    %427 = vmatpush1.bf16.msra.mxu0 %v362
    %428 = vmatprep.subr.bf16.mxu0 %v365
    %429 = vmatpush1.bf16.msra.mxu0 %v364
    %430 = vmatprep.mubr.bf16.mxu0 %v193
    %431 = vmatmul.mubr.bf16.gmra.mrb[0].mxu0 %v192
    %v432 = vpop.f32.mrb[0].mxu0
    %v433 = vadd.f32 %v231, %v432
    %v434 = vpop.f32.mrb[0].mxu0
    %v435 = vadd.f32 %v235, %v434
    %v436 = vpop.f32.mrb[0].mxu0
    %v437 = vpop.f32.mrb[0].mxu0
    %438 = vdwg.mxu0
    %v439 = vmax.f32 %v433, 0.0
    %v440 = vmax.f32 %v435, 0.0
    %v441 = vpack.c.bf16 %v439, %v439
    %v442 = vpack.c.bf16 %v440, %v440
    %v443 = vld [vmem:[#allocation8] sm:$0xff]
    %v444 = vld [vmem:[#allocation8 + $0x8] sm:$0xff]
    %v445 = vld [vmem:[#allocation8 + $0x10] sm:$0xff]
    %v446 = vld [vmem:[#allocation8 + $0x18] sm:$0xff]
    %v447 = vld [vmem:[#allocation8 + $0x20] sm:$0xff]
    %v448 = vld [vmem:[#allocation8 + $0x28] sm:$0xff]
    %v449 = vld [vmem:[#allocation8 + $0x30] sm:$0xff]
    %v450 = vld [vmem:[#allocation8 + $0x38] sm:$0xff]
    %v451 = vld [vmem:[#allocation8 + $0x40] sm:$0xff]
    %v452 = vld [vmem:[#allocation8 + $0x48] sm:$0xff]
    %v453 = vld [vmem:[#allocation8 + $0x50] sm:$0xff]
    %v454 = vld [vmem:[#allocation8 + $0x58] sm:$0xff]
    %v455 = vld [vmem:[#allocation8 + $0x60] sm:$0xff]
    %v456 = vld [vmem:[#allocation8 + $0x68] sm:$0xff]
    %v457 = vld [vmem:[#allocation8 + $0x70] sm:$0xff]
    %v458 = vld [vmem:[#allocation8 + $0x78] sm:$0xff]
    %v459 = vld [vmem:[#allocation8 + $0x80] sm:$0xff]
    %v460 = vld [vmem:[#allocation8 + $0x88] sm:$0xff]
    %v461 = vld [vmem:[#allocation8 + $0x90] sm:$0xff]
    %v462 = vld [vmem:[#allocation8 + $0x98] sm:$0xff]
    %v463 = vld [vmem:[#allocation8 + $0xa0] sm:$0xff]
    %v464 = vld [vmem:[#allocation8 + $0xa8] sm:$0xff]
    %v465 = vld [vmem:[#allocation8 + $0xb0] sm:$0xff]
    %v466 = vld [vmem:[#allocation8 + $0xb8] sm:$0xff]
    %v467 = vld [vmem:[#allocation8 + $0xc0] sm:$0xff]
    %v468 = vld [vmem:[#allocation8 + $0xc8] sm:$0xff]
    %v469 = vld [vmem:[#allocation8 + $0xd0] sm:$0xff]
    %v470 = vld [vmem:[#allocation8 + $0xd8] sm:$0xff]
    %v471 = vld [vmem:[#allocation8 + $0xe0] sm:$0xff]
    %v472 = vld [vmem:[#allocation8 + $0xe8] sm:$0xff]
    %v473 = vld [vmem:[#allocation8 + $0xf0] sm:$0xff]
    %v474 = vld [vmem:[#allocation8 + $0xf8] sm:$0xff]
    %v475 = vld [vmem:[%s6] sm:$0x3]
    %v477 = vlaneseq
    %v478 = vshrl.u32 %v477, 7
    %v479 = vsub.s32 0, %v478
    %v480 = vrot.slane %v475, %v479
    %v481 = vlaneseq
    %v482 = vshrl.u32 %v481, 7
    %v483 = vsub.s32 1, %v482
    %v484 = vrot.slane %v475, %v483
    %v519 = vunpack.c.l.b16 %v443
    %v520 = vunpack.c.h.b16 %v443
    %v521 = vunpack.c.l.b16 %v444
    %v522 = vunpack.c.h.b16 %v444
    %v523 = vunpack.c.l.b16 %v445
    %v524 = vunpack.c.h.b16 %v445
    %v525 = vunpack.c.l.b16 %v446
    %v526 = vunpack.c.h.b16 %v446
    %v527 = vunpack.c.l.b16 %v447
    %v528 = vunpack.c.h.b16 %v447
    %v529 = vunpack.c.l.b16 %v448
    %v530 = vunpack.c.h.b16 %v448
    %v531 = vunpack.c.l.b16 %v449
    %v532 = vunpack.c.h.b16 %v449
    %v533 = vunpack.c.l.b16 %v450
    %v534 = vunpack.c.h.b16 %v450
    %v535 = vunpack.c.l.b16 %v451
    %v536 = vunpack.c.h.b16 %v451
    %v537 = vunpack.c.l.b16 %v452
    %v538 = vunpack.c.h.b16 %v452
    %v539 = vunpack.c.l.b16 %v453
    %v540 = vunpack.c.h.b16 %v453
    %v541 = vunpack.c.l.b16 %v454
    %v542 = vunpack.c.h.b16 %v454
    %v543 = vunpack.c.l.b16 %v455
    %v544 = vunpack.c.h.b16 %v455
    %v545 = vunpack.c.l.b16 %v456
    %v546 = vunpack.c.h.b16 %v456
    %v547 = vunpack.c.l.b16 %v457
    %v548 = vunpack.c.h.b16 %v457
    %v549 = vunpack.c.l.b16 %v458
    %v550 = vunpack.c.h.b16 %v458
    %v551 = vunpack.c.l.b16 %v459
    %v552 = vunpack.c.h.b16 %v459
    %v553 = vunpack.c.l.b16 %v460
    %v554 = vunpack.c.h.b16 %v460
    %v555 = vunpack.c.l.b16 %v461
    %v556 = vunpack.c.h.b16 %v461
    %v557 = vunpack.c.l.b16 %v462
    %v558 = vunpack.c.h.b16 %v462
    %v559 = vunpack.c.l.b16 %v463
    %v560 = vunpack.c.h.b16 %v463
    %v561 = vunpack.c.l.b16 %v464
    %v562 = vunpack.c.h.b16 %v464
    %v563 = vunpack.c.l.b16 %v465
    %v564 = vunpack.c.h.b16 %v465
    %v565 = vunpack.c.l.b16 %v466
    %v566 = vunpack.c.h.b16 %v466
    %v567 = vunpack.c.l.b16 %v467
    %v568 = vunpack.c.h.b16 %v467
    %v569 = vunpack.c.l.b16 %v468
    %v570 = vunpack.c.h.b16 %v468
    %v571 = vunpack.c.l.b16 %v469
    %v572 = vunpack.c.h.b16 %v469
    %v573 = vunpack.c.l.b16 %v470
    %v574 = vunpack.c.h.b16 %v470
    %v575 = vunpack.c.l.b16 %v471
    %v576 = vunpack.c.h.b16 %v471
    %v577 = vunpack.c.l.b16 %v472
    %v578 = vunpack.c.h.b16 %v472
    %v579 = vunpack.c.l.b16 %v473
    %v580 = vunpack.c.h.b16 %v473
    %v581 = vunpack.c.l.b16 %v474
    %v582 = vunpack.c.h.b16 %v474
    %v583 = vpack.c.b16 %v521, %v519
    %v584 = vpack.c.b16 %v522, %v520
    %v585 = vpack.c.b16 %v525, %v523
    %v586 = vpack.c.b16 %v526, %v524
    %v587 = vpack.c.b16 %v529, %v527
    %v588 = vpack.c.b16 %v530, %v528
    %v589 = vpack.c.b16 %v533, %v531
    %v590 = vpack.c.b16 %v534, %v532
    %v591 = vpack.c.b16 %v537, %v535
    %v592 = vpack.c.b16 %v538, %v536
    %v593 = vpack.c.b16 %v541, %v539
    %v594 = vpack.c.b16 %v542, %v540
    %v595 = vpack.c.b16 %v545, %v543
    %v596 = vpack.c.b16 %v546, %v544
    %v597 = vpack.c.b16 %v549, %v547
    %v598 = vpack.c.b16 %v550, %v548
    %v599 = vpack.c.b16 %v553, %v551
    %v600 = vpack.c.b16 %v554, %v552
    %v601 = vpack.c.b16 %v557, %v555
    %v602 = vpack.c.b16 %v558, %v556
    %v603 = vpack.c.b16 %v561, %v559
    %v604 = vpack.c.b16 %v562, %v560
    %v605 = vpack.c.b16 %v565, %v563
    %v606 = vpack.c.b16 %v566, %v564
    %v607 = vpack.c.b16 %v569, %v567
    %v608 = vpack.c.b16 %v570, %v568
    %v609 = vpack.c.b16 %v573, %v571
    %v610 = vpack.c.b16 %v574, %v572
    %v611 = vpack.c.b16 %v577, %v575
    %v612 = vpack.c.b16 %v578, %v576
    %v613 = vpack.c.b16 %v581, %v579
    %v614 = vpack.c.b16 %v582, %v580
    %647 = vmatprep.subr.bf16.mxu0 %v584
    %648 = vmatpush1.bf16.msra.mxu0 %v583
    %649 = vmatprep.subr.bf16.mxu0 %v586
    %650 = vmatpush1.bf16.msra.mxu0 %v585
    %651 = vmatprep.subr.bf16.mxu0 %v588
    %652 = vmatpush1.bf16.msra.mxu0 %v587
    %653 = vmatprep.subr.bf16.mxu0 %v590
    %654 = vmatpush1.bf16.msra.mxu0 %v589
    %655 = vmatprep.subr.bf16.mxu0 %v592
    %656 = vmatpush1.bf16.msra.mxu0 %v591
    %657 = vmatprep.subr.bf16.mxu0 %v594
    %658 = vmatpush1.bf16.msra.mxu0 %v593
    %659 = vmatprep.subr.bf16.mxu0 %v596
    %660 = vmatpush1.bf16.msra.mxu0 %v595
    %661 = vmatprep.subr.bf16.mxu0 %v598
    %662 = vmatpush1.bf16.msra.mxu0 %v597
    %663 = vmatprep.subr.bf16.mxu0 %v600
    %664 = vmatpush1.bf16.msra.mxu0 %v599
    %665 = vmatprep.subr.bf16.mxu0 %v602
    %666 = vmatpush1.bf16.msra.mxu0 %v601
    %667 = vmatprep.subr.bf16.mxu0 %v604
    %668 = vmatpush1.bf16.msra.mxu0 %v603
    %669 = vmatprep.subr.bf16.mxu0 %v606
    %670 = vmatpush1.bf16.msra.mxu0 %v605
    %671 = vmatprep.subr.bf16.mxu0 %v608
    %672 = vmatpush1.bf16.msra.mxu0 %v607
    %673 = vmatprep.subr.bf16.mxu0 %v610
    %674 = vmatpush1.bf16.msra.mxu0 %v609
    %675 = vmatprep.subr.bf16.mxu0 %v612
    %676 = vmatpush1.bf16.msra.mxu0 %v611
    %677 = vmatprep.subr.bf16.mxu0 %v614
    %678 = vmatpush1.bf16.msra.mxu0 %v613
    %679 = vmatprep.mubr.bf16.mxu0 %v442
    %680 = vmatmul.mubr.bf16.gmra.mrb[0].mxu0 %v441
    %v681 = vpop.f32.mrb[0].mxu0
    %v682 = vadd.f32 %v480, %v681
    %v683 = vpop.f32.mrb[0].mxu0
    %v684 = vadd.f32 %v484, %v683
    %v685 = vpop.f32.mrb[0].mxu0
    %v686 = vpop.f32.mrb[0].mxu0
    %687 = vdwg.mxu0
    %v688 = vmax.f32 %v682, 0.0
    %v689 = vmax.f32 %v684, 0.0
    %v690 = vpack.c.bf16 %v688, %v688
    %v691 = vpack.c.bf16 %v689, %v689
    %v692 = vld [vmem:[#allocation10] sm:$0xff]
    %v693 = vld [vmem:[#allocation10 + $0x8] sm:$0xff]
    %v694 = vld [vmem:[#allocation10 + $0x10] sm:$0xff]
    %v695 = vld [vmem:[#allocation10 + $0x18] sm:$0xff]
    %v696 = vld [vmem:[#allocation10 + $0x20] sm:$0xff]
    %v697 = vld [vmem:[#allocation10 + $0x28] sm:$0xff]
    %v698 = vld [vmem:[#allocation10 + $0x30] sm:$0xff]
    %v699 = vld [vmem:[#allocation10 + $0x38] sm:$0xff]
    %v700 = vld [vmem:[#allocation10 + $0x40] sm:$0xff]
    %v701 = vld [vmem:[#allocation10 + $0x48] sm:$0xff]
    %v702 = vld [vmem:[#allocation10 + $0x50] sm:$0xff]
    %v703 = vld [vmem:[#allocation10 + $0x58] sm:$0xff]
    %v704 = vld [vmem:[#allocation10 + $0x60] sm:$0xff]
    %v705 = vld [vmem:[#allocation10 + $0x68] sm:$0xff]
    %v706 = vld [vmem:[#allocation10 + $0x70] sm:$0xff]
    %v707 = vld [vmem:[#allocation10 + $0x78] sm:$0xff]
    %v708 = vld [vmem:[#allocation10 + $0x80] sm:$0xff]
    %v709 = vld [vmem:[#allocation10 + $0x88] sm:$0xff]
    %v710 = vld [vmem:[#allocation10 + $0x90] sm:$0xff]
    %v711 = vld [vmem:[#allocation10 + $0x98] sm:$0xff]
    %v712 = vld [vmem:[#allocation10 + $0xa0] sm:$0xff]
    %v713 = vld [vmem:[#allocation10 + $0xa8] sm:$0xff]
    %v714 = vld [vmem:[#allocation10 + $0xb0] sm:$0xff]
    %v715 = vld [vmem:[#allocation10 + $0xb8] sm:$0xff]
    %v716 = vld [vmem:[#allocation10 + $0xc0] sm:$0xff]
    %v717 = vld [vmem:[#allocation10 + $0xc8] sm:$0xff]
    %v718 = vld [vmem:[#allocation10 + $0xd0] sm:$0xff]
    %v719 = vld [vmem:[#allocation10 + $0xd8] sm:$0xff]
    %v720 = vld [vmem:[#allocation10 + $0xe0] sm:$0xff]
    %v721 = vld [vmem:[#allocation10 + $0xe8] sm:$0xff]
    %v722 = vld [vmem:[#allocation10 + $0xf0] sm:$0xff]
    %v723 = vld [vmem:[#allocation10 + $0xf8] sm:$0xff]
    %v724 = vld [vmem:[#allocation10 + $0x100] sm:$0xff]
    %v725 = vld [vmem:[#allocation10 + $0x108] sm:$0xff]
    %v726 = vld [vmem:[#allocation10 + $0x110] sm:$0xff]
    %v727 = vld [vmem:[#allocation10 + $0x118] sm:$0xff]
    %v728 = vld [vmem:[#allocation10 + $0x120] sm:$0xff]
    %v729 = vld [vmem:[#allocation10 + $0x128] sm:$0xff]
    %v730 = vld [vmem:[#allocation10 + $0x130] sm:$0xff]
    %v731 = vld [vmem:[#allocation10 + $0x138] sm:$0xff]
    %v732 = vld [vmem:[#allocation10 + $0x140] sm:$0xff]
    %v733 = vld [vmem:[#allocation10 + $0x148] sm:$0xff]
    %v734 = vld [vmem:[#allocation10 + $0x150] sm:$0xff]
    %v735 = vld [vmem:[#allocation10 + $0x158] sm:$0xff]
    %v736 = vld [vmem:[#allocation10 + $0x160] sm:$0xff]
    %v737 = vld [vmem:[#allocation10 + $0x168] sm:$0xff]
    %v738 = vld [vmem:[#allocation10 + $0x170] sm:$0xff]
    %v739 = vld [vmem:[#allocation10 + $0x178] sm:$0xff]
    %v740 = vld [vmem:[#allocation10 + $0x180] sm:$0xff]
    %v741 = vld [vmem:[#allocation10 + $0x188] sm:$0xff]
    %v742 = vld [vmem:[#allocation10 + $0x190] sm:$0xff]
    %v743 = vld [vmem:[#allocation10 + $0x198] sm:$0xff]
    %v744 = vld [vmem:[#allocation10 + $0x1a0] sm:$0xff]
    %v745 = vld [vmem:[#allocation10 + $0x1a8] sm:$0xff]
    %v746 = vld [vmem:[#allocation10 + $0x1b0] sm:$0xff]
    %v747 = vld [vmem:[#allocation10 + $0x1b8] sm:$0xff]
    %v748 = vld [vmem:[#allocation10 + $0x1c0] sm:$0xff]
    %v749 = vld [vmem:[#allocation10 + $0x1c8] sm:$0xff]
    %v750 = vld [vmem:[#allocation10 + $0x1d0] sm:$0xff]
    %v751 = vld [vmem:[#allocation10 + $0x1d8] sm:$0xff]
    %v752 = vld [vmem:[#allocation10 + $0x1e0] sm:$0xff]
    %v753 = vld [vmem:[#allocation10 + $0x1e8] sm:$0xff]
    %v754 = vld [vmem:[#allocation10 + $0x1f0] sm:$0xff]
    %v755 = vld [vmem:[#allocation10 + $0x1f8] sm:$0xff]
    %v756 = vld [vmem:[#allocation10 + $0x200] sm:$0xff]
    %v757 = vld [vmem:[#allocation10 + $0x208] sm:$0xff]
    %v758 = vld [vmem:[#allocation10 + $0x210] sm:$0xff]
    %v759 = vld [vmem:[#allocation10 + $0x218] sm:$0xff]
    %v760 = vld [vmem:[#allocation10 + $0x220] sm:$0xff]
    %v761 = vld [vmem:[#allocation10 + $0x228] sm:$0xff]
    %v762 = vld [vmem:[#allocation10 + $0x230] sm:$0xff]
    %v763 = vld [vmem:[#allocation10 + $0x238] sm:$0xff]
    %v764 = vld [vmem:[#allocation10 + $0x240] sm:$0xff]
    %v765 = vld [vmem:[#allocation10 + $0x248] sm:$0xff]
    %v766 = vld [vmem:[#allocation10 + $0x250] sm:$0xff]
    %v767 = vld [vmem:[#allocation10 + $0x258] sm:$0xff]
    %v768 = vld [vmem:[#allocation10 + $0x260] sm:$0xff]
    %v769 = vld [vmem:[#allocation10 + $0x268] sm:$0xff]
    %v770 = vld [vmem:[#allocation10 + $0x270] sm:$0xff]
    %v771 = vld [vmem:[#allocation10 + $0x278] sm:$0xff]
    %v772 = vld [vmem:[#allocation10 + $0x280] sm:$0xff]
    %v773 = vld [vmem:[#allocation10 + $0x288] sm:$0xff]
    %v774 = vld [vmem:[#allocation10 + $0x290] sm:$0xff]
    %v775 = vld [vmem:[#allocation10 + $0x298] sm:$0xff]
    %v776 = vld [vmem:[#allocation10 + $0x2a0] sm:$0xff]
    %v777 = vld [vmem:[#allocation10 + $0x2a8] sm:$0xff]
    %v778 = vld [vmem:[#allocation10 + $0x2b0] sm:$0xff]
    %v779 = vld [vmem:[#allocation10 + $0x2b8] sm:$0xff]
    %v780 = vld [vmem:[#allocation10 + $0x2c0] sm:$0xff]
    %v781 = vld [vmem:[#allocation10 + $0x2c8] sm:$0xff]
    %v782 = vld [vmem:[#allocation10 + $0x2d0] sm:$0xff]
    %v783 = vld [vmem:[#allocation10 + $0x2d8] sm:$0xff]
    %v784 = vld [vmem:[#allocation10 + $0x2e0] sm:$0xff]
    %v785 = vld [vmem:[#allocation10 + $0x2e8] sm:$0xff]
    %v786 = vld [vmem:[#allocation10 + $0x2f0] sm:$0xff]
    %v787 = vld [vmem:[#allocation10 + $0x2f8] sm:$0xff]
    %v788 = vld [vmem:[%s8] sm:$0x3f]
    %v790 = vlaneseq
    %v791 = vshrl.u32 %v790, 7
    %v792 = vsub.s32 0, %v791
    %v793 = vrot.slane %v788, %v792
    %v794 = vlaneseq
    %v795 = vshrl.u32 %v794, 7
    %v796 = vsub.s32 1, %v795
    %v797 = vrot.slane %v788, %v796
    %v798 = vlaneseq
    %v799 = vshrl.u32 %v798, 7
    %v800 = vsub.s32 2, %v799
    %v801 = vrot.slane %v788, %v800
    %v802 = vlaneseq
    %v803 = vshrl.u32 %v802, 7
    %v804 = vsub.s32 3, %v803
    %v805 = vrot.slane %v788, %v804
    %v806 = vlaneseq
    %v807 = vshrl.u32 %v806, 7
    %v808 = vsub.s32 4, %v807
    %v809 = vrot.slane %v788, %v808
    %v810 = vlaneseq
    %v811 = vshrl.u32 %v810, 7
    %v812 = vsub.s32 5, %v811
    %v813 = vrot.slane %v788, %v812
    %v916 = vunpack.c.l.b16 %v692
    %v917 = vunpack.c.h.b16 %v692
    %v918 = vunpack.c.l.b16 %v693
    %v919 = vunpack.c.h.b16 %v693
    %v920 = vunpack.c.l.b16 %v694
    %v921 = vunpack.c.h.b16 %v694
    %v922 = vunpack.c.l.b16 %v695
    %v923 = vunpack.c.h.b16 %v695
    %v924 = vunpack.c.l.b16 %v696
    %v925 = vunpack.c.h.b16 %v696
    %v926 = vunpack.c.l.b16 %v697
    %v927 = vunpack.c.h.b16 %v697
    %v928 = vunpack.c.l.b16 %v698
    %v929 = vunpack.c.h.b16 %v698
    %v930 = vunpack.c.l.b16 %v699
    %v931 = vunpack.c.h.b16 %v699
    %v932 = vunpack.c.l.b16 %v700
    %v933 = vunpack.c.h.b16 %v700
    %v934 = vunpack.c.l.b16 %v701
    %v935 = vunpack.c.h.b16 %v701
    %v936 = vunpack.c.l.b16 %v702
    %v937 = vunpack.c.h.b16 %v702
    %v938 = vunpack.c.l.b16 %v703
    %v939 = vunpack.c.h.b16 %v703
    %v940 = vunpack.c.l.b16 %v704
    %v941 = vunpack.c.h.b16 %v704
    %v942 = vunpack.c.l.b16 %v705
    %v943 = vunpack.c.h.b16 %v705
    %v944 = vunpack.c.l.b16 %v706
    %v945 = vunpack.c.h.b16 %v706
    %v946 = vunpack.c.l.b16 %v707
    %v947 = vunpack.c.h.b16 %v707
    %v948 = vunpack.c.l.b16 %v708
    %v949 = vunpack.c.h.b16 %v708
    %v950 = vunpack.c.l.b16 %v709
    %v951 = vunpack.c.h.b16 %v709
    %v952 = vunpack.c.l.b16 %v710
    %v953 = vunpack.c.h.b16 %v710
    %v954 = vunpack.c.l.b16 %v711
    %v955 = vunpack.c.h.b16 %v711
    %v956 = vunpack.c.l.b16 %v712
    %v957 = vunpack.c.h.b16 %v712
    %v958 = vunpack.c.l.b16 %v713
    %v959 = vunpack.c.h.b16 %v713
    %v960 = vunpack.c.l.b16 %v714
    %v961 = vunpack.c.h.b16 %v714
    %v962 = vunpack.c.l.b16 %v715
    %v963 = vunpack.c.h.b16 %v715
    %v964 = vunpack.c.l.b16 %v716
    %v965 = vunpack.c.h.b16 %v716
    %v966 = vunpack.c.l.b16 %v717
    %v967 = vunpack.c.h.b16 %v717
    %v968 = vunpack.c.l.b16 %v718
    %v969 = vunpack.c.h.b16 %v718
    %v970 = vunpack.c.l.b16 %v719
    %v971 = vunpack.c.h.b16 %v719
    %v972 = vunpack.c.l.b16 %v720
    %v973 = vunpack.c.h.b16 %v720
    %v974 = vunpack.c.l.b16 %v721
    %v975 = vunpack.c.h.b16 %v721
    %v976 = vunpack.c.l.b16 %v722
    %v977 = vunpack.c.h.b16 %v722
    %v978 = vunpack.c.l.b16 %v723
    %v979 = vunpack.c.h.b16 %v723
    %v980 = vunpack.c.l.b16 %v724
    %v981 = vunpack.c.h.b16 %v724
    %v982 = vunpack.c.l.b16 %v725
    %v983 = vunpack.c.h.b16 %v725
    %v984 = vunpack.c.l.b16 %v726
    %v985 = vunpack.c.h.b16 %v726
    %v986 = vunpack.c.l.b16 %v727
    %v987 = vunpack.c.h.b16 %v727
    %v988 = vunpack.c.l.b16 %v728
    %v989 = vunpack.c.h.b16 %v728
    %v990 = vunpack.c.l.b16 %v729
    %v991 = vunpack.c.h.b16 %v729
    %v992 = vunpack.c.l.b16 %v730
    %v993 = vunpack.c.h.b16 %v730
    %v994 = vunpack.c.l.b16 %v731
    %v995 = vunpack.c.h.b16 %v731
    %v996 = vunpack.c.l.b16 %v732
    %v997 = vunpack.c.h.b16 %v732
    %v998 = vunpack.c.l.b16 %v733
    %v999 = vunpack.c.h.b16 %v733
    %v1000 = vunpack.c.l.b16 %v734
    %v1001 = vunpack.c.h.b16 %v734
    %v1002 = vunpack.c.l.b16 %v735
    %v1003 = vunpack.c.h.b16 %v735
    %v1004 = vunpack.c.l.b16 %v736
    %v1005 = vunpack.c.h.b16 %v736
    %v1006 = vunpack.c.l.b16 %v737
    %v1007 = vunpack.c.h.b16 %v737
    %v1008 = vunpack.c.l.b16 %v738
    %v1009 = vunpack.c.h.b16 %v738
    %v1010 = vunpack.c.l.b16 %v739
    %v1011 = vunpack.c.h.b16 %v739
    %v1012 = vunpack.c.l.b16 %v740
    %v1013 = vunpack.c.h.b16 %v740
    %v1014 = vunpack.c.l.b16 %v741
    %v1015 = vunpack.c.h.b16 %v741
    %v1016 = vunpack.c.l.b16 %v742
    %v1017 = vunpack.c.h.b16 %v742
    %v1018 = vunpack.c.l.b16 %v743
    %v1019 = vunpack.c.h.b16 %v743
    %v1020 = vunpack.c.l.b16 %v744
    %v1021 = vunpack.c.h.b16 %v744
    %v1022 = vunpack.c.l.b16 %v745
    %v1023 = vunpack.c.h.b16 %v745
    %v1024 = vunpack.c.l.b16 %v746
    %v1025 = vunpack.c.h.b16 %v746
    %v1026 = vunpack.c.l.b16 %v747
    %v1027 = vunpack.c.h.b16 %v747
    %v1028 = vunpack.c.l.b16 %v748
    %v1029 = vunpack.c.h.b16 %v748
    %v1030 = vunpack.c.l.b16 %v749
    %v1031 = vunpack.c.h.b16 %v749
    %v1032 = vunpack.c.l.b16 %v750
    %v1033 = vunpack.c.h.b16 %v750
    %v1034 = vunpack.c.l.b16 %v751
    %v1035 = vunpack.c.h.b16 %v751
    %v1036 = vunpack.c.l.b16 %v752
    %v1037 = vunpack.c.h.b16 %v752
    %v1038 = vunpack.c.l.b16 %v753
    %v1039 = vunpack.c.h.b16 %v753
    %v1040 = vunpack.c.l.b16 %v754
    %v1041 = vunpack.c.h.b16 %v754
    %v1042 = vunpack.c.l.b16 %v755
    %v1043 = vunpack.c.h.b16 %v755
    %v1044 = vunpack.c.l.b16 %v756
    %v1045 = vunpack.c.h.b16 %v756
    %v1046 = vunpack.c.l.b16 %v757
    %v1047 = vunpack.c.h.b16 %v757
    %v1048 = vunpack.c.l.b16 %v758
    %v1049 = vunpack.c.h.b16 %v758
    %v1050 = vunpack.c.l.b16 %v759
    %v1051 = vunpack.c.h.b16 %v759
    %v1052 = vunpack.c.l.b16 %v760
    %v1053 = vunpack.c.h.b16 %v760
    %v1054 = vunpack.c.l.b16 %v761
    %v1055 = vunpack.c.h.b16 %v761
    %v1056 = vunpack.c.l.b16 %v762
    %v1057 = vunpack.c.h.b16 %v762
    %v1058 = vunpack.c.l.b16 %v763
    %v1059 = vunpack.c.h.b16 %v763
    %v1060 = vunpack.c.l.b16 %v764
    %v1061 = vunpack.c.h.b16 %v764
    %v1062 = vunpack.c.l.b16 %v765
    %v1063 = vunpack.c.h.b16 %v765
    %v1064 = vunpack.c.l.b16 %v766
    %v1065 = vunpack.c.h.b16 %v766
    %v1066 = vunpack.c.l.b16 %v767
    %v1067 = vunpack.c.h.b16 %v767
    %v1068 = vunpack.c.l.b16 %v768
    %v1069 = vunpack.c.h.b16 %v768
    %v1070 = vunpack.c.l.b16 %v769
    %v1071 = vunpack.c.h.b16 %v769
    %v1072 = vunpack.c.l.b16 %v770
    %v1073 = vunpack.c.h.b16 %v770
    %v1074 = vunpack.c.l.b16 %v771
    %v1075 = vunpack.c.h.b16 %v771
    %v1076 = vunpack.c.l.b16 %v772
    %v1077 = vunpack.c.h.b16 %v772
    %v1078 = vunpack.c.l.b16 %v773
    %v1079 = vunpack.c.h.b16 %v773
    %v1080 = vunpack.c.l.b16 %v774
    %v1081 = vunpack.c.h.b16 %v774
    %v1082 = vunpack.c.l.b16 %v775
    %v1083 = vunpack.c.h.b16 %v775
    %v1084 = vunpack.c.l.b16 %v776
    %v1085 = vunpack.c.h.b16 %v776
    %v1086 = vunpack.c.l.b16 %v777
    %v1087 = vunpack.c.h.b16 %v777
    %v1088 = vunpack.c.l.b16 %v778
    %v1089 = vunpack.c.h.b16 %v778
    %v1090 = vunpack.c.l.b16 %v779
    %v1091 = vunpack.c.h.b16 %v779
    %v1092 = vunpack.c.l.b16 %v780
    %v1093 = vunpack.c.h.b16 %v780
    %v1094 = vunpack.c.l.b16 %v781
    %v1095 = vunpack.c.h.b16 %v781
    %v1096 = vunpack.c.l.b16 %v782
    %v1097 = vunpack.c.h.b16 %v782
    %v1098 = vunpack.c.l.b16 %v783
    %v1099 = vunpack.c.h.b16 %v783
    %v1100 = vunpack.c.l.b16 %v784
    %v1101 = vunpack.c.h.b16 %v784
    %v1102 = vunpack.c.l.b16 %v785
    %v1103 = vunpack.c.h.b16 %v785
    %v1104 = vunpack.c.l.b16 %v786
    %v1105 = vunpack.c.h.b16 %v786
    %v1106 = vunpack.c.l.b16 %v787
    %v1107 = vunpack.c.h.b16 %v787
    %v1108 = vpack.c.b16 %v922, %v916
    %v1109 = vpack.c.b16 %v923, %v917
    %v1110 = vpack.c.b16 %v924, %v918
    %v1111 = vpack.c.b16 %v925, %v919
    %v1112 = vpack.c.b16 %v926, %v920
    %v1113 = vpack.c.b16 %v927, %v921
    %v1114 = vpack.c.b16 %v934, %v928
    %v1115 = vpack.c.b16 %v935, %v929
    %v1116 = vpack.c.b16 %v936, %v930
    %v1117 = vpack.c.b16 %v937, %v931
    %v1118 = vpack.c.b16 %v938, %v932
    %v1119 = vpack.c.b16 %v939, %v933
    %v1120 = vpack.c.b16 %v946, %v940
    %v1121 = vpack.c.b16 %v947, %v941
    %v1122 = vpack.c.b16 %v948, %v942
    %v1123 = vpack.c.b16 %v949, %v943
    %v1124 = vpack.c.b16 %v950, %v944
    %v1125 = vpack.c.b16 %v951, %v945
    %v1126 = vpack.c.b16 %v958, %v952
    %v1127 = vpack.c.b16 %v959, %v953
    %v1128 = vpack.c.b16 %v960, %v954
    %v1129 = vpack.c.b16 %v961, %v955
    %v1130 = vpack.c.b16 %v962, %v956
    %v1131 = vpack.c.b16 %v963, %v957
    %v1132 = vpack.c.b16 %v970, %v964
    %v1133 = vpack.c.b16 %v971, %v965
    %v1134 = vpack.c.b16 %v972, %v966
    %v1135 = vpack.c.b16 %v973, %v967
    %v1136 = vpack.c.b16 %v974, %v968
    %v1137 = vpack.c.b16 %v975, %v969
    %v1138 = vpack.c.b16 %v982, %v976
    %v1139 = vpack.c.b16 %v983, %v977
    %v1140 = vpack.c.b16 %v984, %v978
    %v1141 = vpack.c.b16 %v985, %v979
    %v1142 = vpack.c.b16 %v986, %v980
    %v1143 = vpack.c.b16 %v987, %v981
    %v1144 = vpack.c.b16 %v994, %v988
    %v1145 = vpack.c.b16 %v995, %v989
    %v1146 = vpack.c.b16 %v996, %v990
    %v1147 = vpack.c.b16 %v997, %v991
    %v1148 = vpack.c.b16 %v998, %v992
    %v1149 = vpack.c.b16 %v999, %v993
    %v1150 = vpack.c.b16 %v1006, %v1000
    %v1151 = vpack.c.b16 %v1007, %v1001
    %v1152 = vpack.c.b16 %v1008, %v1002
    %v1153 = vpack.c.b16 %v1009, %v1003
    %v1154 = vpack.c.b16 %v1010, %v1004
    %v1155 = vpack.c.b16 %v1011, %v1005
    %v1156 = vpack.c.b16 %v1018, %v1012
    %v1157 = vpack.c.b16 %v1019, %v1013
    %v1158 = vpack.c.b16 %v1020, %v1014
    %v1159 = vpack.c.b16 %v1021, %v1015
    %v1160 = vpack.c.b16 %v1022, %v1016
    %v1161 = vpack.c.b16 %v1023, %v1017
    %v1162 = vpack.c.b16 %v1030, %v1024
    %v1163 = vpack.c.b16 %v1031, %v1025
    %v1164 = vpack.c.b16 %v1032, %v1026
    %v1165 = vpack.c.b16 %v1033, %v1027
    %v1166 = vpack.c.b16 %v1034, %v1028
    %v1167 = vpack.c.b16 %v1035, %v1029
    %v1168 = vpack.c.b16 %v1042, %v1036
    %v1169 = vpack.c.b16 %v1043, %v1037
    %v1170 = vpack.c.b16 %v1044, %v1038
    %v1171 = vpack.c.b16 %v1045, %v1039
    %v1172 = vpack.c.b16 %v1046, %v1040
    %v1173 = vpack.c.b16 %v1047, %v1041
    %v1174 = vpack.c.b16 %v1054, %v1048
    %v1175 = vpack.c.b16 %v1055, %v1049
    %v1176 = vpack.c.b16 %v1056, %v1050
    %v1177 = vpack.c.b16 %v1057, %v1051
    %v1178 = vpack.c.b16 %v1058, %v1052
    %v1179 = vpack.c.b16 %v1059, %v1053
    %v1180 = vpack.c.b16 %v1066, %v1060
    %v1181 = vpack.c.b16 %v1067, %v1061
    %v1182 = vpack.c.b16 %v1068, %v1062
    %v1183 = vpack.c.b16 %v1069, %v1063
    %v1184 = vpack.c.b16 %v1070, %v1064
    %v1185 = vpack.c.b16 %v1071, %v1065
    %v1186 = vpack.c.b16 %v1078, %v1072
    %v1187 = vpack.c.b16 %v1079, %v1073
    %v1188 = vpack.c.b16 %v1080, %v1074
    %v1189 = vpack.c.b16 %v1081, %v1075
    %v1190 = vpack.c.b16 %v1082, %v1076
    %v1191 = vpack.c.b16 %v1083, %v1077
    %v1192 = vpack.c.b16 %v1090, %v1084
    %v1193 = vpack.c.b16 %v1091, %v1085
    %v1194 = vpack.c.b16 %v1092, %v1086
    %v1195 = vpack.c.b16 %v1093, %v1087
    %v1196 = vpack.c.b16 %v1094, %v1088
    %v1197 = vpack.c.b16 %v1095, %v1089
    %v1198 = vpack.c.b16 %v1102, %v1096
    %v1199 = vpack.c.b16 %v1103, %v1097
    %v1200 = vpack.c.b16 %v1104, %v1098
    %v1201 = vpack.c.b16 %v1105, %v1099
    %v1202 = vpack.c.b16 %v1106, %v1100
    %v1203 = vpack.c.b16 %v1107, %v1101
    %1300 = vmatprep.subr.bf16.mxu0 %v1109
    %1301 = vmatpush1.bf16.msra.mxu0 %v1108
    %1302 = vmatprep.subr.bf16.mxu0 %v1115
    %1303 = vmatpush1.bf16.msra.mxu0 %v1114
    %1304 = vmatprep.subr.bf16.mxu0 %v1121
    %1305 = vmatpush1.bf16.msra.mxu0 %v1120
    %1306 = vmatprep.subr.bf16.mxu0 %v1127
    %1307 = vmatpush1.bf16.msra.mxu0 %v1126
    %1308 = vmatprep.subr.bf16.mxu0 %v1133
    %1309 = vmatpush1.bf16.msra.mxu0 %v1132
    %1310 = vmatprep.subr.bf16.mxu0 %v1139
    %1311 = vmatpush1.bf16.msra.mxu0 %v1138
    %1312 = vmatprep.subr.bf16.mxu0 %v1145
    %1313 = vmatpush1.bf16.msra.mxu0 %v1144
    %1314 = vmatprep.subr.bf16.mxu0 %v1151
    %1315 = vmatpush1.bf16.msra.mxu0 %v1150
    %1316 = vmatprep.subr.bf16.mxu0 %v1157
    %1317 = vmatpush1.bf16.msra.mxu0 %v1156
    %1318 = vmatprep.subr.bf16.mxu0 %v1163
    %1319 = vmatpush1.bf16.msra.mxu0 %v1162
    %1320 = vmatprep.subr.bf16.mxu0 %v1169
    %1321 = vmatpush1.bf16.msra.mxu0 %v1168
    %1322 = vmatprep.subr.bf16.mxu0 %v1175
    %1323 = vmatpush1.bf16.msra.mxu0 %v1174
    %1324 = vmatprep.subr.bf16.mxu0 %v1181
    %1325 = vmatpush1.bf16.msra.mxu0 %v1180
    %1326 = vmatprep.subr.bf16.mxu0 %v1187
    %1327 = vmatpush1.bf16.msra.mxu0 %v1186
    %1328 = vmatprep.subr.bf16.mxu0 %v1193
    %1329 = vmatpush1.bf16.msra.mxu0 %v1192
    %1330 = vmatprep.subr.bf16.mxu0 %v1199
    %1331 = vmatpush1.bf16.msra.mxu0 %v1198
    %1332 = vmatprep.mubr.bf16.mxu0 %v691
    %1333 = vmatmul.mubr.bf16.gmra.mrb[0].mxu0 %v690
    %v1334 = vpop.f32.mrb[0].mxu0
    %v1335 = vadd.f32 %v793, %v1334
    %v1336 = vpop.f32.mrb[0].mxu0
    %v1337 = vadd.f32 %v797, %v1336
    %v1338 = vpop.f32.mrb[0].mxu0
    %v1339 = vpop.f32.mrb[0].mxu0
    %1340 = vdwg.mxu0
    %1341 = vmatprep.subr.bf16.mxu0 %v1111
    %1342 = vmatpush1.bf16.msra.mxu0 %v1110
    %1343 = vmatprep.subr.bf16.mxu0 %v1117
    %1344 = vmatpush1.bf16.msra.mxu0 %v1116
    %1345 = vmatprep.subr.bf16.mxu0 %v1123
    %1346 = vmatpush1.bf16.msra.mxu0 %v1122
    %1347 = vmatprep.subr.bf16.mxu0 %v1129
    %1348 = vmatpush1.bf16.msra.mxu0 %v1128
    %1349 = vmatprep.subr.bf16.mxu0 %v1135
    %1350 = vmatpush1.bf16.msra.mxu0 %v1134
    %1351 = vmatprep.subr.bf16.mxu0 %v1141
    %1352 = vmatpush1.bf16.msra.mxu0 %v1140
    %1353 = vmatprep.subr.bf16.mxu0 %v1147
    %1354 = vmatpush1.bf16.msra.mxu0 %v1146
    %1355 = vmatprep.subr.bf16.mxu0 %v1153
    %1356 = vmatpush1.bf16.msra.mxu0 %v1152
    %1357 = vmatprep.subr.bf16.mxu0 %v1159
    %1358 = vmatpush1.bf16.msra.mxu0 %v1158
    %1359 = vmatprep.subr.bf16.mxu0 %v1165
    %1360 = vmatpush1.bf16.msra.mxu0 %v1164
    %1361 = vmatprep.subr.bf16.mxu0 %v1171
    %1362 = vmatpush1.bf16.msra.mxu0 %v1170
    %1363 = vmatprep.subr.bf16.mxu0 %v1177
    %1364 = vmatpush1.bf16.msra.mxu0 %v1176
    %1365 = vmatprep.subr.bf16.mxu0 %v1183
    %1366 = vmatpush1.bf16.msra.mxu0 %v1182
    %1367 = vmatprep.subr.bf16.mxu0 %v1189
    %1368 = vmatpush1.bf16.msra.mxu0 %v1188
    %1369 = vmatprep.subr.bf16.mxu0 %v1195
    %1370 = vmatpush1.bf16.msra.mxu0 %v1194
    %1371 = vmatprep.subr.bf16.mxu0 %v1201
    %1372 = vmatpush1.bf16.msra.mxu0 %v1200
    %1373 = vmatprep.mubr.bf16.mxu0 %v691
    %1374 = vmatmul.mubr.bf16.gmra.mrb[0].mxu0 %v690
    %v1375 = vpop.f32.mrb[0].mxu0
    %v1376 = vadd.f32 %v801, %v1375
    %v1377 = vpop.f32.mrb[0].mxu0
    %v1378 = vadd.f32 %v805, %v1377
    %v1379 = vpop.f32.mrb[0].mxu0
    %v1380 = vpop.f32.mrb[0].mxu0
    %1381 = vdwg.mxu0
    %1382 = vmatprep.subr.bf16.mxu0 %v1113
    %1383 = vmatpush1.bf16.msra.mxu0 %v1112
    %1384 = vmatprep.subr.bf16.mxu0 %v1119
    %1385 = vmatpush1.bf16.msra.mxu0 %v1118
    %1386 = vmatprep.subr.bf16.mxu0 %v1125
    %1387 = vmatpush1.bf16.msra.mxu0 %v1124
    %1388 = vmatprep.subr.bf16.mxu0 %v1131
    %1389 = vmatpush1.bf16.msra.mxu0 %v1130
    %1390 = vmatprep.subr.bf16.mxu0 %v1137
    %1391 = vmatpush1.bf16.msra.mxu0 %v1136
    %1392 = vmatprep.subr.bf16.mxu0 %v1143
    %1393 = vmatpush1.bf16.msra.mxu0 %v1142
    %1394 = vmatprep.subr.bf16.mxu0 %v1149
    %1395 = vmatpush1.bf16.msra.mxu0 %v1148
    %1396 = vmatprep.subr.bf16.mxu0 %v1155
    %1397 = vmatpush1.bf16.msra.mxu0 %v1154
    %1398 = vmatprep.subr.bf16.mxu0 %v1161
    %1399 = vmatpush1.bf16.msra.mxu0 %v1160
    %1400 = vmatprep.subr.bf16.mxu0 %v1167
    %1401 = vmatpush1.bf16.msra.mxu0 %v1166
    %1402 = vmatprep.subr.bf16.mxu0 %v1173
    %1403 = vmatpush1.bf16.msra.mxu0 %v1172
    %1404 = vmatprep.subr.bf16.mxu0 %v1179
    %1405 = vmatpush1.bf16.msra.mxu0 %v1178
    %1406 = vmatprep.subr.bf16.mxu0 %v1185
    %1407 = vmatpush1.bf16.msra.mxu0 %v1184
    %1408 = vmatprep.subr.bf16.mxu0 %v1191
    %1409 = vmatpush1.bf16.msra.mxu0 %v1190
    %1410 = vmatprep.subr.bf16.mxu0 %v1197
    %1411 = vmatpush1.bf16.msra.mxu0 %v1196
    %1412 = vmatprep.subr.bf16.mxu0 %v1203
    %1413 = vmatpush1.bf16.msra.mxu0 %v1202
    %1414 = vmatprep.mubr.bf16.mxu0 %v691
    %1415 = vmatmul.mubr.bf16.gmra.mrb[0].mxu0 %v690
    %v1416 = vpop.f32.mrb[0].mxu0
    %v1417 = vadd.f32 %v809, %v1416
    %v1418 = vpop.f32.mrb[0].mxu0
    %v1419 = vadd.f32 %v813, %v1418
    %v1420 = vpop.f32.mrb[0].mxu0
    %v1421 = vpop.f32.mrb[0].mxu0
    %1422 = vdwg.mxu0
    %v1423 = vlaneseq
    %v1424 = vshrl.u32 %v1423, 7
    %v1425 = vadd.s32 %v1424, 8
    %v1426 = vadd.s32 %v1424, 16
    %v1427 = vadd.s32 %v1424, 24
    %v1428 = vadd.s32 %v1424, 32
    %v1429 = vadd.s32 %v1424, 40
    %v1430 = vadd.s32 %v1424, 48
    %v1431 = vadd.s32 %v1424, 56
    %v1432 = vadd.s32 %v1424, 64
    %v1433 = vadd.s32 %v1424, 72
    %v1434 = vadd.s32 %v1424, 80
    %v1435 = vadd.s32 %v1424, 88
    %v1436 = vadd.s32 %v1424, 96
    %v1437 = vadd.s32 %v1424, 104
    %v1438 = vadd.s32 %v1424, 112
    %v1439 = vadd.s32 %v1424, 120
    %v1440 = vadd.s32 %v1424, 128
    %v1441 = vadd.s32 %v1424, 136
    %v1442 = vadd.s32 %v1424, 144
    %v1443 = vadd.s32 %v1424, 152
    %v1444 = vadd.s32 %v1424, 160
    %v1445 = vadd.s32 %v1424, 168
    %v1446 = vadd.s32 %v1424, 176
    %v1447 = vadd.s32 %v1424, 184
    %v1448 = vadd.s32 %v1424, 192
    %v1449 = vadd.s32 %v1424, 200
    %v1450 = vadd.s32 %v1424, 208
    %v1451 = vadd.s32 %v1424, 216
    %v1452 = vadd.s32 %v1424, 224
    %v1453 = vadd.s32 %v1424, 232
    %v1454 = vadd.s32 %v1424, 240
    %v1455 = vadd.s32 %v1424, 248
    %v1456 = vadd.s32 %v1424, 256
    %v1457 = vadd.s32 %v1424, 264
    %v1458 = vadd.s32 %v1424, 272
    %v1459 = vadd.s32 %v1424, 280
    %v1460 = vadd.s32 %v1424, 288
    %v1461 = vadd.s32 %v1424, 296
    %v1462 = vadd.s32 %v1424, 304
    %v1463 = vadd.s32 %v1424, 312
    %v1464 = vadd.s32 %v1424, 320
    %v1465 = vadd.s32 %v1424, 328
    %v1466 = vadd.s32 %v1424, 336
    %v1467 = vadd.s32 %v1424, 344
    %v1468 = vadd.s32 %v1424, 352
    %v1469 = vadd.s32 %v1424, 360
    %v1470 = vadd.s32 %v1424, 368
    %v1471 = vadd.s32 %v1424, 376
    %v1472 = vadd.s32 %v1424, 384
    %v1473 = vadd.s32 %v1424, 392
    %v1474 = vadd.s32 %v1424, 400
    %v1475 = vadd.s32 %v1424, 408
    %v1476 = vadd.s32 %v1424, 416
    %v1477 = vadd.s32 %v1424, 424
    %v1478 = vadd.s32 %v1424, 432
    %v1479 = vadd.s32 %v1424, 440
    %v1480 = vadd.s32 %v1424, 448
    %v1481 = vadd.s32 %v1424, 456
    %v1482 = vadd.s32 %v1424, 464
    %v1483 = vadd.s32 %v1424, 472
    %v1484 = vadd.s32 %v1424, 480
    %v1485 = vadd.s32 %v1424, 488
    %v1486 = vadd.s32 %v1424, 496
    %v1487 = vadd.s32 %v1424, 504
    %v1488 = vadd.s32 %v1424, 512
    %v1489 = vadd.s32 %v1424, 520
    %v1490 = vadd.s32 %v1424, 528
    %v1491 = vadd.s32 %v1424, 536
    %v1492 = vadd.s32 %v1424, 544
    %v1493 = vadd.s32 %v1424, 552
    %v1494 = vadd.s32 %v1424, 560
    %v1495 = vadd.s32 %v1424, 568
    %v1496 = vadd.s32 %v1424, 576
    %v1497 = vadd.s32 %v1424, 584
    %v1498 = vadd.s32 %v1424, 592
    %v1499 = vadd.s32 %v1424, 600
    %v1500 = vadd.s32 %v1424, 608
    %v1501 = vadd.s32 %v1424, 616
    %v1502 = vadd.s32 %v1424, 624
    %v1503 = vadd.s32 %v1424, 632
    %v1504 = vadd.s32 %v1424, 640
    %v1505 = vadd.s32 %v1424, 648
    %v1506 = vadd.s32 %v1424, 656
    %v1507 = vadd.s32 %v1424, 664
    %v1508 = vadd.s32 %v1424, 672
    %v1509 = vadd.s32 %v1424, 680
    %v1510 = vadd.s32 %v1424, 688
    %v1511 = vadd.s32 %v1424, 696
    %v1512 = vadd.s32 %v1424, 704
    %v1513 = vadd.s32 %v1424, 712
    %v1514 = vadd.s32 %v1424, 720
    %v1515 = vadd.s32 %v1424, 728
    %v1516 = vadd.s32 %v1424, 736
    %v1517 = vadd.s32 %v1424, 744
    %v1518 = vadd.s32 %v1424, 752
    %v1519 = vadd.s32 %v1424, 760
    %v1520 = vlaneseq
    %v1521 = vand.u32 %v1520, 127
    %v1522 = vmul.u32 %v1521, 51
    %vm1523 = vcmp.ge.s32.totalorder %v1424, %v1522
    %vm1524 = vcmp.ge.s32.totalorder %v1425, %v1522
    %vm1525 = vcmp.ge.s32.totalorder %v1426, %v1522
    %vm1526 = vcmp.ge.s32.totalorder %v1427, %v1522
    %vm1527 = vcmp.ge.s32.totalorder %v1428, %v1522
    %vm1528 = vcmp.ge.s32.totalorder %v1429, %v1522
    %vm1529 = vcmp.ge.s32.totalorder %v1430, %v1522
    %vm1530 = vcmp.ge.s32.totalorder %v1431, %v1522
    %vm1531 = vcmp.ge.s32.totalorder %v1432, %v1522
    %vm1532 = vcmp.ge.s32.totalorder %v1433, %v1522
    %vm1533 = vcmp.ge.s32.totalorder %v1434, %v1522
    %vm1534 = vcmp.ge.s32.totalorder %v1435, %v1522
    %vm1535 = vcmp.ge.s32.totalorder %v1436, %v1522
    %vm1536 = vcmp.ge.s32.totalorder %v1437, %v1522
    %vm1537 = vcmp.ge.s32.totalorder %v1438, %v1522
    %vm1538 = vcmp.ge.s32.totalorder %v1439, %v1522
    %vm1539 = vcmp.ge.s32.totalorder %v1440, %v1522
    %vm1540 = vcmp.ge.s32.totalorder %v1441, %v1522
    %vm1541 = vcmp.ge.s32.totalorder %v1442, %v1522
    %vm1542 = vcmp.ge.s32.totalorder %v1443, %v1522
    %vm1543 = vcmp.ge.s32.totalorder %v1444, %v1522
    %vm1544 = vcmp.ge.s32.totalorder %v1445, %v1522
    %vm1545 = vcmp.ge.s32.totalorder %v1446, %v1522
    %vm1546 = vcmp.ge.s32.totalorder %v1447, %v1522
    %vm1547 = vcmp.ge.s32.totalorder %v1448, %v1522
    %vm1548 = vcmp.ge.s32.totalorder %v1449, %v1522
    %vm1549 = vcmp.ge.s32.totalorder %v1450, %v1522
    %vm1550 = vcmp.ge.s32.totalorder %v1451, %v1522
    %vm1551 = vcmp.ge.s32.totalorder %v1452, %v1522
    %vm1552 = vcmp.ge.s32.totalorder %v1453, %v1522
    %vm1553 = vcmp.ge.s32.totalorder %v1454, %v1522
    %vm1554 = vcmp.ge.s32.totalorder %v1455, %v1522
    %vm1555 = vcmp.ge.s32.totalorder %v1456, %v1522
    %vm1556 = vcmp.ge.s32.totalorder %v1457, %v1522
    %vm1557 = vcmp.ge.s32.totalorder %v1458, %v1522
    %vm1558 = vcmp.ge.s32.totalorder %v1459, %v1522
    %vm1559 = vcmp.ge.s32.totalorder %v1460, %v1522
    %vm1560 = vcmp.ge.s32.totalorder %v1461, %v1522
    %vm1561 = vcmp.ge.s32.totalorder %v1462, %v1522
    %vm1562 = vcmp.ge.s32.totalorder %v1463, %v1522
    %vm1563 = vcmp.ge.s32.totalorder %v1464, %v1522
    %vm1564 = vcmp.ge.s32.totalorder %v1465, %v1522
    %vm1565 = vcmp.ge.s32.totalorder %v1466, %v1522
    %vm1566 = vcmp.ge.s32.totalorder %v1467, %v1522
    %vm1567 = vcmp.ge.s32.totalorder %v1468, %v1522
    %vm1568 = vcmp.ge.s32.totalorder %v1469, %v1522
    %vm1569 = vcmp.ge.s32.totalorder %v1470, %v1522
    %vm1570 = vcmp.ge.s32.totalorder %v1471, %v1522
    %vm1571 = vcmp.ge.s32.totalorder %v1472, %v1522
    %vm1572 = vcmp.ge.s32.totalorder %v1473, %v1522
    %vm1573 = vcmp.ge.s32.totalorder %v1474, %v1522
    %vm1574 = vcmp.ge.s32.totalorder %v1475, %v1522
    %vm1575 = vcmp.ge.s32.totalorder %v1476, %v1522
    %vm1576 = vcmp.ge.s32.totalorder %v1477, %v1522
    %vm1577 = vcmp.ge.s32.totalorder %v1478, %v1522
    %vm1578 = vcmp.ge.s32.totalorder %v1479, %v1522
    %vm1579 = vcmp.ge.s32.totalorder %v1480, %v1522
    %vm1580 = vcmp.ge.s32.totalorder %v1481, %v1522
    %vm1581 = vcmp.ge.s32.totalorder %v1482, %v1522
    %vm1582 = vcmp.ge.s32.totalorder %v1483, %v1522
    %vm1583 = vcmp.ge.s32.totalorder %v1484, %v1522
    %vm1584 = vcmp.ge.s32.totalorder %v1485, %v1522
    %vm1585 = vcmp.ge.s32.totalorder %v1486, %v1522
    %vm1586 = vcmp.ge.s32.totalorder %v1487, %v1522
    %vm1587 = vcmp.ge.s32.totalorder %v1488, %v1522
    %vm1588 = vcmp.ge.s32.totalorder %v1489, %v1522
    %vm1589 = vcmp.ge.s32.totalorder %v1490, %v1522
    %vm1590 = vcmp.ge.s32.totalorder %v1491, %v1522
    %vm1591 = vcmp.ge.s32.totalorder %v1492, %v1522
    %vm1592 = vcmp.ge.s32.totalorder %v1493, %v1522
    %vm1593 = vcmp.ge.s32.totalorder %v1494, %v1522
    %vm1594 = vcmp.ge.s32.totalorder %v1495, %v1522
    %vm1595 = vcmp.ge.s32.totalorder %v1496, %v1522
    %vm1596 = vcmp.ge.s32.totalorder %v1497, %v1522
    %vm1597 = vcmp.ge.s32.totalorder %v1498, %v1522
    %vm1598 = vcmp.ge.s32.totalorder %v1499, %v1522
    %vm1599 = vcmp.ge.s32.totalorder %v1500, %v1522
    %vm1600 = vcmp.ge.s32.totalorder %v1501, %v1522
    %vm1601 = vcmp.ge.s32.totalorder %v1502, %v1522
    %vm1602 = vcmp.ge.s32.totalorder %v1503, %v1522
    %vm1603 = vcmp.ge.s32.totalorder %v1504, %v1522
    %vm1604 = vcmp.ge.s32.totalorder %v1505, %v1522
    %vm1605 = vcmp.ge.s32.totalorder %v1506, %v1522
    %vm1606 = vcmp.ge.s32.totalorder %v1507, %v1522
    %vm1607 = vcmp.ge.s32.totalorder %v1508, %v1522
    %vm1608 = vcmp.ge.s32.totalorder %v1509, %v1522
    %vm1609 = vcmp.ge.s32.totalorder %v1510, %v1522
    %vm1610 = vcmp.ge.s32.totalorder %v1511, %v1522
    %vm1611 = vcmp.ge.s32.totalorder %v1512, %v1522
    %vm1612 = vcmp.ge.s32.totalorder %v1513, %v1522
    %vm1613 = vcmp.ge.s32.totalorder %v1514, %v1522
    %vm1614 = vcmp.ge.s32.totalorder %v1515, %v1522
    %vm1615 = vcmp.ge.s32.totalorder %v1516, %v1522
    %vm1616 = vcmp.ge.s32.totalorder %v1517, %v1522
    %vm1617 = vcmp.ge.s32.totalorder %v1518, %v1522
    %vm1618 = vcmp.ge.s32.totalorder %v1519, %v1522
    %v1619 = vadd.s32 %v1522, 51
    %vm1620 = vcmp.lt.s32.totalorder %v1424, %v1619
    %vm1621 = vcmp.lt.s32.totalorder %v1425, %v1619
    %vm1622 = vcmp.lt.s32.totalorder %v1426, %v1619
    %vm1623 = vcmp.lt.s32.totalorder %v1427, %v1619
    %vm1624 = vcmp.lt.s32.totalorder %v1428, %v1619
    %vm1625 = vcmp.lt.s32.totalorder %v1429, %v1619
    %vm1626 = vcmp.lt.s32.totalorder %v1430, %v1619
    %vm1627 = vcmp.lt.s32.totalorder %v1431, %v1619
    %vm1628 = vcmp.lt.s32.totalorder %v1432, %v1619
    %vm1629 = vcmp.lt.s32.totalorder %v1433, %v1619
    %vm1630 = vcmp.lt.s32.totalorder %v1434, %v1619
    %vm1631 = vcmp.lt.s32.totalorder %v1435, %v1619
    %vm1632 = vcmp.lt.s32.totalorder %v1436, %v1619
    %vm1633 = vcmp.lt.s32.totalorder %v1437, %v1619
    %vm1634 = vcmp.lt.s32.totalorder %v1438, %v1619
    %vm1635 = vcmp.lt.s32.totalorder %v1439, %v1619
    %vm1636 = vcmp.lt.s32.totalorder %v1440, %v1619
    %vm1637 = vcmp.lt.s32.totalorder %v1441, %v1619
    %vm1638 = vcmp.lt.s32.totalorder %v1442, %v1619
    %vm1639 = vcmp.lt.s32.totalorder %v1443, %v1619
    %vm1640 = vcmp.lt.s32.totalorder %v1444, %v1619
    %vm1641 = vcmp.lt.s32.totalorder %v1445, %v1619
    %vm1642 = vcmp.lt.s32.totalorder %v1446, %v1619
    %vm1643 = vcmp.lt.s32.totalorder %v1447, %v1619
    %vm1644 = vcmp.lt.s32.totalorder %v1448, %v1619
    %vm1645 = vcmp.lt.s32.totalorder %v1449, %v1619
    %vm1646 = vcmp.lt.s32.totalorder %v1450, %v1619
    %vm1647 = vcmp.lt.s32.totalorder %v1451, %v1619
    %vm1648 = vcmp.lt.s32.totalorder %v1452, %v1619
    %vm1649 = vcmp.lt.s32.totalorder %v1453, %v1619
    %vm1650 = vcmp.lt.s32.totalorder %v1454, %v1619
    %vm1651 = vcmp.lt.s32.totalorder %v1455, %v1619
    %vm1652 = vcmp.lt.s32.totalorder %v1456, %v1619
    %vm1653 = vcmp.lt.s32.totalorder %v1457, %v1619
    %vm1654 = vcmp.lt.s32.totalorder %v1458, %v1619
    %vm1655 = vcmp.lt.s32.totalorder %v1459, %v1619
    %vm1656 = vcmp.lt.s32.totalorder %v1460, %v1619
    %vm1657 = vcmp.lt.s32.totalorder %v1461, %v1619
    %vm1658 = vcmp.lt.s32.totalorder %v1462, %v1619
    %vm1659 = vcmp.lt.s32.totalorder %v1463, %v1619
    %vm1660 = vcmp.lt.s32.totalorder %v1464, %v1619
    %vm1661 = vcmp.lt.s32.totalorder %v1465, %v1619
    %vm1662 = vcmp.lt.s32.totalorder %v1466, %v1619
    %vm1663 = vcmp.lt.s32.totalorder %v1467, %v1619
    %vm1664 = vcmp.lt.s32.totalorder %v1468, %v1619
    %vm1665 = vcmp.lt.s32.totalorder %v1469, %v1619
    %vm1666 = vcmp.lt.s32.totalorder %v1470, %v1619
    %vm1667 = vcmp.lt.s32.totalorder %v1471, %v1619
    %vm1668 = vcmp.lt.s32.totalorder %v1472, %v1619
    %vm1669 = vcmp.lt.s32.totalorder %v1473, %v1619
    %vm1670 = vcmp.lt.s32.totalorder %v1474, %v1619
    %vm1671 = vcmp.lt.s32.totalorder %v1475, %v1619
    %vm1672 = vcmp.lt.s32.totalorder %v1476, %v1619
    %vm1673 = vcmp.lt.s32.totalorder %v1477, %v1619
    %vm1674 = vcmp.lt.s32.totalorder %v1478, %v1619
    %vm1675 = vcmp.lt.s32.totalorder %v1479, %v1619
    %vm1676 = vcmp.lt.s32.totalorder %v1480, %v1619
    %vm1677 = vcmp.lt.s32.totalorder %v1481, %v1619
    %vm1678 = vcmp.lt.s32.totalorder %v1482, %v1619
    %vm1679 = vcmp.lt.s32.totalorder %v1483, %v1619
    %vm1680 = vcmp.lt.s32.totalorder %v1484, %v1619
    %vm1681 = vcmp.lt.s32.totalorder %v1485, %v1619
    %vm1682 = vcmp.lt.s32.totalorder %v1486, %v1619
    %vm1683 = vcmp.lt.s32.totalorder %v1487, %v1619
    %vm1684 = vcmp.lt.s32.totalorder %v1488, %v1619
    %vm1685 = vcmp.lt.s32.totalorder %v1489, %v1619
    %vm1686 = vcmp.lt.s32.totalorder %v1490, %v1619
    %vm1687 = vcmp.lt.s32.totalorder %v1491, %v1619
    %vm1688 = vcmp.lt.s32.totalorder %v1492, %v1619
    %vm1689 = vcmp.lt.s32.totalorder %v1493, %v1619
    %vm1690 = vcmp.lt.s32.totalorder %v1494, %v1619
    %vm1691 = vcmp.lt.s32.totalorder %v1495, %v1619
    %vm1692 = vcmp.lt.s32.totalorder %v1496, %v1619
    %vm1693 = vcmp.lt.s32.totalorder %v1497, %v1619
    %vm1694 = vcmp.lt.s32.totalorder %v1498, %v1619
    %vm1695 = vcmp.lt.s32.totalorder %v1499, %v1619
    %vm1696 = vcmp.lt.s32.totalorder %v1500, %v1619
    %vm1697 = vcmp.lt.s32.totalorder %v1501, %v1619
    %vm1698 = vcmp.lt.s32.totalorder %v1502, %v1619
    %vm1699 = vcmp.lt.s32.totalorder %v1503, %v1619
    %vm1700 = vcmp.lt.s32.totalorder %v1504, %v1619
    %vm1701 = vcmp.lt.s32.totalorder %v1505, %v1619
    %vm1702 = vcmp.lt.s32.totalorder %v1506, %v1619
    %vm1703 = vcmp.lt.s32.totalorder %v1507, %v1619
    %vm1704 = vcmp.lt.s32.totalorder %v1508, %v1619
    %vm1705 = vcmp.lt.s32.totalorder %v1509, %v1619
    %vm1706 = vcmp.lt.s32.totalorder %v1510, %v1619
    %vm1707 = vcmp.lt.s32.totalorder %v1511, %v1619
    %vm1708 = vcmp.lt.s32.totalorder %v1512, %v1619
    %vm1709 = vcmp.lt.s32.totalorder %v1513, %v1619
    %vm1710 = vcmp.lt.s32.totalorder %v1514, %v1619
    %vm1711 = vcmp.lt.s32.totalorder %v1515, %v1619
    %vm1712 = vcmp.lt.s32.totalorder %v1516, %v1619
    %vm1713 = vcmp.lt.s32.totalorder %v1517, %v1619
    %vm1714 = vcmp.lt.s32.totalorder %v1518, %v1619
    %vm1715 = vcmp.lt.s32.totalorder %v1519, %v1619
    %vm1716 = vmand %vm1523, %vm1620
    %vm1717 = vmand %vm1524, %vm1621
    %vm1718 = vmand %vm1525, %vm1622
    %vm1719 = vmand %vm1526, %vm1623
    %vm1720 = vmand %vm1527, %vm1624
    %vm1721 = vmand %vm1528, %vm1625
    %vm1722 = vmand %vm1529, %vm1626
    %vm1723 = vmand %vm1530, %vm1627
    %vm1724 = vmand %vm1531, %vm1628
    %vm1725 = vmand %vm1532, %vm1629
    %vm1726 = vmand %vm1533, %vm1630
    %vm1727 = vmand %vm1534, %vm1631
    %vm1728 = vmand %vm1535, %vm1632
    %vm1729 = vmand %vm1536, %vm1633
    %vm1730 = vmand %vm1537, %vm1634
    %vm1731 = vmand %vm1538, %vm1635
    %vm1732 = vmand %vm1539, %vm1636
    %vm1733 = vmand %vm1540, %vm1637
    %vm1734 = vmand %vm1541, %vm1638
    %vm1735 = vmand %vm1542, %vm1639
    %vm1736 = vmand %vm1543, %vm1640
    %vm1737 = vmand %vm1544, %vm1641
    %vm1738 = vmand %vm1545, %vm1642
    %vm1739 = vmand %vm1546, %vm1643
    %vm1740 = vmand %vm1547, %vm1644
    %vm1741 = vmand %vm1548, %vm1645
    %vm1742 = vmand %vm1549, %vm1646
    %vm1743 = vmand %vm1550, %vm1647
    %vm1744 = vmand %vm1551, %vm1648
    %vm1745 = vmand %vm1552, %vm1649
    %vm1746 = vmand %vm1553, %vm1650
    %vm1747 = vmand %vm1554, %vm1651
    %vm1748 = vmand %vm1555, %vm1652
    %vm1749 = vmand %vm1556, %vm1653
    %vm1750 = vmand %vm1557, %vm1654
    %vm1751 = vmand %vm1558, %vm1655
    %vm1752 = vmand %vm1559, %vm1656
    %vm1753 = vmand %vm1560, %vm1657
    %vm1754 = vmand %vm1561, %vm1658
    %vm1755 = vmand %vm1562, %vm1659
    %vm1756 = vmand %vm1563, %vm1660
    %vm1757 = vmand %vm1564, %vm1661
    %vm1758 = vmand %vm1565, %vm1662
    %vm1759 = vmand %vm1566, %vm1663
    %vm1760 = vmand %vm1567, %vm1664
    %vm1761 = vmand %vm1568, %vm1665
    %vm1762 = vmand %vm1569, %vm1666
    %vm1763 = vmand %vm1570, %vm1667
    %vm1764 = vmand %vm1571, %vm1668
    %vm1765 = vmand %vm1572, %vm1669
    %vm1766 = vmand %vm1573, %vm1670
    %vm1767 = vmand %vm1574, %vm1671
    %vm1768 = vmand %vm1575, %vm1672
    %vm1769 = vmand %vm1576, %vm1673
    %vm1770 = vmand %vm1577, %vm1674
    %vm1771 = vmand %vm1578, %vm1675
    %vm1772 = vmand %vm1579, %vm1676
    %vm1773 = vmand %vm1580, %vm1677
    %vm1774 = vmand %vm1581, %vm1678
    %vm1775 = vmand %vm1582, %vm1679
    %vm1776 = vmand %vm1583, %vm1680
    %vm1777 = vmand %vm1584, %vm1681
    %vm1778 = vmand %vm1585, %vm1682
    %vm1779 = vmand %vm1586, %vm1683
    %vm1780 = vmand %vm1587, %vm1684
    %vm1781 = vmand %vm1588, %vm1685
    %vm1782 = vmand %vm1589, %vm1686
    %vm1783 = vmand %vm1590, %vm1687
    %vm1784 = vmand %vm1591, %vm1688
    %vm1785 = vmand %vm1592, %vm1689
    %vm1786 = vmand %vm1593, %vm1690
    %vm1787 = vmand %vm1594, %vm1691
    %vm1788 = vmand %vm1595, %vm1692
    %vm1789 = vmand %vm1596, %vm1693
    %vm1790 = vmand %vm1597, %vm1694
    %vm1791 = vmand %vm1598, %vm1695
    %vm1792 = vmand %vm1599, %vm1696
    %vm1793 = vmand %vm1600, %vm1697
    %vm1794 = vmand %vm1601, %vm1698
    %vm1795 = vmand %vm1602, %vm1699
    %vm1796 = vmand %vm1603, %vm1700
    %vm1797 = vmand %vm1604, %vm1701
    %vm1798 = vmand %vm1605, %vm1702
    %vm1799 = vmand %vm1606, %vm1703
    %vm1800 = vmand %vm1607, %vm1704
    %vm1801 = vmand %vm1608, %vm1705
    %vm1802 = vmand %vm1609, %vm1706
    %vm1803 = vmand %vm1610, %vm1707
    %vm1804 = vmand %vm1611, %vm1708
    %vm1805 = vmand %vm1612, %vm1709
    %vm1806 = vmand %vm1613, %vm1710
    %vm1807 = vmand %vm1614, %vm1711
    %vm1808 = vmand %vm1615, %vm1712
    %vm1809 = vmand %vm1616, %vm1713
    %vm1810 = vmand %vm1617, %vm1714
    %vm1811 = vmand %vm1618, %vm1715
    %v1812 = vsel %vm1716, 1, 0
    %v1813 = vsel %vm1717, 1, 0
    %v1814 = vsel %vm1718, 1, 0
    %v1815 = vsel %vm1719, 1, 0
    %v1816 = vsel %vm1720, 1, 0
    %v1817 = vsel %vm1721, 1, 0
    %v1818 = vsel %vm1722, 1, 0
    %v1819 = vsel %vm1723, 1, 0
    %v1820 = vsel %vm1724, 1, 0
    %v1821 = vsel %vm1725, 1, 0
    %v1822 = vsel %vm1726, 1, 0
    %v1823 = vsel %vm1727, 1, 0
    %v1824 = vsel %vm1728, 1, 0
    %v1825 = vsel %vm1729, 1, 0
    %v1826 = vsel %vm1730, 1, 0
    %v1827 = vsel %vm1731, 1, 0
    %v1828 = vsel %vm1732, 1, 0
    %v1829 = vsel %vm1733, 1, 0
    %v1830 = vsel %vm1734, 1, 0
    %v1831 = vsel %vm1735, 1, 0
    %v1832 = vsel %vm1736, 1, 0
    %v1833 = vsel %vm1737, 1, 0
    %v1834 = vsel %vm1738, 1, 0
    %v1835 = vsel %vm1739, 1, 0
    %v1836 = vsel %vm1740, 1, 0
    %v1837 = vsel %vm1741, 1, 0
    %v1838 = vsel %vm1742, 1, 0
    %v1839 = vsel %vm1743, 1, 0
    %v1840 = vsel %vm1744, 1, 0
    %v1841 = vsel %vm1745, 1, 0
    %v1842 = vsel %vm1746, 1, 0
    %v1843 = vsel %vm1747, 1, 0
    %v1844 = vsel %vm1748, 1, 0
    %v1845 = vsel %vm1749, 1, 0
    %v1846 = vsel %vm1750, 1, 0
    %v1847 = vsel %vm1751, 1, 0
    %v1848 = vsel %vm1752, 1, 0
    %v1849 = vsel %vm1753, 1, 0
    %v1850 = vsel %vm1754, 1, 0
    %v1851 = vsel %vm1755, 1, 0
    %v1852 = vsel %vm1756, 1, 0
    %v1853 = vsel %vm1757, 1, 0
    %v1854 = vsel %vm1758, 1, 0
    %v1855 = vsel %vm1759, 1, 0
    %v1856 = vsel %vm1760, 1, 0
    %v1857 = vsel %vm1761, 1, 0
    %v1858 = vsel %vm1762, 1, 0
    %v1859 = vsel %vm1763, 1, 0
    %v1860 = vsel %vm1764, 1, 0
    %v1861 = vsel %vm1765, 1, 0
    %v1862 = vsel %vm1766, 1, 0
    %v1863 = vsel %vm1767, 1, 0
    %v1864 = vsel %vm1768, 1, 0
    %v1865 = vsel %vm1769, 1, 0
    %v1866 = vsel %vm1770, 1, 0
    %v1867 = vsel %vm1771, 1, 0
    %v1868 = vsel %vm1772, 1, 0
    %v1869 = vsel %vm1773, 1, 0
    %v1870 = vsel %vm1774, 1, 0
    %v1871 = vsel %vm1775, 1, 0
    %v1872 = vsel %vm1776, 1, 0
    %v1873 = vsel %vm1777, 1, 0
    %v1874 = vsel %vm1778, 1, 0
    %v1875 = vsel %vm1779, 1, 0
    %v1876 = vsel %vm1780, 1, 0
    %v1877 = vsel %vm1781, 1, 0
    %v1878 = vsel %vm1782, 1, 0
    %v1879 = vsel %vm1783, 1, 0
    %v1880 = vsel %vm1784, 1, 0
    %v1881 = vsel %vm1785, 1, 0
    %v1882 = vsel %vm1786, 1, 0
    %v1883 = vsel %vm1787, 1, 0
    %v1884 = vsel %vm1788, 1, 0
    %v1885 = vsel %vm1789, 1, 0
    %v1886 = vsel %vm1790, 1, 0
    %v1887 = vsel %vm1791, 1, 0
    %v1888 = vsel %vm1792, 1, 0
    %v1889 = vsel %vm1793, 1, 0
    %v1890 = vsel %vm1794, 1, 0
    %v1891 = vsel %vm1795, 1, 0
    %v1892 = vsel %vm1796, 1, 0
    %v1893 = vsel %vm1797, 1, 0
    %v1894 = vsel %vm1798, 1, 0
    %v1895 = vsel %vm1799, 1, 0
    %v1896 = vsel %vm1800, 1, 0
    %v1897 = vsel %vm1801, 1, 0
    %v1898 = vsel %vm1802, 1, 0
    %v1899 = vsel %vm1803, 1, 0
    %v1900 = vsel %vm1804, 1, 0
    %v1901 = vsel %vm1805, 1, 0
    %v1902 = vsel %vm1806, 1, 0
    %v1903 = vsel %vm1807, 1, 0
    %v1904 = vsel %vm1808, 1, 0
    %v1905 = vsel %vm1809, 1, 0
    %v1906 = vsel %vm1810, 1, 0
    %v1907 = vsel %vm1811, 1, 0
    %v1908 = vcvt.s32.f32 %v1812
    %v1909 = vcvt.s32.f32 %v1813
    %v1910 = vcvt.s32.f32 %v1814
    %v1911 = vcvt.s32.f32 %v1815
    %v1912 = vcvt.s32.f32 %v1816
    %v1913 = vcvt.s32.f32 %v1817
    %v1914 = vcvt.s32.f32 %v1818
    %v1915 = vcvt.s32.f32 %v1819
    %v1916 = vcvt.s32.f32 %v1820
    %v1917 = vcvt.s32.f32 %v1821
    %v1918 = vcvt.s32.f32 %v1822
    %v1919 = vcvt.s32.f32 %v1823
    %v1920 = vcvt.s32.f32 %v1824
    %v1921 = vcvt.s32.f32 %v1825
    %v1922 = vcvt.s32.f32 %v1826
    %v1923 = vcvt.s32.f32 %v1827
    %v1924 = vcvt.s32.f32 %v1828
    %v1925 = vcvt.s32.f32 %v1829
    %v1926 = vcvt.s32.f32 %v1830
    %v1927 = vcvt.s32.f32 %v1831
    %v1928 = vcvt.s32.f32 %v1832
    %v1929 = vcvt.s32.f32 %v1833
    %v1930 = vcvt.s32.f32 %v1834
    %v1931 = vcvt.s32.f32 %v1835
    %v1932 = vcvt.s32.f32 %v1836
    %v1933 = vcvt.s32.f32 %v1837
    %v1934 = vcvt.s32.f32 %v1838
    %v1935 = vcvt.s32.f32 %v1839
    %v1936 = vcvt.s32.f32 %v1840
    %v1937 = vcvt.s32.f32 %v1841
    %v1938 = vcvt.s32.f32 %v1842
    %v1939 = vcvt.s32.f32 %v1843
    %v1940 = vcvt.s32.f32 %v1844
    %v1941 = vcvt.s32.f32 %v1845
    %v1942 = vcvt.s32.f32 %v1846
    %v1943 = vcvt.s32.f32 %v1847
    %v1944 = vcvt.s32.f32 %v1848
    %v1945 = vcvt.s32.f32 %v1849
    %v1946 = vcvt.s32.f32 %v1850
    %v1947 = vcvt.s32.f32 %v1851
    %v1948 = vcvt.s32.f32 %v1852
    %v1949 = vcvt.s32.f32 %v1853
    %v1950 = vcvt.s32.f32 %v1854
    %v1951 = vcvt.s32.f32 %v1855
    %v1952 = vcvt.s32.f32 %v1856
    %v1953 = vcvt.s32.f32 %v1857
    %v1954 = vcvt.s32.f32 %v1858
    %v1955 = vcvt.s32.f32 %v1859
    %v1956 = vcvt.s32.f32 %v1860
    %v1957 = vcvt.s32.f32 %v1861
    %v1958 = vcvt.s32.f32 %v1862
    %v1959 = vcvt.s32.f32 %v1863
    %v1960 = vcvt.s32.f32 %v1864
    %v1961 = vcvt.s32.f32 %v1865
    %v1962 = vcvt.s32.f32 %v1866
    %v1963 = vcvt.s32.f32 %v1867
    %v1964 = vcvt.s32.f32 %v1868
    %v1965 = vcvt.s32.f32 %v1869
    %v1966 = vcvt.s32.f32 %v1870
    %v1967 = vcvt.s32.f32 %v1871
    %v1968 = vcvt.s32.f32 %v1872
    %v1969 = vcvt.s32.f32 %v1873
    %v1970 = vcvt.s32.f32 %v1874
    %v1971 = vcvt.s32.f32 %v1875
    %v1972 = vcvt.s32.f32 %v1876
    %v1973 = vcvt.s32.f32 %v1877
    %v1974 = vcvt.s32.f32 %v1878
    %v1975 = vcvt.s32.f32 %v1879
    %v1976 = vcvt.s32.f32 %v1880
    %v1977 = vcvt.s32.f32 %v1881
    %v1978 = vcvt.s32.f32 %v1882
    %v1979 = vcvt.s32.f32 %v1883
    %v1980 = vcvt.s32.f32 %v1884
    %v1981 = vcvt.s32.f32 %v1885
    %v1982 = vcvt.s32.f32 %v1886
    %v1983 = vcvt.s32.f32 %v1887
    %v1984 = vcvt.s32.f32 %v1888
    %v1985 = vcvt.s32.f32 %v1889
    %v1986 = vcvt.s32.f32 %v1890
    %v1987 = vcvt.s32.f32 %v1891
    %v1988 = vcvt.s32.f32 %v1892
    %v1989 = vcvt.s32.f32 %v1893
    %v1990 = vcvt.s32.f32 %v1894
    %v1991 = vcvt.s32.f32 %v1895
    %v1992 = vcvt.s32.f32 %v1896
    %v1993 = vcvt.s32.f32 %v1897
    %v1994 = vcvt.s32.f32 %v1898
    %v1995 = vcvt.s32.f32 %v1899
    %v1996 = vcvt.s32.f32 %v1900
    %v1997 = vcvt.s32.f32 %v1901
    %v1998 = vcvt.s32.f32 %v1902
    %v1999 = vcvt.s32.f32 %v1903
    %v2000 = vcvt.s32.f32 %v1904
    %v2001 = vcvt.s32.f32 %v1905
    %v2002 = vcvt.s32.f32 %v1906
    %v2003 = vcvt.s32.f32 %v1907
    %v2004 = vadd.s32 %v1521, 128
    %v2005 = vadd.s32 %v1521, 256
    %v2006 = vadd.s32 %v1521, 384
    %v2007 = vadd.s32 %v1521, 512
    %v2008 = vadd.s32 %v1521, 640
    %v2009 = vmul.u32 %v1424, 51
    %v2010 = vmul.u32 %v1425, 51
    %vm2011 = vcmp.ge.s32.totalorder %v1521, %v2009
    %vm2012 = vcmp.ge.s32.totalorder %v2004, %v2009
    %vm2013 = vcmp.ge.s32.totalorder %v2005, %v2009
    %vm2014 = vcmp.ge.s32.totalorder %v2006, %v2009
    %vm2015 = vcmp.ge.s32.totalorder %v2007, %v2009
    %vm2016 = vcmp.ge.s32.totalorder %v2008, %v2009
    %vm2017 = vcmp.ge.s32.totalorder %v1521, %v2010
    %vm2018 = vcmp.ge.s32.totalorder %v2004, %v2010
    %vm2019 = vcmp.ge.s32.totalorder %v2005, %v2010
    %vm2020 = vcmp.ge.s32.totalorder %v2006, %v2010
    %vm2021 = vcmp.ge.s32.totalorder %v2007, %v2010
    %vm2022 = vcmp.ge.s32.totalorder %v2008, %v2010
    %v2023 = vadd.s32 %v2009, 51
    %v2024 = vadd.s32 %v2010, 51
    %vm2025 = vcmp.lt.s32.totalorder %v1521, %v2023
    %vm2026 = vcmp.lt.s32.totalorder %v2004, %v2023
    %vm2027 = vcmp.lt.s32.totalorder %v2005, %v2023
    %vm2028 = vcmp.lt.s32.totalorder %v2006, %v2023
    %vm2029 = vcmp.lt.s32.totalorder %v2007, %v2023
    %vm2030 = vcmp.lt.s32.totalorder %v2008, %v2023
    %vm2031 = vcmp.lt.s32.totalorder %v1521, %v2024
    %vm2032 = vcmp.lt.s32.totalorder %v2004, %v2024
    %vm2033 = vcmp.lt.s32.totalorder %v2005, %v2024
    %vm2034 = vcmp.lt.s32.totalorder %v2006, %v2024
    %vm2035 = vcmp.lt.s32.totalorder %v2007, %v2024
    %vm2036 = vcmp.lt.s32.totalorder %v2008, %v2024
    %vm2037 = vmand %vm2011, %vm2025
    %vm2038 = vmand %vm2012, %vm2026
    %vm2039 = vmand %vm2013, %vm2027
    %vm2040 = vmand %vm2014, %vm2028
    %vm2041 = vmand %vm2015, %vm2029
    %vm2042 = vmand %vm2016, %vm2030
    %vm2043 = vmand %vm2017, %vm2031
    %vm2044 = vmand %vm2018, %vm2032
    %vm2045 = vmand %vm2019, %vm2033
    %vm2046 = vmand %vm2020, %vm2034
    %vm2047 = vmand %vm2021, %vm2035
    %vm2048 = vmand %vm2022, %vm2036
    %v2049 = vsel %vm2037, 1, 0
    %v2050 = vsel %vm2038, 1, 0
    %v2051 = vsel %vm2039, 1, 0
    %v2052 = vsel %vm2040, 1, 0
    %v2053 = vsel %vm2041, 1, 0
    %v2054 = vsel %vm2042, 1, 0
    %v2055 = vsel %vm2043, 1, 0
    %v2056 = vsel %vm2044, 1, 0
    %v2057 = vsel %vm2045, 1, 0
    %v2058 = vsel %vm2046, 1, 0
    %v2059 = vsel %vm2047, 1, 0
    %v2060 = vsel %vm2048, 1, 0
    %v2061 = vcvt.s32.f32 %v2049
    %v2062 = vcvt.s32.f32 %v2050
    %v2063 = vcvt.s32.f32 %v2051
    %v2064 = vcvt.s32.f32 %v2052
    %v2065 = vcvt.s32.f32 %v2053
    %v2066 = vcvt.s32.f32 %v2054
    %v2067 = vcvt.s32.f32 %v2055
    %v2068 = vcvt.s32.f32 %v2056
    %v2069 = vcvt.s32.f32 %v2057
    %v2070 = vcvt.s32.f32 %v2058
    %v2071 = vcvt.s32.f32 %v2059
    %v2072 = vcvt.s32.f32 %v2060
    %v2073 = vmax.f32 %v1335, %v1417
    %v2074 = vmax.f32 %v1337, %v1419
    %v2075 = vmax.f32 %v2073, %v2074
    %v2076 = vmax.f32 %v1376, %v1378
    %v2077 = vmax.f32 %v2075, %v2076
    %2078 = vmax.xlane.f32.xlu0 %v2077
    %v2079 = vpop.xlane.xlu0 %2078
    %v2080 = vsub.f32 %v1335, %v2079
    %v2081 = vsub.f32 %v1337, %v2079
    %v2082 = vsub.f32 %v1376, %v2079
    %v2083 = vsub.f32 %v1378, %v2079
    %v2084 = vsub.f32 %v1417, %v2079
    %v2085 = vsub.f32 %v1419, %v2079
    %v2086 = vmax.f32 %v2080, -60.0
    %v2087 = vmax.f32 %v2081, -60.0
    %v2088 = vmax.f32 %v2082, -60.0
    %v2089 = vmax.f32 %v2083, -60.0
    %v2090 = vmax.f32 %v2084, -60.0
    %v2091 = vmax.f32 %v2085, -60.0
    %v2092 = vmul.f32 %v2086, 1.442695
    %v2093 = vpow.pop %v2092
    %v2094 = vmul.f32 %v2087, 1.442695
    %v2095 = vpow.pop %v2094
    %v2096 = vmul.f32 %v2088, 1.442695
    %v2097 = vpow.pop %v2096
    %v2098 = vmul.f32 %v2089, 1.442695
    %v2099 = vpow.pop %v2098
    %v2100 = vmul.f32 %v2090, 1.442695
    %v2101 = vpow.pop %v2100
    %v2102 = vmul.f32 %v2091, 1.442695
    %v2103 = vpow.pop %v2102
    %2104 = vmatprep.subr.mxu0 0.0
    %v2105 = vand.u32 %v1908, 4294901760
    %2106 = vmatpush1.msra.mxu0 %v2105
    %2107 = vmatprep.subr.mxu0 0.0
    %v2108 = vand.u32 %v1909, 4294901760
    %2109 = vmatpush1.msra.mxu0 %v2108
    %2110 = vmatprep.subr.mxu0 0.0
    %v2111 = vand.u32 %v1910, 4294901760
    %2112 = vmatpush1.msra.mxu0 %v2111
    %2113 = vmatprep.subr.mxu0 0.0
    %v2114 = vand.u32 %v1911, 4294901760
    %2115 = vmatpush1.msra.mxu0 %v2114
    %2116 = vmatprep.subr.mxu0 0.0
    %v2117 = vand.u32 %v1912, 4294901760
    %2118 = vmatpush1.msra.mxu0 %v2117
    %2119 = vmatprep.subr.mxu0 0.0
    %v2120 = vand.u32 %v1913, 4294901760
    %2121 = vmatpush1.msra.mxu0 %v2120
    %2122 = vmatprep.subr.mxu0 0.0
    %v2123 = vand.u32 %v1914, 4294901760
    %2124 = vmatpush1.msra.mxu0 %v2123
    %2125 = vmatprep.subr.mxu0 0.0
    %v2126 = vand.u32 %v1915, 4294901760
    %2127 = vmatpush1.msra.mxu0 %v2126
    %2128 = vmatprep.subr.mxu0 0.0
    %v2129 = vand.u32 %v1916, 4294901760
    %2130 = vmatpush1.msra.mxu0 %v2129
    %2131 = vmatprep.subr.mxu0 0.0
    %v2132 = vand.u32 %v1917, 4294901760
    %2133 = vmatpush1.msra.mxu0 %v2132
    %2134 = vmatprep.subr.mxu0 0.0
    %v2135 = vand.u32 %v1918, 4294901760
    %2136 = vmatpush1.msra.mxu0 %v2135
    %2137 = vmatprep.subr.mxu0 0.0
    %v2138 = vand.u32 %v1919, 4294901760
    %2139 = vmatpush1.msra.mxu0 %v2138
    %2140 = vmatprep.subr.mxu0 0.0
    %v2141 = vand.u32 %v1920, 4294901760
    %2142 = vmatpush1.msra.mxu0 %v2141
    %2143 = vmatprep.subr.mxu0 0.0
    %v2144 = vand.u32 %v1921, 4294901760
    %2145 = vmatpush1.msra.mxu0 %v2144
    %2146 = vmatprep.subr.mxu0 0.0
    %v2147 = vand.u32 %v1922, 4294901760
    %2148 = vmatpush1.msra.mxu0 %v2147
    %2149 = vmatprep.subr.mxu0 0.0
    %v2150 = vand.u32 %v1923, 4294901760
    %2151 = vmatpush1.msra.mxu0 %v2150
    %2152 = vmatprep.subr.mxu0 0.0
    %v2153 = vand.u32 %v1924, 4294901760
    %2154 = vmatpush1.msra.mxu0 %v2153
    %2155 = vmatprep.subr.mxu0 0.0
    %v2156 = vand.u32 %v1925, 4294901760
    %2157 = vmatpush1.msra.mxu0 %v2156
    %2158 = vmatprep.subr.mxu0 0.0
    %v2159 = vand.u32 %v1926, 4294901760
    %2160 = vmatpush1.msra.mxu0 %v2159
    %2161 = vmatprep.subr.mxu0 0.0
    %v2162 = vand.u32 %v1927, 4294901760
    %2163 = vmatpush1.msra.mxu0 %v2162
    %2164 = vmatprep.subr.mxu0 0.0
    %v2165 = vand.u32 %v1928, 4294901760
    %2166 = vmatpush1.msra.mxu0 %v2165
    %2167 = vmatprep.subr.mxu0 0.0
    %v2168 = vand.u32 %v1929, 4294901760
    %2169 = vmatpush1.msra.mxu0 %v2168
    %2170 = vmatprep.subr.mxu0 0.0
    %v2171 = vand.u32 %v1930, 4294901760
    %2172 = vmatpush1.msra.mxu0 %v2171
    %2173 = vmatprep.subr.mxu0 0.0
    %v2174 = vand.u32 %v1931, 4294901760
    %2175 = vmatpush1.msra.mxu0 %v2174
    %2176 = vmatprep.subr.mxu0 0.0
    %v2177 = vand.u32 %v1932, 4294901760
    %2178 = vmatpush1.msra.mxu0 %v2177
    %2179 = vmatprep.subr.mxu0 0.0
    %v2180 = vand.u32 %v1933, 4294901760
    %2181 = vmatpush1.msra.mxu0 %v2180
    %2182 = vmatprep.subr.mxu0 0.0
    %v2183 = vand.u32 %v1934, 4294901760
    %2184 = vmatpush1.msra.mxu0 %v2183
    %2185 = vmatprep.subr.mxu0 0.0
    %v2186 = vand.u32 %v1935, 4294901760
    %2187 = vmatpush1.msra.mxu0 %v2186
    %2188 = vmatprep.subr.mxu0 0.0
    %v2189 = vand.u32 %v1936, 4294901760
    %2190 = vmatpush1.msra.mxu0 %v2189
    %2191 = vmatprep.subr.mxu0 0.0
    %v2192 = vand.u32 %v1937, 4294901760
    %2193 = vmatpush1.msra.mxu0 %v2192
    %2194 = vmatprep.subr.mxu0 0.0
    %v2195 = vand.u32 %v1938, 4294901760
    %2196 = vmatpush1.msra.mxu0 %v2195
    %2197 = vmatprep.subr.mxu0 0.0
    %v2198 = vand.u32 %v1939, 4294901760
    %2199 = vmatpush1.msra.mxu0 %v2198
    %v2200 = vand.u32 %v2095, 4294901760
    %v2201 = vsub.f32 %v2095, %v2200
    %v2202 = vand.u32 %v2201, 4294901760
    %v2203 = vsub.f32 %v2201, %v2202
    %v2204 = vand.u32 %v2203, 4294901760
    %2205 = vmatprep.mubr.f32.mxu0 %v2204
    %v2206 = vand.u32 %v2093, 4294901760
    %v2207 = vsub.f32 %v2093, %v2206
    %v2208 = vand.u32 %v2207, 4294901760
    %v2209 = vsub.f32 %v2207, %v2208
    %v2210 = vand.u32 %v2209, 4294901760
    %2211 = vmatmul.mubr.f32.gmra.mrb[0].mxu0 %v2210
    %v2212 = vpop.f32.mrb[0].mxu0
    %v2213 = vadd.f32 0.0, %v2212
    %v2214 = vpop.f32.mrb[0].mxu0
    %2215 = vdwg.mxu0
    %2216 = vmatprep.subr.mxu0 0.0
    %v2217 = vand.u32 %v1908, 4294901760
    %v2218 = vsub.f32 %v1908, %v2217
    %v2219 = vand.u32 %v2218, 4294901760
    %v2220 = vsub.f32 %v2218, %v2219
    %v2221 = vand.u32 %v2220, 4294901760
    %2222 = vmatpush1.msra.mxu0 %v2221
    %2223 = vmatprep.subr.mxu0 0.0
    %v2224 = vand.u32 %v1909, 4294901760
    %v2225 = vsub.f32 %v1909, %v2224
    %v2226 = vand.u32 %v2225, 4294901760
    %v2227 = vsub.f32 %v2225, %v2226
    %v2228 = vand.u32 %v2227, 4294901760
    %2229 = vmatpush1.msra.mxu0 %v2228
    %2230 = vmatprep.subr.mxu0 0.0
    %v2231 = vand.u32 %v1910, 4294901760
    %v2232 = vsub.f32 %v1910, %v2231
    %v2233 = vand.u32 %v2232, 4294901760
    %v2234 = vsub.f32 %v2232, %v2233
    %v2235 = vand.u32 %v2234, 4294901760
    %2236 = vmatpush1.msra.mxu0 %v2235
    %2237 = vmatprep.subr.mxu0 0.0
    %v2238 = vand.u32 %v1911, 4294901760
    %v2239 = vsub.f32 %v1911, %v2238
    %v2240 = vand.u32 %v2239, 4294901760
    %v2241 = vsub.f32 %v2239, %v2240
    %v2242 = vand.u32 %v2241, 4294901760
    %2243 = vmatpush1.msra.mxu0 %v2242
    %2244 = vmatprep.subr.mxu0 0.0
    %v2245 = vand.u32 %v1912, 4294901760
    %v2246 = vsub.f32 %v1912, %v2245
    %v2247 = vand.u32 %v2246, 4294901760
    %v2248 = vsub.f32 %v2246, %v2247
    %v2249 = vand.u32 %v2248, 4294901760
    %2250 = vmatpush1.msra.mxu0 %v2249
    %2251 = vmatprep.subr.mxu0 0.0
    %v2252 = vand.u32 %v1913, 4294901760
    %v2253 = vsub.f32 %v1913, %v2252
    %v2254 = vand.u32 %v2253, 4294901760
    %v2255 = vsub.f32 %v2253, %v2254
    %v2256 = vand.u32 %v2255, 4294901760
    %2257 = vmatpush1.msra.mxu0 %v2256
    %2258 = vmatprep.subr.mxu0 0.0
    %v2259 = vand.u32 %v1914, 4294901760
    %v2260 = vsub.f32 %v1914, %v2259
    %v2261 = vand.u32 %v2260, 4294901760
    %v2262 = vsub.f32 %v2260, %v2261
    %v2263 = vand.u32 %v2262, 4294901760
    %2264 = vmatpush1.msra.mxu0 %v2263
    %2265 = vmatprep.subr.mxu0 0.0
    %v2266 = vand.u32 %v1915, 4294901760
    %v2267 = vsub.f32 %v1915, %v2266
    %v2268 = vand.u32 %v2267, 4294901760
    %v2269 = vsub.f32 %v2267, %v2268
    %v2270 = vand.u32 %v2269, 4294901760
    %2271 = vmatpush1.msra.mxu0 %v2270
    %2272 = vmatprep.subr.mxu0 0.0
    %v2273 = vand.u32 %v1916, 4294901760
    %v2274 = vsub.f32 %v1916, %v2273
    %v2275 = vand.u32 %v2274, 4294901760
    %v2276 = vsub.f32 %v2274, %v2275
    %v2277 = vand.u32 %v2276, 4294901760
    %2278 = vmatpush1.msra.mxu0 %v2277
    %2279 = vmatprep.subr.mxu0 0.0
    %v2280 = vand.u32 %v1917, 4294901760
    %v2281 = vsub.f32 %v1917, %v2280
    %v2282 = vand.u32 %v2281, 4294901760
    %v2283 = vsub.f32 %v2281, %v2282
    %v2284 = vand.u32 %v2283, 4294901760
    %2285 = vmatpush1.msra.mxu0 %v2284
    %2286 = vmatprep.subr.mxu0 0.0
    %v2287 = vand.u32 %v1918, 4294901760
    %v2288 = vsub.f32 %v1918, %v2287
    %v2289 = vand.u32 %v2288, 4294901760
    %v2290 = vsub.f32 %v2288, %v2289
    %v2291 = vand.u32 %v2290, 4294901760
    %2292 = vmatpush1.msra.mxu0 %v2291
    %2293 = vmatprep.subr.mxu0 0.0
    %v2294 = vand.u32 %v1919, 4294901760
    %v2295 = vsub.f32 %v1919, %v2294
    %v2296 = vand.u32 %v2295, 4294901760
    %v2297 = vsub.f32 %v2295, %v2296
    %v2298 = vand.u32 %v2297, 4294901760
    %2299 = vmatpush1.msra.mxu0 %v2298
    %2300 = vmatprep.subr.mxu0 0.0
    %v2301 = vand.u32 %v1920, 4294901760
    %v2302 = vsub.f32 %v1920, %v2301
    %v2303 = vand.u32 %v2302, 4294901760
    %v2304 = vsub.f32 %v2302, %v2303
    %v2305 = vand.u32 %v2304, 4294901760
    %2306 = vmatpush1.msra.mxu0 %v2305
    %2307 = vmatprep.subr.mxu0 0.0
    %v2308 = vand.u32 %v1921, 4294901760
    %v2309 = vsub.f32 %v1921, %v2308
    %v2310 = vand.u32 %v2309, 4294901760
    %v2311 = vsub.f32 %v2309, %v2310
    %v2312 = vand.u32 %v2311, 4294901760
    %2313 = vmatpush1.msra.mxu0 %v2312
    %2314 = vmatprep.subr.mxu0 0.0
    %v2315 = vand.u32 %v1922, 4294901760
    %v2316 = vsub.f32 %v1922, %v2315
    %v2317 = vand.u32 %v2316, 4294901760
    %v2318 = vsub.f32 %v2316, %v2317
    %v2319 = vand.u32 %v2318, 4294901760
    %2320 = vmatpush1.msra.mxu0 %v2319
    %2321 = vmatprep.subr.mxu0 0.0
    %v2322 = vand.u32 %v1923, 4294901760
    %v2323 = vsub.f32 %v1923, %v2322
    %v2324 = vand.u32 %v2323, 4294901760
    %v2325 = vsub.f32 %v2323, %v2324
    %v2326 = vand.u32 %v2325, 4294901760
    %2327 = vmatpush1.msra.mxu0 %v2326
    %2328 = vmatprep.subr.mxu0 0.0
    %v2329 = vand.u32 %v1924, 4294901760
    %v2330 = vsub.f32 %v1924, %v2329
    %v2331 = vand.u32 %v2330, 4294901760
    %v2332 = vsub.f32 %v2330, %v2331
    %v2333 = vand.u32 %v2332, 4294901760
    %2334 = vmatpush1.msra.mxu0 %v2333
    %2335 = vmatprep.subr.mxu0 0.0
    %v2336 = vand.u32 %v1925, 4294901760
    %v2337 = vsub.f32 %v1925, %v2336
    %v2338 = vand.u32 %v2337, 4294901760
    %v2339 = vsub.f32 %v2337, %v2338
    %v2340 = vand.u32 %v2339, 4294901760
    %2341 = vmatpush1.msra.mxu0 %v2340
    %2342 = vmatprep.subr.mxu0 0.0
    %v2343 = vand.u32 %v1926, 4294901760
    %v2344 = vsub.f32 %v1926, %v2343
    %v2345 = vand.u32 %v2344, 4294901760
    %v2346 = vsub.f32 %v2344, %v2345
    %v2347 = vand.u32 %v2346, 4294901760
    %2348 = vmatpush1.msra.mxu0 %v2347
    %2349 = vmatprep.subr.mxu0 0.0
    %v2350 = vand.u32 %v1927, 4294901760
    %v2351 = vsub.f32 %v1927, %v2350
    %v2352 = vand.u32 %v2351, 4294901760
    %v2353 = vsub.f32 %v2351, %v2352
    %v2354 = vand.u32 %v2353, 4294901760
    %2355 = vmatpush1.msra.mxu0 %v2354
    %2356 = vmatprep.subr.mxu0 0.0
    %v2357 = vand.u32 %v1928, 4294901760
    %v2358 = vsub.f32 %v1928, %v2357
    %v2359 = vand.u32 %v2358, 4294901760
    %v2360 = vsub.f32 %v2358, %v2359
    %v2361 = vand.u32 %v2360, 4294901760
    %2362 = vmatpush1.msra.mxu0 %v2361
    %2363 = vmatprep.subr.mxu0 0.0
    %v2364 = vand.u32 %v1929, 4294901760
    %v2365 = vsub.f32 %v1929, %v2364
    %v2366 = vand.u32 %v2365, 4294901760
    %v2367 = vsub.f32 %v2365, %v2366
    %v2368 = vand.u32 %v2367, 4294901760
    %2369 = vmatpush1.msra.mxu0 %v2368
    %2370 = vmatprep.subr.mxu0 0.0
    %v2371 = vand.u32 %v1930, 4294901760
    %v2372 = vsub.f32 %v1930, %v2371
    %v2373 = vand.u32 %v2372, 4294901760
    %v2374 = vsub.f32 %v2372, %v2373
    %v2375 = vand.u32 %v2374, 4294901760
    %2376 = vmatpush1.msra.mxu0 %v2375
    %2377 = vmatprep.subr.mxu0 0.0
    %v2378 = vand.u32 %v1931, 4294901760
    %v2379 = vsub.f32 %v1931, %v2378
    %v2380 = vand.u32 %v2379, 4294901760
    %v2381 = vsub.f32 %v2379, %v2380
    %v2382 = vand.u32 %v2381, 4294901760
    %2383 = vmatpush1.msra.mxu0 %v2382
    %2384 = vmatprep.subr.mxu0 0.0
    %v2385 = vand.u32 %v1932, 4294901760
    %v2386 = vsub.f32 %v1932, %v2385
    %v2387 = vand.u32 %v2386, 4294901760
    %v2388 = vsub.f32 %v2386, %v2387
    %v2389 = vand.u32 %v2388, 4294901760
    %2390 = vmatpush1.msra.mxu0 %v2389
    %2391 = vmatprep.subr.mxu0 0.0
    %v2392 = vand.u32 %v1933, 4294901760
    %v2393 = vsub.f32 %v1933, %v2392
    %v2394 = vand.u32 %v2393, 4294901760
    %v2395 = vsub.f32 %v2393, %v2394
    %v2396 = vand.u32 %v2395, 4294901760
    %2397 = vmatpush1.msra.mxu0 %v2396
    %2398 = vmatprep.subr.mxu0 0.0
    %v2399 = vand.u32 %v1934, 4294901760
    %v2400 = vsub.f32 %v1934, %v2399
    %v2401 = vand.u32 %v2400, 4294901760
    %v2402 = vsub.f32 %v2400, %v2401
    %v2403 = vand.u32 %v2402, 4294901760
    %2404 = vmatpush1.msra.mxu0 %v2403
    %2405 = vmatprep.subr.mxu0 0.0
    %v2406 = vand.u32 %v1935, 4294901760
    %v2407 = vsub.f32 %v1935, %v2406
    %v2408 = vand.u32 %v2407, 4294901760
    %v2409 = vsub.f32 %v2407, %v2408
    %v2410 = vand.u32 %v2409, 4294901760
    %2411 = vmatpush1.msra.mxu0 %v2410
    %2412 = vmatprep.subr.mxu0 0.0
    %v2413 = vand.u32 %v1936, 4294901760
    %v2414 = vsub.f32 %v1936, %v2413
    %v2415 = vand.u32 %v2414, 4294901760
    %v2416 = vsub.f32 %v2414, %v2415
    %v2417 = vand.u32 %v2416, 4294901760
    %2418 = vmatpush1.msra.mxu0 %v2417
    %2419 = vmatprep.subr.mxu0 0.0
    %v2420 = vand.u32 %v1937, 4294901760
    %v2421 = vsub.f32 %v1937, %v2420
    %v2422 = vand.u32 %v2421, 4294901760
    %v2423 = vsub.f32 %v2421, %v2422
    %v2424 = vand.u32 %v2423, 4294901760
    %2425 = vmatpush1.msra.mxu0 %v2424
    %2426 = vmatprep.subr.mxu0 0.0
    %v2427 = vand.u32 %v1938, 4294901760
    %v2428 = vsub.f32 %v1938, %v2427
    %v2429 = vand.u32 %v2428, 4294901760
    %v2430 = vsub.f32 %v2428, %v2429
    %v2431 = vand.u32 %v2430, 4294901760
    %2432 = vmatpush1.msra.mxu0 %v2431
    %2433 = vmatprep.subr.mxu0 0.0
    %v2434 = vand.u32 %v1939, 4294901760
    %v2435 = vsub.f32 %v1939, %v2434
    %v2436 = vand.u32 %v2435, 4294901760
    %v2437 = vsub.f32 %v2435, %v2436
    %v2438 = vand.u32 %v2437, 4294901760
    %2439 = vmatpush1.msra.mxu0 %v2438
    %v2440 = vand.u32 %v2095, 4294901760
    %2441 = vmatprep.mubr.f32.mxu0 %v2440
    %v2442 = vand.u32 %v2093, 4294901760
    %2443 = vmatmul.mubr.f32.gmra.mrb[0].mxu0 %v2442
    %v2444 = vpop.f32.mrb[0].mxu0
    %v2445 = vadd.f32 %v2213, %v2444
    %v2446 = vpop.f32.mrb[0].mxu0
    %2447 = vdwg.mxu0
    %2448 = vmatprep.subr.mxu0 0.0
    %v2449 = vand.u32 %v1908, 4294901760
    %v2450 = vsub.f32 %v1908, %v2449
    %2451 = vmatpush1.msra.mxu0 %v2450
    %2452 = vmatprep.subr.mxu0 0.0
    %v2453 = vand.u32 %v1909, 4294901760
    %v2454 = vsub.f32 %v1909, %v2453
    %2455 = vmatpush1.msra.mxu0 %v2454
    %2456 = vmatprep.subr.mxu0 0.0
    %v2457 = vand.u32 %v1910, 4294901760
    %v2458 = vsub.f32 %v1910, %v2457
    %2459 = vmatpush1.msra.mxu0 %v2458
    %2460 = vmatprep.subr.mxu0 0.0
    %v2461 = vand.u32 %v1911, 4294901760
    %v2462 = vsub.f32 %v1911, %v2461
    %2463 = vmatpush1.msra.mxu0 %v2462
    %2464 = vmatprep.subr.mxu0 0.0
    %v2465 = vand.u32 %v1912, 4294901760
    %v2466 = vsub.f32 %v1912, %v2465
    %2467 = vmatpush1.msra.mxu0 %v2466
    %2468 = vmatprep.subr.mxu0 0.0
    %v2469 = vand.u32 %v1913, 4294901760
    %v2470 = vsub.f32 %v1913, %v2469
    %2471 = vmatpush1.msra.mxu0 %v2470
    %2472 = vmatprep.subr.mxu0 0.0
    %v2473 = vand.u32 %v1914, 4294901760
    %v2474 = vsub.f32 %v1914, %v2473
    %2475 = vmatpush1.msra.mxu0 %v2474
    %2476 = vmatprep.subr.mxu0 0.0
    %v2477 = vand.u32 %v1915, 4294901760
    %v2478 = vsub.f32 %v1915, %v2477
    %2479 = vmatpush1.msra.mxu0 %v2478
    %2480 = vmatprep.subr.mxu0 0.0
    %v2481 = vand.u32 %v1916, 4294901760
    %v2482 = vsub.f32 %v1916, %v2481
    %2483 = vmatpush1.msra.mxu0 %v2482
    %2484 = vmatprep.subr.mxu0 0.0
    %v2485 = vand.u32 %v1917, 4294901760
    %v2486 = vsub.f32 %v1917, %v2485
    %2487 = vmatpush1.msra.mxu0 %v2486
    %2488 = vmatprep.subr.mxu0 0.0
    %v2489 = vand.u32 %v1918, 4294901760
    %v2490 = vsub.f32 %v1918, %v2489
    %2491 = vmatpush1.msra.mxu0 %v2490
    %2492 = vmatprep.subr.mxu0 0.0
    %v2493 = vand.u32 %v1919, 4294901760
    %v2494 = vsub.f32 %v1919, %v2493
    %2495 = vmatpush1.msra.mxu0 %v2494
    %2496 = vmatprep.subr.mxu0 0.0
    %v2497 = vand.u32 %v1920, 4294901760
    %v2498 = vsub.f32 %v1920, %v2497
    %2499 = vmatpush1.msra.mxu0 %v2498
    %2500 = vmatprep.subr.mxu0 0.0
    %v2501 = vand.u32 %v1921, 4294901760
    %v2502 = vsub.f32 %v1921, %v2501
    %2503 = vmatpush1.msra.mxu0 %v2502
    %2504 = vmatprep.subr.mxu0 0.0
    %v2505 = vand.u32 %v1922, 4294901760
    %v2506 = vsub.f32 %v1922, %v2505
    %2507 = vmatpush1.msra.mxu0 %v2506
    %2508 = vmatprep.subr.mxu0 0.0
    %v2509 = vand.u32 %v1923, 4294901760
    %v2510 = vsub.f32 %v1923, %v2509
    %2511 = vmatpush1.msra.mxu0 %v2510
    %2512 = vmatprep.subr.mxu0 0.0
    %v2513 = vand.u32 %v1924, 4294901760
    %v2514 = vsub.f32 %v1924, %v2513
    %2515 = vmatpush1.msra.mxu0 %v2514
    %2516 = vmatprep.subr.mxu0 0.0
    %v2517 = vand.u32 %v1925, 4294901760
    %v2518 = vsub.f32 %v1925, %v2517
    %2519 = vmatpush1.msra.mxu0 %v2518
    %2520 = vmatprep.subr.mxu0 0.0
    %v2521 = vand.u32 %v1926, 4294901760
    %v2522 = vsub.f32 %v1926, %v2521
    %2523 = vmatpush1.msra.mxu0 %v2522
    %2524 = vmatprep.subr.mxu0 0.0
    %v2525 = vand.u32 %v1927, 4294901760
    %v2526 = vsub.f32 %v1927, %v2525
    %2527 = vmatpush1.msra.mxu0 %v2526
    %2528 = vmatprep.subr.mxu0 0.0
    %v2529 = vand.u32 %v1928, 4294901760
    %v2530 = vsub.f32 %v1928, %v2529
    %2531 = vmatpush1.msra.mxu0 %v2530
    %2532 = vmatprep.subr.mxu0 0.0
    %v2533 = vand.u32 %v1929, 4294901760
    %v2534 = vsub.f32 %v1929, %v2533
    %2535 = vmatpush1.msra.mxu0 %v2534
    %2536 = vmatprep.subr.mxu0 0.0
    %v2537 = vand.u32 %v1930, 4294901760
    %v2538 = vsub.f32 %v1930, %v2537
    %2539 = vmatpush1.msra.mxu0 %v2538
    %2540 = vmatprep.subr.mxu0 0.0
    %v2541 = vand.u32 %v1931, 4294901760
    %v2542 = vsub.f32 %v1931, %v2541
    %2543 = vmatpush1.msra.mxu0 %v2542
    %2544 = vmatprep.subr.mxu0 0.0
    %v2545 = vand.u32 %v1932, 4294901760
    %v2546 = vsub.f32 %v1932, %v2545
    %2547 = vmatpush1.msra.mxu0 %v2546
    %2548 = vmatprep.subr.mxu0 0.0
    %v2549 = vand.u32 %v1933, 4294901760
    %v2550 = vsub.f32 %v1933, %v2549
    %2551 = vmatpush1.msra.mxu0 %v2550
    %2552 = vmatprep.subr.mxu0 0.0
    %v2553 = vand.u32 %v1934, 4294901760
    %v2554 = vsub.f32 %v1934, %v2553
    %2555 = vmatpush1.msra.mxu0 %v2554
    %2556 = vmatprep.subr.mxu0 0.0
    %v2557 = vand.u32 %v1935, 4294901760
    %v2558 = vsub.f32 %v1935, %v2557
    %2559 = vmatpush1.msra.mxu0 %v2558
    %2560 = vmatprep.subr.mxu0 0.0
    %v2561 = vand.u32 %v1936, 4294901760
    %v2562 = vsub.f32 %v1936, %v2561
    %2563 = vmatpush1.msra.mxu0 %v2562
    %2564 = vmatprep.subr.mxu0 0.0
    %v2565 = vand.u32 %v1937, 4294901760
    %v2566 = vsub.f32 %v1937, %v2565
    %2567 = vmatpush1.msra.mxu0 %v2566
    %2568 = vmatprep.subr.mxu0 0.0
    %v2569 = vand.u32 %v1938, 4294901760
    %v2570 = vsub.f32 %v1938, %v2569
    %2571 = vmatpush1.msra.mxu0 %v2570
    %2572 = vmatprep.subr.mxu0 0.0
    %v2573 = vand.u32 %v1939, 4294901760
    %v2574 = vsub.f32 %v1939, %v2573
    %2575 = vmatpush1.msra.mxu0 %v2574
    %v2576 = vand.u32 %v2095, 4294901760
    %v2577 = vsub.f32 %v2095, %v2576
    %2578 = vmatprep.mubr.f32.mxu0 %v2577
    %v2579 = vand.u32 %v2093, 4294901760
    %v2580 = vsub.f32 %v2093, %v2579
    %2581 = vmatmul.mubr.f32.gmra.mrb[0].mxu0 %v2580
    %v2582 = vpop.f32.mrb[0].mxu0
    %v2583 = vadd.f32 %v2445, %v2582
    %v2584 = vpop.f32.mrb[0].mxu0
    %2585 = vdwg.mxu0
    %2586 = vmatprep.subr.mxu0 0.0
    %v2587 = vand.u32 %v1908, 4294901760
    %2588 = vmatpush1.msra.mxu0 %v2587
    %2589 = vmatprep.subr.mxu0 0.0
    %v2590 = vand.u32 %v1909, 4294901760
    %2591 = vmatpush1.msra.mxu0 %v2590
    %2592 = vmatprep.subr.mxu0 0.0
    %v2593 = vand.u32 %v1910, 4294901760
    %2594 = vmatpush1.msra.mxu0 %v2593
    %2595 = vmatprep.subr.mxu0 0.0
    %v2596 = vand.u32 %v1911, 4294901760
    %2597 = vmatpush1.msra.mxu0 %v2596
    %2598 = vmatprep.subr.mxu0 0.0
    %v2599 = vand.u32 %v1912, 4294901760
    %2600 = vmatpush1.msra.mxu0 %v2599
    %2601 = vmatprep.subr.mxu0 0.0
    %v2602 = vand.u32 %v1913, 4294901760
    %2603 = vmatpush1.msra.mxu0 %v2602
    %2604 = vmatprep.subr.mxu0 0.0
    %v2605 = vand.u32 %v1914, 4294901760
    %2606 = vmatpush1.msra.mxu0 %v2605
    %2607 = vmatprep.subr.mxu0 0.0
    %v2608 = vand.u32 %v1915, 4294901760
    %2609 = vmatpush1.msra.mxu0 %v2608
    %2610 = vmatprep.subr.mxu0 0.0
    %v2611 = vand.u32 %v1916, 4294901760
    %2612 = vmatpush1.msra.mxu0 %v2611
    %2613 = vmatprep.subr.mxu0 0.0
    %v2614 = vand.u32 %v1917, 4294901760
    %2615 = vmatpush1.msra.mxu0 %v2614
    %2616 = vmatprep.subr.mxu0 0.0
    %v2617 = vand.u32 %v1918, 4294901760
    %2618 = vmatpush1.msra.mxu0 %v2617
    %2619 = vmatprep.subr.mxu0 0.0
    %v2620 = vand.u32 %v1919, 4294901760
    %2621 = vmatpush1.msra.mxu0 %v2620
    %2622 = vmatprep.subr.mxu0 0.0
    %v2623 = vand.u32 %v1920, 4294901760
    %2624 = vmatpush1.msra.mxu0 %v2623
    %2625 = vmatprep.subr.mxu0 0.0
    %v2626 = vand.u32 %v1921, 4294901760
    %2627 = vmatpush1.msra.mxu0 %v2626
    %2628 = vmatprep.subr.mxu0 0.0
    %v2629 = vand.u32 %v1922, 4294901760
    %2630 = vmatpush1.msra.mxu0 %v2629
    %2631 = vmatprep.subr.mxu0 0.0
    %v2632 = vand.u32 %v1923, 4294901760
    %2633 = vmatpush1.msra.mxu0 %v2632
    %2634 = vmatprep.subr.mxu0 0.0
    %v2635 = vand.u32 %v1924, 4294901760
    %2636 = vmatpush1.msra.mxu0 %v2635
    %2637 = vmatprep.subr.mxu0 0.0
    %v2638 = vand.u32 %v1925, 4294901760
    %2639 = vmatpush1.msra.mxu0 %v2638
    %2640 = vmatprep.subr.mxu0 0.0
    %v2641 = vand.u32 %v1926, 4294901760
    %2642 = vmatpush1.msra.mxu0 %v2641
    %2643 = vmatprep.subr.mxu0 0.0
    %v2644 = vand.u32 %v1927, 4294901760
    %2645 = vmatpush1.msra.mxu0 %v2644
    %2646 = vmatprep.subr.mxu0 0.0
    %v2647 = vand.u32 %v1928, 4294901760
    %2648 = vmatpush1.msra.mxu0 %v2647
    %2649 = vmatprep.subr.mxu0 0.0
    %v2650 = vand.u32 %v1929, 4294901760
    %2651 = vmatpush1.msra.mxu0 %v2650
    %2652 = vmatprep.subr.mxu0 0.0
    %v2653 = vand.u32 %v1930, 4294901760
    %2654 = vmatpush1.msra.mxu0 %v2653
    %2655 = vmatprep.subr.mxu0 0.0
    %v2656 = vand.u32 %v1931, 4294901760
    %2657 = vmatpush1.msra.mxu0 %v2656
    %2658 = vmatprep.subr.mxu0 0.0
    %v2659 = vand.u32 %v1932, 4294901760
    %2660 = vmatpush1.msra.mxu0 %v2659
    %2661 = vmatprep.subr.mxu0 0.0
    %v2662 = vand.u32 %v1933, 4294901760
    %2663 = vmatpush1.msra.mxu0 %v2662
    %2664 = vmatprep.subr.mxu0 0.0
    %v2665 = vand.u32 %v1934, 4294901760
    %2666 = vmatpush1.msra.mxu0 %v2665
    %2667 = vmatprep.subr.mxu0 0.0
    %v2668 = vand.u32 %v1935, 4294901760
    %2669 = vmatpush1.msra.mxu0 %v2668
    %2670 = vmatprep.subr.mxu0 0.0
    %v2671 = vand.u32 %v1936, 4294901760
    %2672 = vmatpush1.msra.mxu0 %v2671
    %2673 = vmatprep.subr.mxu0 0.0
    %v2674 = vand.u32 %v1937, 4294901760
    %2675 = vmatpush1.msra.mxu0 %v2674
    %2676 = vmatprep.subr.mxu0 0.0
    %v2677 = vand.u32 %v1938, 4294901760
    %2678 = vmatpush1.msra.mxu0 %v2677
    %2679 = vmatprep.subr.mxu0 0.0
    %v2680 = vand.u32 %v1939, 4294901760
    %2681 = vmatpush1.msra.mxu0 %v2680
    %v2682 = vand.u32 %v2095, 4294901760
    %v2683 = vsub.f32 %v2095, %v2682
    %v2684 = vand.u32 %v2683, 4294901760
    %2685 = vmatprep.mubr.f32.mxu0 %v2684
    %v2686 = vand.u32 %v2093, 4294901760
    %v2687 = vsub.f32 %v2093, %v2686
    %v2688 = vand.u32 %v2687, 4294901760
    %2689 = vmatmul.mubr.f32.gmra.mrb[0].mxu0 %v2688
    %v2690 = vpop.f32.mrb[0].mxu0
    %v2691 = vadd.f32 %v2583, %v2690
    %v2692 = vpop.f32.mrb[0].mxu0
    %2693 = vdwg.mxu0
    %2694 = vmatprep.subr.mxu0 0.0
    %v2695 = vand.u32 %v1908, 4294901760
    %v2696 = vsub.f32 %v1908, %v2695
    %v2697 = vand.u32 %v2696, 4294901760
    %2698 = vmatpush1.msra.mxu0 %v2697
    %2699 = vmatprep.subr.mxu0 0.0
    %v2700 = vand.u32 %v1909, 4294901760
    %v2701 = vsub.f32 %v1909, %v2700
    %v2702 = vand.u32 %v2701, 4294901760
    %2703 = vmatpush1.msra.mxu0 %v2702
    %2704 = vmatprep.subr.mxu0 0.0
    %v2705 = vand.u32 %v1910, 4294901760
    %v2706 = vsub.f32 %v1910, %v2705
    %v2707 = vand.u32 %v2706, 4294901760
    %2708 = vmatpush1.msra.mxu0 %v2707
    %2709 = vmatprep.subr.mxu0 0.0
    %v2710 = vand.u32 %v1911, 4294901760
    %v2711 = vsub.f32 %v1911, %v2710
    %v2712 = vand.u32 %v2711, 4294901760
    %2713 = vmatpush1.msra.mxu0 %v2712
    %2714 = vmatprep.subr.mxu0 0.0
    %v2715 = vand.u32 %v1912, 4294901760
    %v2716 = vsub.f32 %v1912, %v2715
    %v2717 = vand.u32 %v2716, 4294901760
    %2718 = vmatpush1.msra.mxu0 %v2717
    %2719 = vmatprep.subr.mxu0 0.0
    %v2720 = vand.u32 %v1913, 4294901760
    %v2721 = vsub.f32 %v1913, %v2720
    %v2722 = vand.u32 %v2721, 4294901760
    %2723 = vmatpush1.msra.mxu0 %v2722
    %2724 = vmatprep.subr.mxu0 0.0
    %v2725 = vand.u32 %v1914, 4294901760
    %v2726 = vsub.f32 %v1914, %v2725
    %v2727 = vand.u32 %v2726, 4294901760
    %2728 = vmatpush1.msra.mxu0 %v2727
    %2729 = vmatprep.subr.mxu0 0.0
    %v2730 = vand.u32 %v1915, 4294901760
    %v2731 = vsub.f32 %v1915, %v2730
    %v2732 = vand.u32 %v2731, 4294901760
    %2733 = vmatpush1.msra.mxu0 %v2732
    %2734 = vmatprep.subr.mxu0 0.0
    %v2735 = vand.u32 %v1916, 4294901760
    %v2736 = vsub.f32 %v1916, %v2735
    %v2737 = vand.u32 %v2736, 4294901760
    %2738 = vmatpush1.msra.mxu0 %v2737
    %2739 = vmatprep.subr.mxu0 0.0
    %v2740 = vand.u32 %v1917, 4294901760
    %v2741 = vsub.f32 %v1917, %v2740
    %v2742 = vand.u32 %v2741, 4294901760
    %2743 = vmatpush1.msra.mxu0 %v2742
    %2744 = vmatprep.subr.mxu0 0.0
    %v2745 = vand.u32 %v1918, 4294901760
    %v2746 = vsub.f32 %v1918, %v2745
    %v2747 = vand.u32 %v2746, 4294901760
    %2748 = vmatpush1.msra.mxu0 %v2747
    %2749 = vmatprep.subr.mxu0 0.0
    %v2750 = vand.u32 %v1919, 4294901760
    %v2751 = vsub.f32 %v1919, %v2750
    %v2752 = vand.u32 %v2751, 4294901760
    %2753 = vmatpush1.msra.mxu0 %v2752
    %2754 = vmatprep.subr.mxu0 0.0
    %v2755 = vand.u32 %v1920, 4294901760
    %v2756 = vsub.f32 %v1920, %v2755
    %v2757 = vand.u32 %v2756, 4294901760
    %2758 = vmatpush1.msra.mxu0 %v2757
    %2759 = vmatprep.subr.mxu0 0.0
    %v2760 = vand.u32 %v1921, 4294901760
    %v2761 = vsub.f32 %v1921, %v2760
    %v2762 = vand.u32 %v2761, 4294901760
    %2763 = vmatpush1.msra.mxu0 %v2762
    %2764 = vmatprep.subr.mxu0 0.0
    %v2765 = vand.u32 %v1922, 4294901760
    %v2766 = vsub.f32 %v1922, %v2765
    %v2767 = vand.u32 %v2766, 4294901760
    %2768 = vmatpush1.msra.mxu0 %v2767
    %2769 = vmatprep.subr.mxu0 0.0
    %v2770 = vand.u32 %v1923, 4294901760
    %v2771 = vsub.f32 %v1923, %v2770
    %v2772 = vand.u32 %v2771, 4294901760
    %2773 = vmatpush1.msra.mxu0 %v2772
    %2774 = vmatprep.subr.mxu0 0.0
    %v2775 = vand.u32 %v1924, 4294901760
    %v2776 = vsub.f32 %v1924, %v2775
    %v2777 = vand.u32 %v2776, 4294901760
    %2778 = vmatpush1.msra.mxu0 %v2777
    %2779 = vmatprep.subr.mxu0 0.0
    %v2780 = vand.u32 %v1925, 4294901760
    %v2781 = vsub.f32 %v1925, %v2780
    %v2782 = vand.u32 %v2781, 4294901760
    %2783 = vmatpush1.msra.mxu0 %v2782
    %2784 = vmatprep.subr.mxu0 0.0
    %v2785 = vand.u32 %v1926, 4294901760
    %v2786 = vsub.f32 %v1926, %v2785
    %v2787 = vand.u32 %v2786, 4294901760
    %2788 = vmatpush1.msra.mxu0 %v2787
    %2789 = vmatprep.subr.mxu0 0.0
    %v2790 = vand.u32 %v1927, 4294901760
    %v2791 = vsub.f32 %v1927, %v2790
    %v2792 = vand.u32 %v2791, 4294901760
    %2793 = vmatpush1.msra.mxu0 %v2792
    %2794 = vmatprep.subr.mxu0 0.0
    %v2795 = vand.u32 %v1928, 4294901760
    %v2796 = vsub.f32 %v1928, %v2795
    %v2797 = vand.u32 %v2796, 4294901760
    %2798 = vmatpush1.msra.mxu0 %v2797
    %2799 = vmatprep.subr.mxu0 0.0
    %v2800 = vand.u32 %v1929, 4294901760
    %v2801 = vsub.f32 %v1929, %v2800
    %v2802 = vand.u32 %v2801, 4294901760
    %2803 = vmatpush1.msra.mxu0 %v2802
    %2804 = vmatprep.subr.mxu0 0.0
    %v2805 = vand.u32 %v1930, 4294901760
    %v2806 = vsub.f32 %v1930, %v2805
    %v2807 = vand.u32 %v2806, 4294901760
    %2808 = vmatpush1.msra.mxu0 %v2807
    %2809 = vmatprep.subr.mxu0 0.0
    %v2810 = vand.u32 %v1931, 4294901760
    %v2811 = vsub.f32 %v1931, %v2810
    %v2812 = vand.u32 %v2811, 4294901760
    %2813 = vmatpush1.msra.mxu0 %v2812
    %2814 = vmatprep.subr.mxu0 0.0
    %v2815 = vand.u32 %v1932, 4294901760
    %v2816 = vsub.f32 %v1932, %v2815
    %v2817 = vand.u32 %v2816, 4294901760
    %2818 = vmatpush1.msra.mxu0 %v2817
    %2819 = vmatprep.subr.mxu0 0.0
    %v2820 = vand.u32 %v1933, 4294901760
    %v2821 = vsub.f32 %v1933, %v2820
    %v2822 = vand.u32 %v2821, 4294901760
    %2823 = vmatpush1.msra.mxu0 %v2822
    %2824 = vmatprep.subr.mxu0 0.0
    %v2825 = vand.u32 %v1934, 4294901760
    %v2826 = vsub.f32 %v1934, %v2825
    %v2827 = vand.u32 %v2826, 4294901760
    %2828 = vmatpush1.msra.mxu0 %v2827
    %2829 = vmatprep.subr.mxu0 0.0
    %v2830 = vand.u32 %v1935, 4294901760
    %v2831 = vsub.f32 %v1935, %v2830
    %v2832 = vand.u32 %v2831, 4294901760
    %2833 = vmatpush1.msra.mxu0 %v2832
    %2834 = vmatprep.subr.mxu0 0.0
    %v2835 = vand.u32 %v1936, 4294901760
    %v2836 = vsub.f32 %v1936, %v2835
    %v2837 = vand.u32 %v2836, 4294901760
    %2838 = vmatpush1.msra.mxu0 %v2837
    %2839 = vmatprep.subr.mxu0 0.0
    %v2840 = vand.u32 %v1937, 4294901760
    %v2841 = vsub.f32 %v1937, %v2840
    %v2842 = vand.u32 %v2841, 4294901760
    %2843 = vmatpush1.msra.mxu0 %v2842
    %2844 = vmatprep.subr.mxu0 0.0
    %v2845 = vand.u32 %v1938, 4294901760
    %v2846 = vsub.f32 %v1938, %v2845
    %v2847 = vand.u32 %v2846, 4294901760
    %2848 = vmatpush1.msra.mxu0 %v2847
    %2849 = vmatprep.subr.mxu0 0.0
    %v2850 = vand.u32 %v1939, 4294901760
    %v2851 = vsub.f32 %v1939, %v2850
    %v2852 = vand.u32 %v2851, 4294901760
    %2853 = vmatpush1.msra.mxu0 %v2852
    %v2854 = vand.u32 %v2095, 4294901760
    %2855 = vmatprep.mubr.f32.mxu0 %v2854
    %v2856 = vand.u32 %v2093, 4294901760
    %2857 = vmatmul.mubr.f32.gmra.mrb[0].mxu0 %v2856
    %v2858 = vpop.f32.mrb[0].mxu0
    %v2859 = vadd.f32 %v2691, %v2858
    %v2860 = vpop.f32.mrb[0].mxu0
    %2861 = vdwg.mxu0
    %2862 = vmatprep.subr.mxu0 0.0
    %v2863 = vand.u32 %v1908, 4294901760
    %2864 = vmatpush1.msra.mxu0 %v2863
    %2865 = vmatprep.subr.mxu0 0.0
    %v2866 = vand.u32 %v1909, 4294901760
    %2867 = vmatpush1.msra.mxu0 %v2866
    %2868 = vmatprep.subr.mxu0 0.0
    %v2869 = vand.u32 %v1910, 4294901760
    %2870 = vmatpush1.msra.mxu0 %v2869
    %2871 = vmatprep.subr.mxu0 0.0
    %v2872 = vand.u32 %v1911, 4294901760
    %2873 = vmatpush1.msra.mxu0 %v2872
    %2874 = vmatprep.subr.mxu0 0.0
    %v2875 = vand.u32 %v1912, 4294901760
    %2876 = vmatpush1.msra.mxu0 %v2875
    %2877 = vmatprep.subr.mxu0 0.0
    %v2878 = vand.u32 %v1913, 4294901760
    %2879 = vmatpush1.msra.mxu0 %v2878
    %2880 = vmatprep.subr.mxu0 0.0
    %v2881 = vand.u32 %v1914, 4294901760
    %2882 = vmatpush1.msra.mxu0 %v2881
    %2883 = vmatprep.subr.mxu0 0.0
    %v2884 = vand.u32 %v1915, 4294901760
    %2885 = vmatpush1.msra.mxu0 %v2884
    %2886 = vmatprep.subr.mxu0 0.0
    %v2887 = vand.u32 %v1916, 4294901760
    %2888 = vmatpush1.msra.mxu0 %v2887
    %2889 = vmatprep.subr.mxu0 0.0
    %v2890 = vand.u32 %v1917, 4294901760
    %2891 = vmatpush1.msra.mxu0 %v2890
    %2892 = vmatprep.subr.mxu0 0.0
    %v2893 = vand.u32 %v1918, 4294901760
    %2894 = vmatpush1.msra.mxu0 %v2893
    %2895 = vmatprep.subr.mxu0 0.0
    %v2896 = vand.u32 %v1919, 4294901760
    %2897 = vmatpush1.msra.mxu0 %v2896
    %2898 = vmatprep.subr.mxu0 0.0
    %v2899 = vand.u32 %v1920, 4294901760
    %2900 = vmatpush1.msra.mxu0 %v2899
    %2901 = vmatprep.subr.mxu0 0.0
    %v2902 = vand.u32 %v1921, 4294901760
    %2903 = vmatpush1.msra.mxu0 %v2902
    %2904 = vmatprep.subr.mxu0 0.0
    %v2905 = vand.u32 %v1922, 4294901760
    %2906 = vmatpush1.msra.mxu0 %v2905
    %2907 = vmatprep.subr.mxu0 0.0
    %v2908 = vand.u32 %v1923, 4294901760
    %2909 = vmatpush1.msra.mxu0 %v2908
    %2910 = vmatprep.subr.mxu0 0.0
    %v2911 = vand.u32 %v1924, 4294901760
    %2912 = vmatpush1.msra.mxu0 %v2911
    %2913 = vmatprep.subr.mxu0 0.0
    %v2914 = vand.u32 %v1925, 4294901760
    %2915 = vmatpush1.msra.mxu0 %v2914
    %2916 = vmatprep.subr.mxu0 0.0
    %v2917 = vand.u32 %v1926, 4294901760
    %2918 = vmatpush1.msra.mxu0 %v2917
    %2919 = vmatprep.subr.mxu0 0.0
    %v2920 = vand.u32 %v1927, 4294901760
    %2921 = vmatpush1.msra.mxu0 %v2920
    %2922 = vmatprep.subr.mxu0 0.0
    %v2923 = vand.u32 %v1928, 4294901760
    %2924 = vmatpush1.msra.mxu0 %v2923
    %2925 = vmatprep.subr.mxu0 0.0
    %v2926 = vand.u32 %v1929, 4294901760
    %2927 = vmatpush1.msra.mxu0 %v2926
    %2928 = vmatprep.subr.mxu0 0.0
    %v2929 = vand.u32 %v1930, 4294901760
    %2930 = vmatpush1.msra.mxu0 %v2929
    %2931 = vmatprep.subr.mxu0 0.0
    %v2932 = vand.u32 %v1931, 4294901760
    %2933 = vmatpush1.msra.mxu0 %v2932
    %2934 = vmatprep.subr.mxu0 0.0
    %v2935 = vand.u32 %v1932, 4294901760
    %2936 = vmatpush1.msra.mxu0 %v2935
    %2937 = vmatprep.subr.mxu0 0.0
    %v2938 = vand.u32 %v1933, 4294901760
    %2939 = vmatpush1.msra.mxu0 %v2938
    %2940 = vmatprep.subr.mxu0 0.0
    %v2941 = vand.u32 %v1934, 4294901760
    %2942 = vmatpush1.msra.mxu0 %v2941
    %2943 = vmatprep.subr.mxu0 0.0
    %v2944 = vand.u32 %v1935, 4294901760
    %2945 = vmatpush1.msra.mxu0 %v2944
    %2946 = vmatprep.subr.mxu0 0.0
    %v2947 = vand.u32 %v1936, 4294901760
    %2948 = vmatpush1.msra.mxu0 %v2947
    %2949 = vmatprep.subr.mxu0 0.0
    %v2950 = vand.u32 %v1937, 4294901760
    %2951 = vmatpush1.msra.mxu0 %v2950
    %2952 = vmatprep.subr.mxu0 0.0
    %v2953 = vand.u32 %v1938, 4294901760
    %2954 = vmatpush1.msra.mxu0 %v2953
    %2955 = vmatprep.subr.mxu0 0.0
    %v2956 = vand.u32 %v1939, 4294901760
    %2957 = vmatpush1.msra.mxu0 %v2956
    %v2958 = vand.u32 %v2095, 4294901760
    %2959 = vmatprep.mubr.f32.mxu0 %v2958
    %v2960 = vand.u32 %v2093, 4294901760
    %2961 = vmatmul.mubr.f32.gmra.mrb[0].mxu0 %v2960
    %v2962 = vpop.f32.mrb[0].mxu0
    %v2963 = vadd.f32 %v2859, %v2962
    %v2964 = vpop.f32.mrb[0].mxu0
    %2965 = vdwg.mxu0
    %2966 = vmatprep.subr.mxu0 0.0
    %v2967 = vand.u32 %v1940, 4294901760
    %2968 = vmatpush1.msra.mxu0 %v2967
    %2969 = vmatprep.subr.mxu0 0.0
    %v2970 = vand.u32 %v1941, 4294901760
    %2971 = vmatpush1.msra.mxu0 %v2970
    %2972 = vmatprep.subr.mxu0 0.0
    %v2973 = vand.u32 %v1942, 4294901760
    %2974 = vmatpush1.msra.mxu0 %v2973
    %2975 = vmatprep.subr.mxu0 0.0
    %v2976 = vand.u32 %v1943, 4294901760
    %2977 = vmatpush1.msra.mxu0 %v2976
    %2978 = vmatprep.subr.mxu0 0.0
    %v2979 = vand.u32 %v1944, 4294901760
    %2980 = vmatpush1.msra.mxu0 %v2979
    %2981 = vmatprep.subr.mxu0 0.0
    %v2982 = vand.u32 %v1945, 4294901760
    %2983 = vmatpush1.msra.mxu0 %v2982
    %2984 = vmatprep.subr.mxu0 0.0
    %v2985 = vand.u32 %v1946, 4294901760
    %2986 = vmatpush1.msra.mxu0 %v2985
    %2987 = vmatprep.subr.mxu0 0.0
    %v2988 = vand.u32 %v1947, 4294901760
    %2989 = vmatpush1.msra.mxu0 %v2988
    %2990 = vmatprep.subr.mxu0 0.0
    %v2991 = vand.u32 %v1948, 4294901760
    %2992 = vmatpush1.msra.mxu0 %v2991
    %2993 = vmatprep.subr.mxu0 0.0
    %v2994 = vand.u32 %v1949, 4294901760
    %2995 = vmatpush1.msra.mxu0 %v2994
    %2996 = vmatprep.subr.mxu0 0.0
    %v2997 = vand.u32 %v1950, 4294901760
    %2998 = vmatpush1.msra.mxu0 %v2997
    %2999 = vmatprep.subr.mxu0 0.0
    %v3000 = vand.u32 %v1951, 4294901760
    %3001 = vmatpush1.msra.mxu0 %v3000
    %3002 = vmatprep.subr.mxu0 0.0
    %v3003 = vand.u32 %v1952, 4294901760
    %3004 = vmatpush1.msra.mxu0 %v3003
    %3005 = vmatprep.subr.mxu0 0.0
    %v3006 = vand.u32 %v1953, 4294901760
    %3007 = vmatpush1.msra.mxu0 %v3006
    %3008 = vmatprep.subr.mxu0 0.0
    %v3009 = vand.u32 %v1954, 4294901760
    %3010 = vmatpush1.msra.mxu0 %v3009
    %3011 = vmatprep.subr.mxu0 0.0
    %v3012 = vand.u32 %v1955, 4294901760
    %3013 = vmatpush1.msra.mxu0 %v3012
    %3014 = vmatprep.subr.mxu0 0.0
    %v3015 = vand.u32 %v1956, 4294901760
    %3016 = vmatpush1.msra.mxu0 %v3015
    %3017 = vmatprep.subr.mxu0 0.0
    %v3018 = vand.u32 %v1957, 4294901760
    %3019 = vmatpush1.msra.mxu0 %v3018
    %3020 = vmatprep.subr.mxu0 0.0
    %v3021 = vand.u32 %v1958, 4294901760
    %3022 = vmatpush1.msra.mxu0 %v3021
    %3023 = vmatprep.subr.mxu0 0.0
    %v3024 = vand.u32 %v1959, 4294901760
    %3025 = vmatpush1.msra.mxu0 %v3024
    %3026 = vmatprep.subr.mxu0 0.0
    %v3027 = vand.u32 %v1960, 4294901760
    %3028 = vmatpush1.msra.mxu0 %v3027
    %3029 = vmatprep.subr.mxu0 0.0
    %v3030 = vand.u32 %v1961, 4294901760
    %3031 = vmatpush1.msra.mxu0 %v3030
    %3032 = vmatprep.subr.mxu0 0.0
    %v3033 = vand.u32 %v1962, 4294901760
    %3034 = vmatpush1.msra.mxu0 %v3033
    %3035 = vmatprep.subr.mxu0 0.0
    %v3036 = vand.u32 %v1963, 4294901760
    %3037 = vmatpush1.msra.mxu0 %v3036
    %3038 = vmatprep.subr.mxu0 0.0
    %v3039 = vand.u32 %v1964, 4294901760
    %3040 = vmatpush1.msra.mxu0 %v3039
    %3041 = vmatprep.subr.mxu0 0.0
    %v3042 = vand.u32 %v1965, 4294901760
    %3043 = vmatpush1.msra.mxu0 %v3042
    %3044 = vmatprep.subr.mxu0 0.0
    %v3045 = vand.u32 %v1966, 4294901760
    %3046 = vmatpush1.msra.mxu0 %v3045
    %3047 = vmatprep.subr.mxu0 0.0
    %v3048 = vand.u32 %v1967, 4294901760
    %3049 = vmatpush1.msra.mxu0 %v3048
    %3050 = vmatprep.subr.mxu0 0.0
    %v3051 = vand.u32 %v1968, 4294901760
    %3052 = vmatpush1.msra.mxu0 %v3051
    %3053 = vmatprep.subr.mxu0 0.0
    %v3054 = vand.u32 %v1969, 4294901760
    %3055 = vmatpush1.msra.mxu0 %v3054
    %3056 = vmatprep.subr.mxu0 0.0
    %v3057 = vand.u32 %v1970, 4294901760
    %3058 = vmatpush1.msra.mxu0 %v3057
    %3059 = vmatprep.subr.mxu0 0.0
    %v3060 = vand.u32 %v1971, 4294901760
    %3061 = vmatpush1.msra.mxu0 %v3060
    %v3062 = vand.u32 %v2099, 4294901760
    %v3063 = vsub.f32 %v2099, %v3062
    %v3064 = vand.u32 %v3063, 4294901760
    %v3065 = vsub.f32 %v3063, %v3064
    %v3066 = vand.u32 %v3065, 4294901760
    %3067 = vmatprep.mubr.f32.mxu0 %v3066
    %v3068 = vand.u32 %v2097, 4294901760
    %v3069 = vsub.f32 %v2097, %v3068
    %v3070 = vand.u32 %v3069, 4294901760
    %v3071 = vsub.f32 %v3069, %v3070
    %v3072 = vand.u32 %v3071, 4294901760
    %3073 = vmatmul.mubr.f32.gmra.mrb[0].mxu0 %v3072
    %v3074 = vpop.f32.mrb[0].mxu0
    %v3075 = vadd.f32 %v2963, %v3074
    %v3076 = vpop.f32.mrb[0].mxu0
    %3077 = vdwg.mxu0
    %3078 = vmatprep.subr.mxu0 0.0
    %v3079 = vand.u32 %v1940, 4294901760
    %v3080 = vsub.f32 %v1940, %v3079
    %v3081 = vand.u32 %v3080, 4294901760
    %v3082 = vsub.f32 %v3080, %v3081
    %v3083 = vand.u32 %v3082, 4294901760
    %3084 = vmatpush1.msra.mxu0 %v3083
    %3085 = vmatprep.subr.mxu0 0.0
    %v3086 = vand.u32 %v1941, 4294901760
    %v3087 = vsub.f32 %v1941, %v3086
    %v3088 = vand.u32 %v3087, 4294901760
    %v3089 = vsub.f32 %v3087, %v3088
    %v3090 = vand.u32 %v3089, 4294901760
    %3091 = vmatpush1.msra.mxu0 %v3090
    %3092 = vmatprep.subr.mxu0 0.0
    %v3093 = vand.u32 %v1942, 4294901760
    %v3094 = vsub.f32 %v1942, %v3093
    %v3095 = vand.u32 %v3094, 4294901760
    %v3096 = vsub.f32 %v3094, %v3095
    %v3097 = vand.u32 %v3096, 4294901760
    %3098 = vmatpush1.msra.mxu0 %v3097
    %3099 = vmatprep.subr.mxu0 0.0
    %v3100 = vand.u32 %v1943, 4294901760
    %v3101 = vsub.f32 %v1943, %v3100
    %v3102 = vand.u32 %v3101, 4294901760
    %v3103 = vsub.f32 %v3101, %v3102
    %v3104 = vand.u32 %v3103, 4294901760
    %3105 = vmatpush1.msra.mxu0 %v3104
    %3106 = vmatprep.subr.mxu0 0.0
    %v3107 = vand.u32 %v1944, 4294901760
    %v3108 = vsub.f32 %v1944, %v3107
    %v3109 = vand.u32 %v3108, 4294901760
    %v3110 = vsub.f32 %v3108, %v3109
    %v3111 = vand.u32 %v3110, 4294901760
    %3112 = vmatpush1.msra.mxu0 %v3111
    %3113 = vmatprep.subr.mxu0 0.0
    %v3114 = vand.u32 %v1945, 4294901760
    %v3115 = vsub.f32 %v1945, %v3114
    %v3116 = vand.u32 %v3115, 4294901760
    %v3117 = vsub.f32 %v3115, %v3116
    %v3118 = vand.u32 %v3117, 4294901760
    %3119 = vmatpush1.msra.mxu0 %v3118
    %3120 = vmatprep.subr.mxu0 0.0
    %v3121 = vand.u32 %v1946, 4294901760
    %v3122 = vsub.f32 %v1946, %v3121
    %v3123 = vand.u32 %v3122, 4294901760
    %v3124 = vsub.f32 %v3122, %v3123
    %v3125 = vand.u32 %v3124, 4294901760
    %3126 = vmatpush1.msra.mxu0 %v3125
    %3127 = vmatprep.subr.mxu0 0.0
    %v3128 = vand.u32 %v1947, 4294901760
    %v3129 = vsub.f32 %v1947, %v3128
    %v3130 = vand.u32 %v3129, 4294901760
    %v3131 = vsub.f32 %v3129, %v3130
    %v3132 = vand.u32 %v3131, 4294901760
    %3133 = vmatpush1.msra.mxu0 %v3132
    %3134 = vmatprep.subr.mxu0 0.0
    %v3135 = vand.u32 %v1948, 4294901760
    %v3136 = vsub.f32 %v1948, %v3135
    %v3137 = vand.u32 %v3136, 4294901760
    %v3138 = vsub.f32 %v3136, %v3137
    %v3139 = vand.u32 %v3138, 4294901760
    %3140 = vmatpush1.msra.mxu0 %v3139
    %3141 = vmatprep.subr.mxu0 0.0
    %v3142 = vand.u32 %v1949, 4294901760
    %v3143 = vsub.f32 %v1949, %v3142
    %v3144 = vand.u32 %v3143, 4294901760
    %v3145 = vsub.f32 %v3143, %v3144
    %v3146 = vand.u32 %v3145, 4294901760
    %3147 = vmatpush1.msra.mxu0 %v3146
    %3148 = vmatprep.subr.mxu0 0.0
    %v3149 = vand.u32 %v1950, 4294901760
    %v3150 = vsub.f32 %v1950, %v3149
    %v3151 = vand.u32 %v3150, 4294901760
    %v3152 = vsub.f32 %v3150, %v3151
    %v3153 = vand.u32 %v3152, 4294901760
    %3154 = vmatpush1.msra.mxu0 %v3153
    %3155 = vmatprep.subr.mxu0 0.0
    %v3156 = vand.u32 %v1951, 4294901760
    %v3157 = vsub.f32 %v1951, %v3156
    %v3158 = vand.u32 %v3157, 4294901760
    %v3159 = vsub.f32 %v3157, %v3158
    %v3160 = vand.u32 %v3159, 4294901760
    %3161 = vmatpush1.msra.mxu0 %v3160
    %3162 = vmatprep.subr.mxu0 0.0
    %v3163 = vand.u32 %v1952, 4294901760
    %v3164 = vsub.f32 %v1952, %v3163
    %v3165 = vand.u32 %v3164, 4294901760
    %v3166 = vsub.f32 %v3164, %v3165
    %v3167 = vand.u32 %v3166, 4294901760
    %3168 = vmatpush1.msra.mxu0 %v3167
    %3169 = vmatprep.subr.mxu0 0.0
    %v3170 = vand.u32 %v1953, 4294901760
    %v3171 = vsub.f32 %v1953, %v3170
    %v3172 = vand.u32 %v3171, 4294901760
    %v3173 = vsub.f32 %v3171, %v3172
    %v3174 = vand.u32 %v3173, 4294901760
    %3175 = vmatpush1.msra.mxu0 %v3174
    %3176 = vmatprep.subr.mxu0 0.0
    %v3177 = vand.u32 %v1954, 4294901760
    %v3178 = vsub.f32 %v1954, %v3177
    %v3179 = vand.u32 %v3178, 4294901760
    %v3180 = vsub.f32 %v3178, %v3179
    %v3181 = vand.u32 %v3180, 4294901760
    %3182 = vmatpush1.msra.mxu0 %v3181
    %3183 = vmatprep.subr.mxu0 0.0
    %v3184 = vand.u32 %v1955, 4294901760
    %v3185 = vsub.f32 %v1955, %v3184
    %v3186 = vand.u32 %v3185, 4294901760
    %v3187 = vsub.f32 %v3185, %v3186
    %v3188 = vand.u32 %v3187, 4294901760
    %3189 = vmatpush1.msra.mxu0 %v3188
    %3190 = vmatprep.subr.mxu0 0.0
    %v3191 = vand.u32 %v1956, 4294901760
    %v3192 = vsub.f32 %v1956, %v3191
    %v3193 = vand.u32 %v3192, 4294901760
    %v3194 = vsub.f32 %v3192, %v3193
    %v3195 = vand.u32 %v3194, 4294901760
    %3196 = vmatpush1.msra.mxu0 %v3195
    %3197 = vmatprep.subr.mxu0 0.0
    %v3198 = vand.u32 %v1957, 4294901760
    %v3199 = vsub.f32 %v1957, %v3198
    %v3200 = vand.u32 %v3199, 4294901760
    %v3201 = vsub.f32 %v3199, %v3200
    %v3202 = vand.u32 %v3201, 4294901760
    %3203 = vmatpush1.msra.mxu0 %v3202
    %3204 = vmatprep.subr.mxu0 0.0
    %v3205 = vand.u32 %v1958, 4294901760
    %v3206 = vsub.f32 %v1958, %v3205
    %v3207 = vand.u32 %v3206, 4294901760
    %v3208 = vsub.f32 %v3206, %v3207
    %v3209 = vand.u32 %v3208, 4294901760
    %3210 = vmatpush1.msra.mxu0 %v3209
    %3211 = vmatprep.subr.mxu0 0.0
    %v3212 = vand.u32 %v1959, 4294901760
    %v3213 = vsub.f32 %v1959, %v3212
    %v3214 = vand.u32 %v3213, 4294901760
    %v3215 = vsub.f32 %v3213, %v3214
    %v3216 = vand.u32 %v3215, 4294901760
    %3217 = vmatpush1.msra.mxu0 %v3216
    %3218 = vmatprep.subr.mxu0 0.0
    %v3219 = vand.u32 %v1960, 4294901760
    %v3220 = vsub.f32 %v1960, %v3219
    %v3221 = vand.u32 %v3220, 4294901760
    %v3222 = vsub.f32 %v3220, %v3221
    %v3223 = vand.u32 %v3222, 4294901760
    %3224 = vmatpush1.msra.mxu0 %v3223
    %3225 = vmatprep.subr.mxu0 0.0
    %v3226 = vand.u32 %v1961, 4294901760
    %v3227 = vsub.f32 %v1961, %v3226
    %v3228 = vand.u32 %v3227, 4294901760
    %v3229 = vsub.f32 %v3227, %v3228
    %v3230 = vand.u32 %v3229, 4294901760
    %3231 = vmatpush1.msra.mxu0 %v3230
    %3232 = vmatprep.subr.mxu0 0.0
    %v3233 = vand.u32 %v1962, 4294901760
    %v3234 = vsub.f32 %v1962, %v3233
    %v3235 = vand.u32 %v3234, 4294901760
    %v3236 = vsub.f32 %v3234, %v3235
    %v3237 = vand.u32 %v3236, 4294901760
    %3238 = vmatpush1.msra.mxu0 %v3237
    %3239 = vmatprep.subr.mxu0 0.0
    %v3240 = vand.u32 %v1963, 4294901760
    %v3241 = vsub.f32 %v1963, %v3240
    %v3242 = vand.u32 %v3241, 4294901760
    %v3243 = vsub.f32 %v3241, %v3242
    %v3244 = vand.u32 %v3243, 4294901760
    %3245 = vmatpush1.msra.mxu0 %v3244
    %3246 = vmatprep.subr.mxu0 0.0
    %v3247 = vand.u32 %v1964, 4294901760
    %v3248 = vsub.f32 %v1964, %v3247
    %v3249 = vand.u32 %v3248, 4294901760
    %v3250 = vsub.f32 %v3248, %v3249
    %v3251 = vand.u32 %v3250, 4294901760
    %3252 = vmatpush1.msra.mxu0 %v3251
    %3253 = vmatprep.subr.mxu0 0.0
    %v3254 = vand.u32 %v1965, 4294901760
    %v3255 = vsub.f32 %v1965, %v3254
    %v3256 = vand.u32 %v3255, 4294901760
    %v3257 = vsub.f32 %v3255, %v3256
    %v3258 = vand.u32 %v3257, 4294901760
    %3259 = vmatpush1.msra.mxu0 %v3258
    %3260 = vmatprep.subr.mxu0 0.0
    %v3261 = vand.u32 %v1966, 4294901760
    %v3262 = vsub.f32 %v1966, %v3261
    %v3263 = vand.u32 %v3262, 4294901760
    %v3264 = vsub.f32 %v3262, %v3263
    %v3265 = vand.u32 %v3264, 4294901760
    %3266 = vmatpush1.msra.mxu0 %v3265
    %3267 = vmatprep.subr.mxu0 0.0
    %v3268 = vand.u32 %v1967, 4294901760
    %v3269 = vsub.f32 %v1967, %v3268
    %v3270 = vand.u32 %v3269, 4294901760
    %v3271 = vsub.f32 %v3269, %v3270
    %v3272 = vand.u32 %v3271, 4294901760
    %3273 = vmatpush1.msra.mxu0 %v3272
    %3274 = vmatprep.subr.mxu0 0.0
    %v3275 = vand.u32 %v1968, 4294901760
    %v3276 = vsub.f32 %v1968, %v3275
    %v3277 = vand.u32 %v3276, 4294901760
    %v3278 = vsub.f32 %v3276, %v3277
    %v3279 = vand.u32 %v3278, 4294901760
    %3280 = vmatpush1.msra.mxu0 %v3279
    %3281 = vmatprep.subr.mxu0 0.0
    %v3282 = vand.u32 %v1969, 4294901760
    %v3283 = vsub.f32 %v1969, %v3282
    %v3284 = vand.u32 %v3283, 4294901760
    %v3285 = vsub.f32 %v3283, %v3284
    %v3286 = vand.u32 %v3285, 4294901760
    %3287 = vmatpush1.msra.mxu0 %v3286
    %3288 = vmatprep.subr.mxu0 0.0
    %v3289 = vand.u32 %v1970, 4294901760
    %v3290 = vsub.f32 %v1970, %v3289
    %v3291 = vand.u32 %v3290, 4294901760
    %v3292 = vsub.f32 %v3290, %v3291
    %v3293 = vand.u32 %v3292, 4294901760
    %3294 = vmatpush1.msra.mxu0 %v3293
    %3295 = vmatprep.subr.mxu0 0.0
    %v3296 = vand.u32 %v1971, 4294901760
    %v3297 = vsub.f32 %v1971, %v3296
    %v3298 = vand.u32 %v3297, 4294901760
    %v3299 = vsub.f32 %v3297, %v3298
    %v3300 = vand.u32 %v3299, 4294901760
    %3301 = vmatpush1.msra.mxu0 %v3300
    %v3302 = vand.u32 %v2099, 4294901760
    %3303 = vmatprep.mubr.f32.mxu0 %v3302
    %v3304 = vand.u32 %v2097, 4294901760
    %3305 = vmatmul.mubr.f32.gmra.mrb[0].mxu0 %v3304
    %v3306 = vpop.f32.mrb[0].mxu0
    %v3307 = vadd.f32 %v3075, %v3306
    %v3308 = vpop.f32.mrb[0].mxu0
    %3309 = vdwg.mxu0
    %3310 = vmatprep.subr.mxu0 0.0
    %v3311 = vand.u32 %v1940, 4294901760
    %v3312 = vsub.f32 %v1940, %v3311
    %3313 = vmatpush1.msra.mxu0 %v3312
    %3314 = vmatprep.subr.mxu0 0.0
    %v3315 = vand.u32 %v1941, 4294901760
    %v3316 = vsub.f32 %v1941, %v3315
    %3317 = vmatpush1.msra.mxu0 %v3316
    %3318 = vmatprep.subr.mxu0 0.0
    %v3319 = vand.u32 %v1942, 4294901760
    %v3320 = vsub.f32 %v1942, %v3319
    %3321 = vmatpush1.msra.mxu0 %v3320
    %3322 = vmatprep.subr.mxu0 0.0
    %v3323 = vand.u32 %v1943, 4294901760
    %v3324 = vsub.f32 %v1943, %v3323
    %3325 = vmatpush1.msra.mxu0 %v3324
    %3326 = vmatprep.subr.mxu0 0.0
    %v3327 = vand.u32 %v1944, 4294901760
    %v3328 = vsub.f32 %v1944, %v3327
    %3329 = vmatpush1.msra.mxu0 %v3328
    %3330 = vmatprep.subr.mxu0 0.0
    %v3331 = vand.u32 %v1945, 4294901760
    %v3332 = vsub.f32 %v1945, %v3331
    %3333 = vmatpush1.msra.mxu0 %v3332
    %3334 = vmatprep.subr.mxu0 0.0
    %v3335 = vand.u32 %v1946, 4294901760
    %v3336 = vsub.f32 %v1946, %v3335
    %3337 = vmatpush1.msra.mxu0 %v3336
    %3338 = vmatprep.subr.mxu0 0.0
    %v3339 = vand.u32 %v1947, 4294901760
    %v3340 = vsub.f32 %v1947, %v3339
    %3341 = vmatpush1.msra.mxu0 %v3340
    %3342 = vmatprep.subr.mxu0 0.0
    %v3343 = vand.u32 %v1948, 4294901760
    %v3344 = vsub.f32 %v1948, %v3343
    %3345 = vmatpush1.msra.mxu0 %v3344
    %3346 = vmatprep.subr.mxu0 0.0
    %v3347 = vand.u32 %v1949, 4294901760
    %v3348 = vsub.f32 %v1949, %v3347
    %3349 = vmatpush1.msra.mxu0 %v3348
    %3350 = vmatprep.subr.mxu0 0.0
    %v3351 = vand.u32 %v1950, 4294901760
    %v3352 = vsub.f32 %v1950, %v3351
    %3353 = vmatpush1.msra.mxu0 %v3352
    %3354 = vmatprep.subr.mxu0 0.0
    %v3355 = vand.u32 %v1951, 4294901760
    %v3356 = vsub.f32 %v1951, %v3355
    %3357 = vmatpush1.msra.mxu0 %v3356
    %3358 = vmatprep.subr.mxu0 0.0
    %v3359 = vand.u32 %v1952, 4294901760
    %v3360 = vsub.f32 %v1952, %v3359
    %3361 = vmatpush1.msra.mxu0 %v3360
    %3362 = vmatprep.subr.mxu0 0.0
    %v3363 = vand.u32 %v1953, 4294901760
    %v3364 = vsub.f32 %v1953, %v3363
    %3365 = vmatpush1.msra.mxu0 %v3364
    %3366 = vmatprep.subr.mxu0 0.0
    %v3367 = vand.u32 %v1954, 4294901760
    %v3368 = vsub.f32 %v1954, %v3367
    %3369 = vmatpush1.msra.mxu0 %v3368
    %3370 = vmatprep.subr.mxu0 0.0
    %v3371 = vand.u32 %v1955, 4294901760
    %v3372 = vsub.f32 %v1955, %v3371
    %3373 = vmatpush1.msra.mxu0 %v3372
    %3374 = vmatprep.subr.mxu0 0.0
    %v3375 = vand.u32 %v1956, 4294901760
    %v3376 = vsub.f32 %v1956, %v3375
    %3377 = vmatpush1.msra.mxu0 %v3376
    %3378 = vmatprep.subr.mxu0 0.0
    %v3379 = vand.u32 %v1957, 4294901760
    %v3380 = vsub.f32 %v1957, %v3379
    %3381 = vmatpush1.msra.mxu0 %v3380
    %3382 = vmatprep.subr.mxu0 0.0
    %v3383 = vand.u32 %v1958, 4294901760
    %v3384 = vsub.f32 %v1958, %v3383
    %3385 = vmatpush1.msra.mxu0 %v3384
    %3386 = vmatprep.subr.mxu0 0.0
    %v3387 = vand.u32 %v1959, 4294901760
    %v3388 = vsub.f32 %v1959, %v3387
    %3389 = vmatpush1.msra.mxu0 %v3388
    %3390 = vmatprep.subr.mxu0 0.0
    %v3391 = vand.u32 %v1960, 4294901760
    %v3392 = vsub.f32 %v1960, %v3391
    %3393 = vmatpush1.msra.mxu0 %v3392
    %3394 = vmatprep.subr.mxu0 0.0
    %v3395 = vand.u32 %v1961, 4294901760
    %v3396 = vsub.f32 %v1961, %v3395
    %3397 = vmatpush1.msra.mxu0 %v3396
    %3398 = vmatprep.subr.mxu0 0.0
    %v3399 = vand.u32 %v1962, 4294901760
    %v3400 = vsub.f32 %v1962, %v3399
    %3401 = vmatpush1.msra.mxu0 %v3400
    %3402 = vmatprep.subr.mxu0 0.0
    %v3403 = vand.u32 %v1963, 4294901760
    %v3404 = vsub.f32 %v1963, %v3403
    %3405 = vmatpush1.msra.mxu0 %v3404
    %3406 = vmatprep.subr.mxu0 0.0
    %v3407 = vand.u32 %v1964, 4294901760
    %v3408 = vsub.f32 %v1964, %v3407
    %3409 = vmatpush1.msra.mxu0 %v3408
    %3410 = vmatprep.subr.mxu0 0.0
    %v3411 = vand.u32 %v1965, 4294901760
    %v3412 = vsub.f32 %v1965, %v3411
    %3413 = vmatpush1.msra.mxu0 %v3412
    %3414 = vmatprep.subr.mxu0 0.0
    %v3415 = vand.u32 %v1966, 4294901760
    %v3416 = vsub.f32 %v1966, %v3415
    %3417 = vmatpush1.msra.mxu0 %v3416
    %3418 = vmatprep.subr.mxu0 0.0
    %v3419 = vand.u32 %v1967, 4294901760
    %v3420 = vsub.f32 %v1967, %v3419
    %3421 = vmatpush1.msra.mxu0 %v3420
    %3422 = vmatprep.subr.mxu0 0.0
    %v3423 = vand.u32 %v1968, 4294901760
    %v3424 = vsub.f32 %v1968, %v3423
    %3425 = vmatpush1.msra.mxu0 %v3424
    %3426 = vmatprep.subr.mxu0 0.0
    %v3427 = vand.u32 %v1969, 4294901760
    %v3428 = vsub.f32 %v1969, %v3427
    %3429 = vmatpush1.msra.mxu0 %v3428
    %3430 = vmatprep.subr.mxu0 0.0
    %v3431 = vand.u32 %v1970, 4294901760
    %v3432 = vsub.f32 %v1970, %v3431
    %3433 = vmatpush1.msra.mxu0 %v3432
    %3434 = vmatprep.subr.mxu0 0.0
    %v3435 = vand.u32 %v1971, 4294901760
    %v3436 = vsub.f32 %v1971, %v3435
    %3437 = vmatpush1.msra.mxu0 %v3436
    %v3438 = vand.u32 %v2099, 4294901760
    %v3439 = vsub.f32 %v2099, %v3438
    %3440 = vmatprep.mubr.f32.mxu0 %v3439
    %v3441 = vand.u32 %v2097, 4294901760
    %v3442 = vsub.f32 %v2097, %v3441
    %3443 = vmatmul.mubr.f32.gmra.mrb[0].mxu0 %v3442
    %v3444 = vpop.f32.mrb[0].mxu0
    %v3445 = vadd.f32 %v3307, %v3444
    %v3446 = vpop.f32.mrb[0].mxu0
    %3447 = vdwg.mxu0
    %3448 = vmatprep.subr.mxu0 0.0
    %v3449 = vand.u32 %v1940, 4294901760
    %3450 = vmatpush1.msra.mxu0 %v3449
    %3451 = vmatprep.subr.mxu0 0.0
    %v3452 = vand.u32 %v1941, 4294901760
    %3453 = vmatpush1.msra.mxu0 %v3452
    %3454 = vmatprep.subr.mxu0 0.0
    %v3455 = vand.u32 %v1942, 4294901760
    %3456 = vmatpush1.msra.mxu0 %v3455
    %3457 = vmatprep.subr.mxu0 0.0
    %v3458 = vand.u32 %v1943, 4294901760
    %3459 = vmatpush1.msra.mxu0 %v3458
    %3460 = vmatprep.subr.mxu0 0.0
    %v3461 = vand.u32 %v1944, 4294901760
    %3462 = vmatpush1.msra.mxu0 %v3461
    %3463 = vmatprep.subr.mxu0 0.0
    %v3464 = vand.u32 %v1945, 4294901760
    %3465 = vmatpush1.msra.mxu0 %v3464
    %3466 = vmatprep.subr.mxu0 0.0
    %v3467 = vand.u32 %v1946, 4294901760
    %3468 = vmatpush1.msra.mxu0 %v3467
    %3469 = vmatprep.subr.mxu0 0.0
    %v3470 = vand.u32 %v1947, 4294901760
    %3471 = vmatpush1.msra.mxu0 %v3470
    %3472 = vmatprep.subr.mxu0 0.0
    %v3473 = vand.u32 %v1948, 4294901760
    %3474 = vmatpush1.msra.mxu0 %v3473
    %3475 = vmatprep.subr.mxu0 0.0
    %v3476 = vand.u32 %v1949, 4294901760
    %3477 = vmatpush1.msra.mxu0 %v3476
    %3478 = vmatprep.subr.mxu0 0.0
    %v3479 = vand.u32 %v1950, 4294901760
    %3480 = vmatpush1.msra.mxu0 %v3479
    %3481 = vmatprep.subr.mxu0 0.0
    %v3482 = vand.u32 %v1951, 4294901760
    %3483 = vmatpush1.msra.mxu0 %v3482
    %3484 = vmatprep.subr.mxu0 0.0
    %v3485 = vand.u32 %v1952, 4294901760
    %3486 = vmatpush1.msra.mxu0 %v3485
    %3487 = vmatprep.subr.mxu0 0.0
    %v3488 = vand.u32 %v1953, 4294901760
    %3489 = vmatpush1.msra.mxu0 %v3488
    %3490 = vmatprep.subr.mxu0 0.0
    %v3491 = vand.u32 %v1954, 4294901760
    %3492 = vmatpush1.msra.mxu0 %v3491
    %3493 = vmatprep.subr.mxu0 0.0
    %v3494 = vand.u32 %v1955, 4294901760
    %3495 = vmatpush1.msra.mxu0 %v3494
    %3496 = vmatprep.subr.mxu0 0.0
    %v3497 = vand.u32 %v1956, 4294901760
    %3498 = vmatpush1.msra.mxu0 %v3497
    %3499 = vmatprep.subr.mxu0 0.0
    %v3500 = vand.u32 %v1957, 4294901760
    %3501 = vmatpush1.msra.mxu0 %v3500
    %3502 = vmatprep.subr.mxu0 0.0
    %v3503 = vand.u32 %v1958, 4294901760
    %3504 = vmatpush1.msra.mxu0 %v3503
    %3505 = vmatprep.subr.mxu0 0.0
    %v3506 = vand.u32 %v1959, 4294901760
    %3507 = vmatpush1.msra.mxu0 %v3506
    %3508 = vmatprep.subr.mxu0 0.0
    %v3509 = vand.u32 %v1960, 4294901760
    %3510 = vmatpush1.msra.mxu0 %v3509
    %3511 = vmatprep.subr.mxu0 0.0
    %v3512 = vand.u32 %v1961, 4294901760
    %3513 = vmatpush1.msra.mxu0 %v3512
    %3514 = vmatprep.subr.mxu0 0.0
    %v3515 = vand.u32 %v1962, 4294901760
    %3516 = vmatpush1.msra.mxu0 %v3515
    %3517 = vmatprep.subr.mxu0 0.0
    %v3518 = vand.u32 %v1963, 4294901760
    %3519 = vmatpush1.msra.mxu0 %v3518
    %3520 = vmatprep.subr.mxu0 0.0
    %v3521 = vand.u32 %v1964, 4294901760
    %3522 = vmatpush1.msra.mxu0 %v3521
    %3523 = vmatprep.subr.mxu0 0.0
    %v3524 = vand.u32 %v1965, 4294901760
    %3525 = vmatpush1.msra.mxu0 %v3524
    %3526 = vmatprep.subr.mxu0 0.0
    %v3527 = vand.u32 %v1966, 4294901760
    %3528 = vmatpush1.msra.mxu0 %v3527
    %3529 = vmatprep.subr.mxu0 0.0
    %v3530 = vand.u32 %v1967, 4294901760
    %3531 = vmatpush1.msra.mxu0 %v3530
    %3532 = vmatprep.subr.mxu0 0.0
    %v3533 = vand.u32 %v1968, 4294901760
    %3534 = vmatpush1.msra.mxu0 %v3533
    %3535 = vmatprep.subr.mxu0 0.0
    %v3536 = vand.u32 %v1969, 4294901760
    %3537 = vmatpush1.msra.mxu0 %v3536
    %3538 = vmatprep.subr.mxu0 0.0
    %v3539 = vand.u32 %v1970, 4294901760
    %3540 = vmatpush1.msra.mxu0 %v3539
    %3541 = vmatprep.subr.mxu0 0.0
    %v3542 = vand.u32 %v1971, 4294901760
    %3543 = vmatpush1.msra.mxu0 %v3542
    %v3544 = vand.u32 %v2099, 4294901760
    %v3545 = vsub.f32 %v2099, %v3544
    %v3546 = vand.u32 %v3545, 4294901760
    %3547 = vmatprep.mubr.f32.mxu0 %v3546
    %v3548 = vand.u32 %v2097, 4294901760
    %v3549 = vsub.f32 %v2097, %v3548
    %v3550 = vand.u32 %v3549, 4294901760
    %3551 = vmatmul.mubr.f32.gmra.mrb[0].mxu0 %v3550
    %v3552 = vpop.f32.mrb[0].mxu0
    %v3553 = vadd.f32 %v3445, %v3552
    %v3554 = vpop.f32.mrb[0].mxu0
    %3555 = vdwg.mxu0
    %3556 = vmatprep.subr.mxu0 0.0
    %v3557 = vand.u32 %v1940, 4294901760
    %v3558 = vsub.f32 %v1940, %v3557
    %v3559 = vand.u32 %v3558, 4294901760
    %3560 = vmatpush1.msra.mxu0 %v3559
    %3561 = vmatprep.subr.mxu0 0.0
    %v3562 = vand.u32 %v1941, 4294901760
    %v3563 = vsub.f32 %v1941, %v3562
    %v3564 = vand.u32 %v3563, 4294901760
    %3565 = vmatpush1.msra.mxu0 %v3564
    %3566 = vmatprep.subr.mxu0 0.0
    %v3567 = vand.u32 %v1942, 4294901760
    %v3568 = vsub.f32 %v1942, %v3567
    %v3569 = vand.u32 %v3568, 4294901760
    %3570 = vmatpush1.msra.mxu0 %v3569
    %3571 = vmatprep.subr.mxu0 0.0
    %v3572 = vand.u32 %v1943, 4294901760
    %v3573 = vsub.f32 %v1943, %v3572
    %v3574 = vand.u32 %v3573, 4294901760
    %3575 = vmatpush1.msra.mxu0 %v3574
    %3576 = vmatprep.subr.mxu0 0.0
    %v3577 = vand.u32 %v1944, 4294901760
    %v3578 = vsub.f32 %v1944, %v3577
    %v3579 = vand.u32 %v3578, 4294901760
    %3580 = vmatpush1.msra.mxu0 %v3579
    %3581 = vmatprep.subr.mxu0 0.0
    %v3582 = vand.u32 %v1945, 4294901760
    %v3583 = vsub.f32 %v1945, %v3582
    %v3584 = vand.u32 %v3583, 4294901760
    %3585 = vmatpush1.msra.mxu0 %v3584
    %3586 = vmatprep.subr.mxu0 0.0
    %v3587 = vand.u32 %v1946, 4294901760
    %v3588 = vsub.f32 %v1946, %v3587
    %v3589 = vand.u32 %v3588, 4294901760
    %3590 = vmatpush1.msra.mxu0 %v3589
    %3591 = vmatprep.subr.mxu0 0.0
    %v3592 = vand.u32 %v1947, 4294901760
    %v3593 = vsub.f32 %v1947, %v3592
    %v3594 = vand.u32 %v3593, 4294901760
    %3595 = vmatpush1.msra.mxu0 %v3594
    %3596 = vmatprep.subr.mxu0 0.0
    %v3597 = vand.u32 %v1948, 4294901760
    %v3598 = vsub.f32 %v1948, %v3597
    %v3599 = vand.u32 %v3598, 4294901760
    %3600 = vmatpush1.msra.mxu0 %v3599
    %3601 = vmatprep.subr.mxu0 0.0
    %v3602 = vand.u32 %v1949, 4294901760
    %v3603 = vsub.f32 %v1949, %v3602
    %v3604 = vand.u32 %v3603, 4294901760
    %3605 = vmatpush1.msra.mxu0 %v3604
    %3606 = vmatprep.subr.mxu0 0.0
    %v3607 = vand.u32 %v1950, 4294901760
    %v3608 = vsub.f32 %v1950, %v3607
    %v3609 = vand.u32 %v3608, 4294901760
    %3610 = vmatpush1.msra.mxu0 %v3609
    %3611 = vmatprep.subr.mxu0 0.0
    %v3612 = vand.u32 %v1951, 4294901760
    %v3613 = vsub.f32 %v1951, %v3612
    %v3614 = vand.u32 %v3613, 4294901760
    %3615 = vmatpush1.msra.mxu0 %v3614
    %3616 = vmatprep.subr.mxu0 0.0
    %v3617 = vand.u32 %v1952, 4294901760
    %v3618 = vsub.f32 %v1952, %v3617
    %v3619 = vand.u32 %v3618, 4294901760
    %3620 = vmatpush1.msra.mxu0 %v3619
    %3621 = vmatprep.subr.mxu0 0.0
    %v3622 = vand.u32 %v1953, 4294901760
    %v3623 = vsub.f32 %v1953, %v3622
    %v3624 = vand.u32 %v3623, 4294901760
    %3625 = vmatpush1.msra.mxu0 %v3624
    %3626 = vmatprep.subr.mxu0 0.0
    %v3627 = vand.u32 %v1954, 4294901760
    %v3628 = vsub.f32 %v1954, %v3627
    %v3629 = vand.u32 %v3628, 4294901760
    %3630 = vmatpush1.msra.mxu0 %v3629
    %3631 = vmatprep.subr.mxu0 0.0
    %v3632 = vand.u32 %v1955, 4294901760
    %v3633 = vsub.f32 %v1955, %v3632
    %v3634 = vand.u32 %v3633, 4294901760
    %3635 = vmatpush1.msra.mxu0 %v3634
    %3636 = vmatprep.subr.mxu0 0.0
    %v3637 = vand.u32 %v1956, 4294901760
    %v3638 = vsub.f32 %v1956, %v3637
    %v3639 = vand.u32 %v3638, 4294901760
    %3640 = vmatpush1.msra.mxu0 %v3639
    %3641 = vmatprep.subr.mxu0 0.0
    %v3642 = vand.u32 %v1957, 4294901760
    %v3643 = vsub.f32 %v1957, %v3642
    %v3644 = vand.u32 %v3643, 4294901760
    %3645 = vmatpush1.msra.mxu0 %v3644
    %3646 = vmatprep.subr.mxu0 0.0
    %v3647 = vand.u32 %v1958, 4294901760
    %v3648 = vsub.f32 %v1958, %v3647
    %v3649 = vand.u32 %v3648, 4294901760
    %3650 = vmatpush1.msra.mxu0 %v3649
    %3651 = vmatprep.subr.mxu0 0.0
    %v3652 = vand.u32 %v1959, 4294901760
    %v3653 = vsub.f32 %v1959, %v3652
    %v3654 = vand.u32 %v3653, 4294901760
    %3655 = vmatpush1.msra.mxu0 %v3654
    %3656 = vmatprep.subr.mxu0 0.0
    %v3657 = vand.u32 %v1960, 4294901760
    %v3658 = vsub.f32 %v1960, %v3657
    %v3659 = vand.u32 %v3658, 4294901760
    %3660 = vmatpush1.msra.mxu0 %v3659
    %3661 = vmatprep.subr.mxu0 0.0
    %v3662 = vand.u32 %v1961, 4294901760
    %v3663 = vsub.f32 %v1961, %v3662
    %v3664 = vand.u32 %v3663, 4294901760
    %3665 = vmatpush1.msra.mxu0 %v3664
    %3666 = vmatprep.subr.mxu0 0.0
    %v3667 = vand.u32 %v1962, 4294901760
    %v3668 = vsub.f32 %v1962, %v3667
    %v3669 = vand.u32 %v3668, 4294901760
    %3670 = vmatpush1.msra.mxu0 %v3669
    %3671 = vmatprep.subr.mxu0 0.0
    %v3672 = vand.u32 %v1963, 4294901760
    %v3673 = vsub.f32 %v1963, %v3672
    %v3674 = vand.u32 %v3673, 4294901760
    %3675 = vmatpush1.msra.mxu0 %v3674
    %3676 = vmatprep.subr.mxu0 0.0
    %v3677 = vand.u32 %v1964, 4294901760
    %v3678 = vsub.f32 %v1964, %v3677
    %v3679 = vand.u32 %v3678, 4294901760
    %3680 = vmatpush1.msra.mxu0 %v3679
    %3681 = vmatprep.subr.mxu0 0.0
    %v3682 = vand.u32 %v1965, 4294901760
    %v3683 = vsub.f32 %v1965, %v3682
    %v3684 = vand.u32 %v3683, 4294901760
    %3685 = vmatpush1.msra.mxu0 %v3684
    %3686 = vmatprep.subr.mxu0 0.0
    %v3687 = vand.u32 %v1966, 4294901760
    %v3688 = vsub.f32 %v1966, %v3687
    %v3689 = vand.u32 %v3688, 4294901760
    %3690 = vmatpush1.msra.mxu0 %v3689
    %3691 = vmatprep.subr.mxu0 0.0
    %v3692 = vand.u32 %v1967, 4294901760
    %v3693 = vsub.f32 %v1967, %v3692
    %v3694 = vand.u32 %v3693, 4294901760
    %3695 = vmatpush1.msra.mxu0 %v3694
    %3696 = vmatprep.subr.mxu0 0.0
    %v3697 = vand.u32 %v1968, 4294901760
    %v3698 = vsub.f32 %v1968, %v3697
    %v3699 = vand.u32 %v3698, 4294901760
    %3700 = vmatpush1.msra.mxu0 %v3699
    %3701 = vmatprep.subr.mxu0 0.0
    %v3702 = vand.u32 %v1969, 4294901760
    %v3703 = vsub.f32 %v1969, %v3702
    %v3704 = vand.u32 %v3703, 4294901760
    %3705 = vmatpush1.msra.mxu0 %v3704
    %3706 = vmatprep.subr.mxu0 0.0
    %v3707 = vand.u32 %v1970, 4294901760
    %v3708 = vsub.f32 %v1970, %v3707
    %v3709 = vand.u32 %v3708, 4294901760
    %3710 = vmatpush1.msra.mxu0 %v3709
    %3711 = vmatprep.subr.mxu0 0.0
    %v3712 = vand.u32 %v1971, 4294901760
    %v3713 = vsub.f32 %v1971, %v3712
    %v3714 = vand.u32 %v3713, 4294901760
    %3715 = vmatpush1.msra.mxu0 %v3714
    %v3716 = vand.u32 %v2099, 4294901760
    %3717 = vmatprep.mubr.f32.mxu0 %v3716
    %v3718 = vand.u32 %v2097, 4294901760
    %3719 = vmatmul.mubr.f32.gmra.mrb[0].mxu0 %v3718
    %v3720 = vpop.f32.mrb[0].mxu0
    %v3721 = vadd.f32 %v3553, %v3720
    %v3722 = vpop.f32.mrb[0].mxu0
    %3723 = vdwg.mxu0
    %3724 = vmatprep.subr.mxu0 0.0
    %v3725 = vand.u32 %v1940, 4294901760
    %3726 = vmatpush1.msra.mxu0 %v3725
    %3727 = vmatprep.subr.mxu0 0.0
    %v3728 = vand.u32 %v1941, 4294901760
    %3729 = vmatpush1.msra.mxu0 %v3728
    %3730 = vmatprep.subr.mxu0 0.0
    %v3731 = vand.u32 %v1942, 4294901760
    %3732 = vmatpush1.msra.mxu0 %v3731
    %3733 = vmatprep.subr.mxu0 0.0
    %v3734 = vand.u32 %v1943, 4294901760
    %3735 = vmatpush1.msra.mxu0 %v3734
    %3736 = vmatprep.subr.mxu0 0.0
    %v3737 = vand.u32 %v1944, 4294901760
    %3738 = vmatpush1.msra.mxu0 %v3737
    %3739 = vmatprep.subr.mxu0 0.0
    %v3740 = vand.u32 %v1945, 4294901760
    %3741 = vmatpush1.msra.mxu0 %v3740
    %3742 = vmatprep.subr.mxu0 0.0
    %v3743 = vand.u32 %v1946, 4294901760
    %3744 = vmatpush1.msra.mxu0 %v3743
    %3745 = vmatprep.subr.mxu0 0.0
    %v3746 = vand.u32 %v1947, 4294901760
    %3747 = vmatpush1.msra.mxu0 %v3746
    %3748 = vmatprep.subr.mxu0 0.0
    %v3749 = vand.u32 %v1948, 4294901760
    %3750 = vmatpush1.msra.mxu0 %v3749
    %3751 = vmatprep.subr.mxu0 0.0
    %v3752 = vand.u32 %v1949, 4294901760
    %3753 = vmatpush1.msra.mxu0 %v3752
    %3754 = vmatprep.subr.mxu0 0.0
    %v3755 = vand.u32 %v1950, 4294901760
    %3756 = vmatpush1.msra.mxu0 %v3755
    %3757 = vmatprep.subr.mxu0 0.0
    %v3758 = vand.u32 %v1951, 4294901760
    %3759 = vmatpush1.msra.mxu0 %v3758
    %3760 = vmatprep.subr.mxu0 0.0
    %v3761 = vand.u32 %v1952, 4294901760
    %3762 = vmatpush1.msra.mxu0 %v3761
    %3763 = vmatprep.subr.mxu0 0.0
    %v3764 = vand.u32 %v1953, 4294901760
    %3765 = vmatpush1.msra.mxu0 %v3764
    %3766 = vmatprep.subr.mxu0 0.0
    %v3767 = vand.u32 %v1954, 4294901760
    %3768 = vmatpush1.msra.mxu0 %v3767
    %3769 = vmatprep.subr.mxu0 0.0
    %v3770 = vand.u32 %v1955, 4294901760
    %3771 = vmatpush1.msra.mxu0 %v3770
    %3772 = vmatprep.subr.mxu0 0.0
    %v3773 = vand.u32 %v1956, 4294901760
    %3774 = vmatpush1.msra.mxu0 %v3773
    %3775 = vmatprep.subr.mxu0 0.0
    %v3776 = vand.u32 %v1957, 4294901760
    %3777 = vmatpush1.msra.mxu0 %v3776
    %3778 = vmatprep.subr.mxu0 0.0
    %v3779 = vand.u32 %v1958, 4294901760
    %3780 = vmatpush1.msra.mxu0 %v3779
    %3781 = vmatprep.subr.mxu0 0.0
    %v3782 = vand.u32 %v1959, 4294901760
    %3783 = vmatpush1.msra.mxu0 %v3782
    %3784 = vmatprep.subr.mxu0 0.0
    %v3785 = vand.u32 %v1960, 4294901760
    %3786 = vmatpush1.msra.mxu0 %v3785
    %3787 = vmatprep.subr.mxu0 0.0
    %v3788 = vand.u32 %v1961, 4294901760
    %3789 = vmatpush1.msra.mxu0 %v3788
    %3790 = vmatprep.subr.mxu0 0.0
    %v3791 = vand.u32 %v1962, 4294901760
    %3792 = vmatpush1.msra.mxu0 %v3791
    %3793 = vmatprep.subr.mxu0 0.0
    %v3794 = vand.u32 %v1963, 4294901760
    %3795 = vmatpush1.msra.mxu0 %v3794
    %3796 = vmatprep.subr.mxu0 0.0
    %v3797 = vand.u32 %v1964, 4294901760
    %3798 = vmatpush1.msra.mxu0 %v3797
    %3799 = vmatprep.subr.mxu0 0.0
    %v3800 = vand.u32 %v1965, 4294901760
    %3801 = vmatpush1.msra.mxu0 %v3800
    %3802 = vmatprep.subr.mxu0 0.0
    %v3803 = vand.u32 %v1966, 4294901760
    %3804 = vmatpush1.msra.mxu0 %v3803
    %3805 = vmatprep.subr.mxu0 0.0
    %v3806 = vand.u32 %v1967, 4294901760
    %3807 = vmatpush1.msra.mxu0 %v3806
    %3808 = vmatprep.subr.mxu0 0.0
    %v3809 = vand.u32 %v1968, 4294901760
    %3810 = vmatpush1.msra.mxu0 %v3809
    %3811 = vmatprep.subr.mxu0 0.0
    %v3812 = vand.u32 %v1969, 4294901760
    %3813 = vmatpush1.msra.mxu0 %v3812
    %3814 = vmatprep.subr.mxu0 0.0
    %v3815 = vand.u32 %v1970, 4294901760
    %3816 = vmatpush1.msra.mxu0 %v3815
    %3817 = vmatprep.subr.mxu0 0.0
    %v3818 = vand.u32 %v1971, 4294901760
    %3819 = vmatpush1.msra.mxu0 %v3818
    %v3820 = vand.u32 %v2099, 4294901760
    %3821 = vmatprep.mubr.f32.mxu0 %v3820
    %v3822 = vand.u32 %v2097, 4294901760
    %3823 = vmatmul.mubr.f32.gmra.mrb[0].mxu0 %v3822
    %v3824 = vpop.f32.mrb[0].mxu0
    %v3825 = vadd.f32 %v3721, %v3824
    %v3826 = vpop.f32.mrb[0].mxu0
    %3827 = vdwg.mxu0
    %3828 = vmatprep.subr.mxu0 0.0
    %v3829 = vand.u32 %v1972, 4294901760
    %3830 = vmatpush1.msra.mxu0 %v3829
    %3831 = vmatprep.subr.mxu0 0.0
    %v3832 = vand.u32 %v1973, 4294901760
    %3833 = vmatpush1.msra.mxu0 %v3832
    %3834 = vmatprep.subr.mxu0 0.0
    %v3835 = vand.u32 %v1974, 4294901760
    %3836 = vmatpush1.msra.mxu0 %v3835
    %3837 = vmatprep.subr.mxu0 0.0
    %v3838 = vand.u32 %v1975, 4294901760
    %3839 = vmatpush1.msra.mxu0 %v3838
    %3840 = vmatprep.subr.mxu0 0.0
    %v3841 = vand.u32 %v1976, 4294901760
    %3842 = vmatpush1.msra.mxu0 %v3841
    %3843 = vmatprep.subr.mxu0 0.0
    %v3844 = vand.u32 %v1977, 4294901760
    %3845 = vmatpush1.msra.mxu0 %v3844
    %3846 = vmatprep.subr.mxu0 0.0
    %v3847 = vand.u32 %v1978, 4294901760
    %3848 = vmatpush1.msra.mxu0 %v3847
    %3849 = vmatprep.subr.mxu0 0.0
    %v3850 = vand.u32 %v1979, 4294901760
    %3851 = vmatpush1.msra.mxu0 %v3850
    %3852 = vmatprep.subr.mxu0 0.0
    %v3853 = vand.u32 %v1980, 4294901760
    %3854 = vmatpush1.msra.mxu0 %v3853
    %3855 = vmatprep.subr.mxu0 0.0
    %v3856 = vand.u32 %v1981, 4294901760
    %3857 = vmatpush1.msra.mxu0 %v3856
    %3858 = vmatprep.subr.mxu0 0.0
    %v3859 = vand.u32 %v1982, 4294901760
    %3860 = vmatpush1.msra.mxu0 %v3859
    %3861 = vmatprep.subr.mxu0 0.0
    %v3862 = vand.u32 %v1983, 4294901760
    %3863 = vmatpush1.msra.mxu0 %v3862
    %3864 = vmatprep.subr.mxu0 0.0
    %v3865 = vand.u32 %v1984, 4294901760
    %3866 = vmatpush1.msra.mxu0 %v3865
    %3867 = vmatprep.subr.mxu0 0.0
    %v3868 = vand.u32 %v1985, 4294901760
    %3869 = vmatpush1.msra.mxu0 %v3868
    %3870 = vmatprep.subr.mxu0 0.0
    %v3871 = vand.u32 %v1986, 4294901760
    %3872 = vmatpush1.msra.mxu0 %v3871
    %3873 = vmatprep.subr.mxu0 0.0
    %v3874 = vand.u32 %v1987, 4294901760
    %3875 = vmatpush1.msra.mxu0 %v3874
    %3876 = vmatprep.subr.mxu0 0.0
    %v3877 = vand.u32 %v1988, 4294901760
    %3878 = vmatpush1.msra.mxu0 %v3877
    %3879 = vmatprep.subr.mxu0 0.0
    %v3880 = vand.u32 %v1989, 4294901760
    %3881 = vmatpush1.msra.mxu0 %v3880
    %3882 = vmatprep.subr.mxu0 0.0
    %v3883 = vand.u32 %v1990, 4294901760
    %3884 = vmatpush1.msra.mxu0 %v3883
    %3885 = vmatprep.subr.mxu0 0.0
    %v3886 = vand.u32 %v1991, 4294901760
    %3887 = vmatpush1.msra.mxu0 %v3886
    %3888 = vmatprep.subr.mxu0 0.0
    %v3889 = vand.u32 %v1992, 4294901760
    %3890 = vmatpush1.msra.mxu0 %v3889
    %3891 = vmatprep.subr.mxu0 0.0
    %v3892 = vand.u32 %v1993, 4294901760
    %3893 = vmatpush1.msra.mxu0 %v3892
    %3894 = vmatprep.subr.mxu0 0.0
    %v3895 = vand.u32 %v1994, 4294901760
    %3896 = vmatpush1.msra.mxu0 %v3895
    %3897 = vmatprep.subr.mxu0 0.0
    %v3898 = vand.u32 %v1995, 4294901760
    %3899 = vmatpush1.msra.mxu0 %v3898
    %3900 = vmatprep.subr.mxu0 0.0
    %v3901 = vand.u32 %v1996, 4294901760
    %3902 = vmatpush1.msra.mxu0 %v3901
    %3903 = vmatprep.subr.mxu0 0.0
    %v3904 = vand.u32 %v1997, 4294901760
    %3905 = vmatpush1.msra.mxu0 %v3904
    %3906 = vmatprep.subr.mxu0 0.0
    %v3907 = vand.u32 %v1998, 4294901760
    %3908 = vmatpush1.msra.mxu0 %v3907
    %3909 = vmatprep.subr.mxu0 0.0
    %v3910 = vand.u32 %v1999, 4294901760
    %3911 = vmatpush1.msra.mxu0 %v3910
    %3912 = vmatprep.subr.mxu0 0.0
    %v3913 = vand.u32 %v2000, 4294901760
    %3914 = vmatpush1.msra.mxu0 %v3913
    %3915 = vmatprep.subr.mxu0 0.0
    %v3916 = vand.u32 %v2001, 4294901760
    %3917 = vmatpush1.msra.mxu0 %v3916
    %3918 = vmatprep.subr.mxu0 0.0
    %v3919 = vand.u32 %v2002, 4294901760
    %3920 = vmatpush1.msra.mxu0 %v3919
    %3921 = vmatprep.subr.mxu0 0.0
    %v3922 = vand.u32 %v2003, 4294901760
    %3923 = vmatpush1.msra.mxu0 %v3922
    %v3924 = vand.u32 %v2103, 4294901760
    %v3925 = vsub.f32 %v2103, %v3924
    %v3926 = vand.u32 %v3925, 4294901760
    %v3927 = vsub.f32 %v3925, %v3926
    %v3928 = vand.u32 %v3927, 4294901760
    %3929 = vmatprep.mubr.f32.mxu0 %v3928
    %v3930 = vand.u32 %v2101, 4294901760
    %v3931 = vsub.f32 %v2101, %v3930
    %v3932 = vand.u32 %v3931, 4294901760
    %v3933 = vsub.f32 %v3931, %v3932
    %v3934 = vand.u32 %v3933, 4294901760
    %3935 = vmatmul.mubr.f32.gmra.mrb[0].mxu0 %v3934
    %v3936 = vpop.f32.mrb[0].mxu0
    %v3937 = vadd.f32 %v3825, %v3936
    %v3938 = vpop.f32.mrb[0].mxu0
    %3939 = vdwg.mxu0
    %3940 = vmatprep.subr.mxu0 0.0
    %v3941 = vand.u32 %v1972, 4294901760
    %v3942 = vsub.f32 %v1972, %v3941
    %v3943 = vand.u32 %v3942, 4294901760
    %v3944 = vsub.f32 %v3942, %v3943
    %v3945 = vand.u32 %v3944, 4294901760
    %3946 = vmatpush1.msra.mxu0 %v3945
    %3947 = vmatprep.subr.mxu0 0.0
    %v3948 = vand.u32 %v1973, 4294901760
    %v3949 = vsub.f32 %v1973, %v3948
    %v3950 = vand.u32 %v3949, 4294901760
    %v3951 = vsub.f32 %v3949, %v3950
    %v3952 = vand.u32 %v3951, 4294901760
    %3953 = vmatpush1.msra.mxu0 %v3952
    %3954 = vmatprep.subr.mxu0 0.0
    %v3955 = vand.u32 %v1974, 4294901760
    %v3956 = vsub.f32 %v1974, %v3955
    %v3957 = vand.u32 %v3956, 4294901760
    %v3958 = vsub.f32 %v3956, %v3957
    %v3959 = vand.u32 %v3958, 4294901760
    %3960 = vmatpush1.msra.mxu0 %v3959
    %3961 = vmatprep.subr.mxu0 0.0
    %v3962 = vand.u32 %v1975, 4294901760
    %v3963 = vsub.f32 %v1975, %v3962
    %v3964 = vand.u32 %v3963, 4294901760
    %v3965 = vsub.f32 %v3963, %v3964
    %v3966 = vand.u32 %v3965, 4294901760
    %3967 = vmatpush1.msra.mxu0 %v3966
    %3968 = vmatprep.subr.mxu0 0.0
    %v3969 = vand.u32 %v1976, 4294901760
    %v3970 = vsub.f32 %v1976, %v3969
    %v3971 = vand.u32 %v3970, 4294901760
    %v3972 = vsub.f32 %v3970, %v3971
    %v3973 = vand.u32 %v3972, 4294901760
    %3974 = vmatpush1.msra.mxu0 %v3973
    %3975 = vmatprep.subr.mxu0 0.0
    %v3976 = vand.u32 %v1977, 4294901760
    %v3977 = vsub.f32 %v1977, %v3976
    %v3978 = vand.u32 %v3977, 4294901760
    %v3979 = vsub.f32 %v3977, %v3978
    %v3980 = vand.u32 %v3979, 4294901760
    %3981 = vmatpush1.msra.mxu0 %v3980
    %3982 = vmatprep.subr.mxu0 0.0
    %v3983 = vand.u32 %v1978, 4294901760
    %v3984 = vsub.f32 %v1978, %v3983
    %v3985 = vand.u32 %v3984, 4294901760
    %v3986 = vsub.f32 %v3984, %v3985
    %v3987 = vand.u32 %v3986, 4294901760
    %3988 = vmatpush1.msra.mxu0 %v3987
    %3989 = vmatprep.subr.mxu0 0.0
    %v3990 = vand.u32 %v1979, 4294901760
    %v3991 = vsub.f32 %v1979, %v3990
    %v3992 = vand.u32 %v3991, 4294901760
    %v3993 = vsub.f32 %v3991, %v3992
    %v3994 = vand.u32 %v3993, 4294901760
    %3995 = vmatpush1.msra.mxu0 %v3994
    %3996 = vmatprep.subr.mxu0 0.0
    %v3997 = vand.u32 %v1980, 4294901760
    %v3998 = vsub.f32 %v1980, %v3997
    %v3999 = vand.u32 %v3998, 4294901760
    %v4000 = vsub.f32 %v3998, %v3999
    %v4001 = vand.u32 %v4000, 4294901760
    %4002 = vmatpush1.msra.mxu0 %v4001
    %4003 = vmatprep.subr.mxu0 0.0
    %v4004 = vand.u32 %v1981, 4294901760
    %v4005 = vsub.f32 %v1981, %v4004
    %v4006 = vand.u32 %v4005, 4294901760
    %v4007 = vsub.f32 %v4005, %v4006
    %v4008 = vand.u32 %v4007, 4294901760
    %4009 = vmatpush1.msra.mxu0 %v4008
    %4010 = vmatprep.subr.mxu0 0.0
    %v4011 = vand.u32 %v1982, 4294901760
    %v4012 = vsub.f32 %v1982, %v4011
    %v4013 = vand.u32 %v4012, 4294901760
    %v4014 = vsub.f32 %v4012, %v4013
    %v4015 = vand.u32 %v4014, 4294901760
    %4016 = vmatpush1.msra.mxu0 %v4015
    %4017 = vmatprep.subr.mxu0 0.0
    %v4018 = vand.u32 %v1983, 4294901760
    %v4019 = vsub.f32 %v1983, %v4018
    %v4020 = vand.u32 %v4019, 4294901760
    %v4021 = vsub.f32 %v4019, %v4020
    %v4022 = vand.u32 %v4021, 4294901760
    %4023 = vmatpush1.msra.mxu0 %v4022
    %4024 = vmatprep.subr.mxu0 0.0
    %v4025 = vand.u32 %v1984, 4294901760
    %v4026 = vsub.f32 %v1984, %v4025
    %v4027 = vand.u32 %v4026, 4294901760
    %v4028 = vsub.f32 %v4026, %v4027
    %v4029 = vand.u32 %v4028, 4294901760
    %4030 = vmatpush1.msra.mxu0 %v4029
    %4031 = vmatprep.subr.mxu0 0.0
    %v4032 = vand.u32 %v1985, 4294901760
    %v4033 = vsub.f32 %v1985, %v4032
    %v4034 = vand.u32 %v4033, 4294901760
    %v4035 = vsub.f32 %v4033, %v4034
    %v4036 = vand.u32 %v4035, 4294901760
    %4037 = vmatpush1.msra.mxu0 %v4036
    %4038 = vmatprep.subr.mxu0 0.0
    %v4039 = vand.u32 %v1986, 4294901760
    %v4040 = vsub.f32 %v1986, %v4039
    %v4041 = vand.u32 %v4040, 4294901760
    %v4042 = vsub.f32 %v4040, %v4041
    %v4043 = vand.u32 %v4042, 4294901760
    %4044 = vmatpush1.msra.mxu0 %v4043
    %4045 = vmatprep.subr.mxu0 0.0
    %v4046 = vand.u32 %v1987, 4294901760
    %v4047 = vsub.f32 %v1987, %v4046
    %v4048 = vand.u32 %v4047, 4294901760
    %v4049 = vsub.f32 %v4047, %v4048
    %v4050 = vand.u32 %v4049, 4294901760
    %4051 = vmatpush1.msra.mxu0 %v4050
    %4052 = vmatprep.subr.mxu0 0.0
    %v4053 = vand.u32 %v1988, 4294901760
    %v4054 = vsub.f32 %v1988, %v4053
    %v4055 = vand.u32 %v4054, 4294901760
    %v4056 = vsub.f32 %v4054, %v4055
    %v4057 = vand.u32 %v4056, 4294901760
    %4058 = vmatpush1.msra.mxu0 %v4057
    %4059 = vmatprep.subr.mxu0 0.0
    %v4060 = vand.u32 %v1989, 4294901760
    %v4061 = vsub.f32 %v1989, %v4060
    %v4062 = vand.u32 %v4061, 4294901760
    %v4063 = vsub.f32 %v4061, %v4062
    %v4064 = vand.u32 %v4063, 4294901760
    %4065 = vmatpush1.msra.mxu0 %v4064
    %4066 = vmatprep.subr.mxu0 0.0
    %v4067 = vand.u32 %v1990, 4294901760
    %v4068 = vsub.f32 %v1990, %v4067
    %v4069 = vand.u32 %v4068, 4294901760
    %v4070 = vsub.f32 %v4068, %v4069
    %v4071 = vand.u32 %v4070, 4294901760
    %4072 = vmatpush1.msra.mxu0 %v4071
    %4073 = vmatprep.subr.mxu0 0.0
    %v4074 = vand.u32 %v1991, 4294901760
    %v4075 = vsub.f32 %v1991, %v4074
    %v4076 = vand.u32 %v4075, 4294901760
    %v4077 = vsub.f32 %v4075, %v4076
    %v4078 = vand.u32 %v4077, 4294901760
    %4079 = vmatpush1.msra.mxu0 %v4078
    %4080 = vmatprep.subr.mxu0 0.0
    %v4081 = vand.u32 %v1992, 4294901760
    %v4082 = vsub.f32 %v1992, %v4081
    %v4083 = vand.u32 %v4082, 4294901760
    %v4084 = vsub.f32 %v4082, %v4083
    %v4085 = vand.u32 %v4084, 4294901760
    %4086 = vmatpush1.msra.mxu0 %v4085
    %4087 = vmatprep.subr.mxu0 0.0
    %v4088 = vand.u32 %v1993, 4294901760
    %v4089 = vsub.f32 %v1993, %v4088
    %v4090 = vand.u32 %v4089, 4294901760
    %v4091 = vsub.f32 %v4089, %v4090
    %v4092 = vand.u32 %v4091, 4294901760
    %4093 = vmatpush1.msra.mxu0 %v4092
    %4094 = vmatprep.subr.mxu0 0.0
    %v4095 = vand.u32 %v1994, 4294901760
    %v4096 = vsub.f32 %v1994, %v4095
    %v4097 = vand.u32 %v4096, 4294901760
    %v4098 = vsub.f32 %v4096, %v4097
    %v4099 = vand.u32 %v4098, 4294901760
    %4100 = vmatpush1.msra.mxu0 %v4099
    %4101 = vmatprep.subr.mxu0 0.0
    %v4102 = vand.u32 %v1995, 4294901760
    %v4103 = vsub.f32 %v1995, %v4102
    %v4104 = vand.u32 %v4103, 4294901760
    %v4105 = vsub.f32 %v4103, %v4104
    %v4106 = vand.u32 %v4105, 4294901760
    %4107 = vmatpush1.msra.mxu0 %v4106
    %4108 = vmatprep.subr.mxu0 0.0
    %v4109 = vand.u32 %v1996, 4294901760
    %v4110 = vsub.f32 %v1996, %v4109
    %v4111 = vand.u32 %v4110, 4294901760
    %v4112 = vsub.f32 %v4110, %v4111
    %v4113 = vand.u32 %v4112, 4294901760
    %4114 = vmatpush1.msra.mxu0 %v4113
    %4115 = vmatprep.subr.mxu0 0.0
    %v4116 = vand.u32 %v1997, 4294901760
    %v4117 = vsub.f32 %v1997, %v4116
    %v4118 = vand.u32 %v4117, 4294901760
    %v4119 = vsub.f32 %v4117, %v4118
    %v4120 = vand.u32 %v4119, 4294901760
    %4121 = vmatpush1.msra.mxu0 %v4120
    %4122 = vmatprep.subr.mxu0 0.0
    %v4123 = vand.u32 %v1998, 4294901760
    %v4124 = vsub.f32 %v1998, %v4123
    %v4125 = vand.u32 %v4124, 4294901760
    %v4126 = vsub.f32 %v4124, %v4125
    %v4127 = vand.u32 %v4126, 4294901760
    %4128 = vmatpush1.msra.mxu0 %v4127
    %4129 = vmatprep.subr.mxu0 0.0
    %v4130 = vand.u32 %v1999, 4294901760
    %v4131 = vsub.f32 %v1999, %v4130
    %v4132 = vand.u32 %v4131, 4294901760
    %v4133 = vsub.f32 %v4131, %v4132
    %v4134 = vand.u32 %v4133, 4294901760
    %4135 = vmatpush1.msra.mxu0 %v4134
    %4136 = vmatprep.subr.mxu0 0.0
    %v4137 = vand.u32 %v2000, 4294901760
    %v4138 = vsub.f32 %v2000, %v4137
    %v4139 = vand.u32 %v4138, 4294901760
    %v4140 = vsub.f32 %v4138, %v4139
    %v4141 = vand.u32 %v4140, 4294901760
    %4142 = vmatpush1.msra.mxu0 %v4141
    %4143 = vmatprep.subr.mxu0 0.0
    %v4144 = vand.u32 %v2001, 4294901760
    %v4145 = vsub.f32 %v2001, %v4144
    %v4146 = vand.u32 %v4145, 4294901760
    %v4147 = vsub.f32 %v4145, %v4146
    %v4148 = vand.u32 %v4147, 4294901760
    %4149 = vmatpush1.msra.mxu0 %v4148
    %4150 = vmatprep.subr.mxu0 0.0
    %v4151 = vand.u32 %v2002, 4294901760
    %v4152 = vsub.f32 %v2002, %v4151
    %v4153 = vand.u32 %v4152, 4294901760
    %v4154 = vsub.f32 %v4152, %v4153
    %v4155 = vand.u32 %v4154, 4294901760
    %4156 = vmatpush1.msra.mxu0 %v4155
    %4157 = vmatprep.subr.mxu0 0.0
    %v4158 = vand.u32 %v2003, 4294901760
    %v4159 = vsub.f32 %v2003, %v4158
    %v4160 = vand.u32 %v4159, 4294901760
    %v4161 = vsub.f32 %v4159, %v4160
    %v4162 = vand.u32 %v4161, 4294901760
    %4163 = vmatpush1.msra.mxu0 %v4162
    %v4164 = vand.u32 %v2103, 4294901760
    %4165 = vmatprep.mubr.f32.mxu0 %v4164
    %v4166 = vand.u32 %v2101, 4294901760
    %4167 = vmatmul.mubr.f32.gmra.mrb[0].mxu0 %v4166
    %v4168 = vpop.f32.mrb[0].mxu0
    %v4169 = vadd.f32 %v3937, %v4168
    %v4170 = vpop.f32.mrb[0].mxu0
    %4171 = vdwg.mxu0
    %4172 = vmatprep.subr.mxu0 0.0
    %v4173 = vand.u32 %v1972, 4294901760
    %v4174 = vsub.f32 %v1972, %v4173
    %4175 = vmatpush1.msra.mxu0 %v4174
    %4176 = vmatprep.subr.mxu0 0.0
    %v4177 = vand.u32 %v1973, 4294901760
    %v4178 = vsub.f32 %v1973, %v4177
    %4179 = vmatpush1.msra.mxu0 %v4178
    %4180 = vmatprep.subr.mxu0 0.0
    %v4181 = vand.u32 %v1974, 4294901760
    %v4182 = vsub.f32 %v1974, %v4181
    %4183 = vmatpush1.msra.mxu0 %v4182
    %4184 = vmatprep.subr.mxu0 0.0
    %v4185 = vand.u32 %v1975, 4294901760
    %v4186 = vsub.f32 %v1975, %v4185
    %4187 = vmatpush1.msra.mxu0 %v4186
    %4188 = vmatprep.subr.mxu0 0.0
    %v4189 = vand.u32 %v1976, 4294901760
    %v4190 = vsub.f32 %v1976, %v4189
    %4191 = vmatpush1.msra.mxu0 %v4190
    %4192 = vmatprep.subr.mxu0 0.0
    %v4193 = vand.u32 %v1977, 4294901760
    %v4194 = vsub.f32 %v1977, %v4193
    %4195 = vmatpush1.msra.mxu0 %v4194
    %4196 = vmatprep.subr.mxu0 0.0
    %v4197 = vand.u32 %v1978, 4294901760
    %v4198 = vsub.f32 %v1978, %v4197
    %4199 = vmatpush1.msra.mxu0 %v4198
    %4200 = vmatprep.subr.mxu0 0.0
    %v4201 = vand.u32 %v1979, 4294901760
    %v4202 = vsub.f32 %v1979, %v4201
    %4203 = vmatpush1.msra.mxu0 %v4202
    %4204 = vmatprep.subr.mxu0 0.0
    %v4205 = vand.u32 %v1980, 4294901760
    %v4206 = vsub.f32 %v1980, %v4205
    %4207 = vmatpush1.msra.mxu0 %v4206
    %4208 = vmatprep.subr.mxu0 0.0
    %v4209 = vand.u32 %v1981, 4294901760
    %v4210 = vsub.f32 %v1981, %v4209
    %4211 = vmatpush1.msra.mxu0 %v4210
    %4212 = vmatprep.subr.mxu0 0.0
    %v4213 = vand.u32 %v1982, 4294901760
    %v4214 = vsub.f32 %v1982, %v4213
    %4215 = vmatpush1.msra.mxu0 %v4214
    %4216 = vmatprep.subr.mxu0 0.0
    %v4217 = vand.u32 %v1983, 4294901760
    %v4218 = vsub.f32 %v1983, %v4217
    %4219 = vmatpush1.msra.mxu0 %v4218
    %4220 = vmatprep.subr.mxu0 0.0
    %v4221 = vand.u32 %v1984, 4294901760
    %v4222 = vsub.f32 %v1984, %v4221
    %4223 = vmatpush1.msra.mxu0 %v4222
    %4224 = vmatprep.subr.mxu0 0.0
    %v4225 = vand.u32 %v1985, 4294901760
    %v4226 = vsub.f32 %v1985, %v4225
    %4227 = vmatpush1.msra.mxu0 %v4226
    %4228 = vmatprep.subr.mxu0 0.0
    %v4229 = vand.u32 %v1986, 4294901760
    %v4230 = vsub.f32 %v1986, %v4229
    %4231 = vmatpush1.msra.mxu0 %v4230
    %4232 = vmatprep.subr.mxu0 0.0
    %v4233 = vand.u32 %v1987, 4294901760
    %v4234 = vsub.f32 %v1987, %v4233
    %4235 = vmatpush1.msra.mxu0 %v4234
    %4236 = vmatprep.subr.mxu0 0.0
    %v4237 = vand.u32 %v1988, 4294901760
    %v4238 = vsub.f32 %v1988, %v4237
    %4239 = vmatpush1.msra.mxu0 %v4238
    %4240 = vmatprep.subr.mxu0 0.0
    %v4241 = vand.u32 %v1989, 4294901760
    %v4242 = vsub.f32 %v1989, %v4241
    %4243 = vmatpush1.msra.mxu0 %v4242
    %4244 = vmatprep.subr.mxu0 0.0
    %v4245 = vand.u32 %v1990, 4294901760
    %v4246 = vsub.f32 %v1990, %v4245
    %4247 = vmatpush1.msra.mxu0 %v4246
    %4248 = vmatprep.subr.mxu0 0.0
    %v4249 = vand.u32 %v1991, 4294901760
    %v4250 = vsub.f32 %v1991, %v4249
    %4251 = vmatpush1.msra.mxu0 %v4250
    %4252 = vmatprep.subr.mxu0 0.0
    %v4253 = vand.u32 %v1992, 4294901760
    %v4254 = vsub.f32 %v1992, %v4253
    %4255 = vmatpush1.msra.mxu0 %v4254
    %4256 = vmatprep.subr.mxu0 0.0
    %v4257 = vand.u32 %v1993, 4294901760
    %v4258 = vsub.f32 %v1993, %v4257
    %4259 = vmatpush1.msra.mxu0 %v4258
    %4260 = vmatprep.subr.mxu0 0.0
    %v4261 = vand.u32 %v1994, 4294901760
    %v4262 = vsub.f32 %v1994, %v4261
    %4263 = vmatpush1.msra.mxu0 %v4262
    %4264 = vmatprep.subr.mxu0 0.0
    %v4265 = vand.u32 %v1995, 4294901760
    %v4266 = vsub.f32 %v1995, %v4265
    %4267 = vmatpush1.msra.mxu0 %v4266
    %4268 = vmatprep.subr.mxu0 0.0
    %v4269 = vand.u32 %v1996, 4294901760
    %v4270 = vsub.f32 %v1996, %v4269
    %4271 = vmatpush1.msra.mxu0 %v4270
    %4272 = vmatprep.subr.mxu0 0.0
    %v4273 = vand.u32 %v1997, 4294901760
    %v4274 = vsub.f32 %v1997, %v4273
    %4275 = vmatpush1.msra.mxu0 %v4274
    %4276 = vmatprep.subr.mxu0 0.0
    %v4277 = vand.u32 %v1998, 4294901760
    %v4278 = vsub.f32 %v1998, %v4277
    %4279 = vmatpush1.msra.mxu0 %v4278
    %4280 = vmatprep.subr.mxu0 0.0
    %v4281 = vand.u32 %v1999, 4294901760
    %v4282 = vsub.f32 %v1999, %v4281
    %4283 = vmatpush1.msra.mxu0 %v4282
    %4284 = vmatprep.subr.mxu0 0.0
    %v4285 = vand.u32 %v2000, 4294901760
    %v4286 = vsub.f32 %v2000, %v4285
    %4287 = vmatpush1.msra.mxu0 %v4286
    %4288 = vmatprep.subr.mxu0 0.0
    %v4289 = vand.u32 %v2001, 4294901760
    %v4290 = vsub.f32 %v2001, %v4289
    %4291 = vmatpush1.msra.mxu0 %v4290
    %4292 = vmatprep.subr.mxu0 0.0
    %v4293 = vand.u32 %v2002, 4294901760
    %v4294 = vsub.f32 %v2002, %v4293
    %4295 = vmatpush1.msra.mxu0 %v4294
    %4296 = vmatprep.subr.mxu0 0.0
    %v4297 = vand.u32 %v2003, 4294901760
    %v4298 = vsub.f32 %v2003, %v4297
    %4299 = vmatpush1.msra.mxu0 %v4298
    %v4300 = vand.u32 %v2103, 4294901760
    %v4301 = vsub.f32 %v2103, %v4300
    %4302 = vmatprep.mubr.f32.mxu0 %v4301
    %v4303 = vand.u32 %v2101, 4294901760
    %v4304 = vsub.f32 %v2101, %v4303
    %4305 = vmatmul.mubr.f32.gmra.mrb[0].mxu0 %v4304
    %v4306 = vpop.f32.mrb[0].mxu0
    %v4307 = vadd.f32 %v4169, %v4306
    %v4308 = vpop.f32.mrb[0].mxu0
    %4309 = vdwg.mxu0
    %4310 = vmatprep.subr.mxu0 0.0
    %v4311 = vand.u32 %v1972, 4294901760
    %4312 = vmatpush1.msra.mxu0 %v4311
    %4313 = vmatprep.subr.mxu0 0.0
    %v4314 = vand.u32 %v1973, 4294901760
    %4315 = vmatpush1.msra.mxu0 %v4314
    %4316 = vmatprep.subr.mxu0 0.0
    %v4317 = vand.u32 %v1974, 4294901760
    %4318 = vmatpush1.msra.mxu0 %v4317
    %4319 = vmatprep.subr.mxu0 0.0
    %v4320 = vand.u32 %v1975, 4294901760
    %4321 = vmatpush1.msra.mxu0 %v4320
    %4322 = vmatprep.subr.mxu0 0.0
    %v4323 = vand.u32 %v1976, 4294901760
    %4324 = vmatpush1.msra.mxu0 %v4323
    %4325 = vmatprep.subr.mxu0 0.0
    %v4326 = vand.u32 %v1977, 4294901760
    %4327 = vmatpush1.msra.mxu0 %v4326
    %4328 = vmatprep.subr.mxu0 0.0
    %v4329 = vand.u32 %v1978, 4294901760
    %4330 = vmatpush1.msra.mxu0 %v4329
    %4331 = vmatprep.subr.mxu0 0.0
    %v4332 = vand.u32 %v1979, 4294901760
    %4333 = vmatpush1.msra.mxu0 %v4332
    %4334 = vmatprep.subr.mxu0 0.0
    %v4335 = vand.u32 %v1980, 4294901760
    %4336 = vmatpush1.msra.mxu0 %v4335
    %4337 = vmatprep.subr.mxu0 0.0
    %v4338 = vand.u32 %v1981, 4294901760
    %4339 = vmatpush1.msra.mxu0 %v4338
    %4340 = vmatprep.subr.mxu0 0.0
    %v4341 = vand.u32 %v1982, 4294901760
    %4342 = vmatpush1.msra.mxu0 %v4341
    %4343 = vmatprep.subr.mxu0 0.0
    %v4344 = vand.u32 %v1983, 4294901760
    %4345 = vmatpush1.msra.mxu0 %v4344
    %4346 = vmatprep.subr.mxu0 0.0
    %v4347 = vand.u32 %v1984, 4294901760
    %4348 = vmatpush1.msra.mxu0 %v4347
    %4349 = vmatprep.subr.mxu0 0.0
    %v4350 = vand.u32 %v1985, 4294901760
    %4351 = vmatpush1.msra.mxu0 %v4350
    %4352 = vmatprep.subr.mxu0 0.0
    %v4353 = vand.u32 %v1986, 4294901760
    %4354 = vmatpush1.msra.mxu0 %v4353
    %4355 = vmatprep.subr.mxu0 0.0
    %v4356 = vand.u32 %v1987, 4294901760
    %4357 = vmatpush1.msra.mxu0 %v4356
    %4358 = vmatprep.subr.mxu0 0.0
    %v4359 = vand.u32 %v1988, 4294901760
    %4360 = vmatpush1.msra.mxu0 %v4359
    %4361 = vmatprep.subr.mxu0 0.0
    %v4362 = vand.u32 %v1989, 4294901760
    %4363 = vmatpush1.msra.mxu0 %v4362
    %4364 = vmatprep.subr.mxu0 0.0
    %v4365 = vand.u32 %v1990, 4294901760
    %4366 = vmatpush1.msra.mxu0 %v4365
    %4367 = vmatprep.subr.mxu0 0.0
    %v4368 = vand.u32 %v1991, 4294901760
    %4369 = vmatpush1.msra.mxu0 %v4368
    %4370 = vmatprep.subr.mxu0 0.0
    %v4371 = vand.u32 %v1992, 4294901760
    %4372 = vmatpush1.msra.mxu0 %v4371
    %4373 = vmatprep.subr.mxu0 0.0
    %v4374 = vand.u32 %v1993, 4294901760
    %4375 = vmatpush1.msra.mxu0 %v4374
    %4376 = vmatprep.subr.mxu0 0.0
    %v4377 = vand.u32 %v1994, 4294901760
    %4378 = vmatpush1.msra.mxu0 %v4377
    %4379 = vmatprep.subr.mxu0 0.0
    %v4380 = vand.u32 %v1995, 4294901760
    %4381 = vmatpush1.msra.mxu0 %v4380
    %4382 = vmatprep.subr.mxu0 0.0
    %v4383 = vand.u32 %v1996, 4294901760
    %4384 = vmatpush1.msra.mxu0 %v4383
    %4385 = vmatprep.subr.mxu0 0.0
    %v4386 = vand.u32 %v1997, 4294901760
    %4387 = vmatpush1.msra.mxu0 %v4386
    %4388 = vmatprep.subr.mxu0 0.0
    %v4389 = vand.u32 %v1998, 4294901760
    %4390 = vmatpush1.msra.mxu0 %v4389
    %4391 = vmatprep.subr.mxu0 0.0
    %v4392 = vand.u32 %v1999, 4294901760
    %4393 = vmatpush1.msra.mxu0 %v4392
    %4394 = vmatprep.subr.mxu0 0.0
    %v4395 = vand.u32 %v2000, 4294901760
    %4396 = vmatpush1.msra.mxu0 %v4395
    %4397 = vmatprep.subr.mxu0 0.0
    %v4398 = vand.u32 %v2001, 4294901760
    %4399 = vmatpush1.msra.mxu0 %v4398
    %4400 = vmatprep.subr.mxu0 0.0
    %v4401 = vand.u32 %v2002, 4294901760
    %4402 = vmatpush1.msra.mxu0 %v4401
    %4403 = vmatprep.subr.mxu0 0.0
    %v4404 = vand.u32 %v2003, 4294901760
    %4405 = vmatpush1.msra.mxu0 %v4404
    %v4406 = vand.u32 %v2103, 4294901760
    %v4407 = vsub.f32 %v2103, %v4406
    %v4408 = vand.u32 %v4407, 4294901760
    %4409 = vmatprep.mubr.f32.mxu0 %v4408
    %v4410 = vand.u32 %v2101, 4294901760
    %v4411 = vsub.f32 %v2101, %v4410
    %v4412 = vand.u32 %v4411, 4294901760
    %4413 = vmatmul.mubr.f32.gmra.mrb[0].mxu0 %v4412
    %v4414 = vpop.f32.mrb[0].mxu0
    %v4415 = vadd.f32 %v4307, %v4414
    %v4416 = vpop.f32.mrb[0].mxu0
    %4417 = vdwg.mxu0
    %4418 = vmatprep.subr.mxu0 0.0
    %v4419 = vand.u32 %v1972, 4294901760
    %v4420 = vsub.f32 %v1972, %v4419
    %v4421 = vand.u32 %v4420, 4294901760
    %4422 = vmatpush1.msra.mxu0 %v4421
    %4423 = vmatprep.subr.mxu0 0.0
    %v4424 = vand.u32 %v1973, 4294901760
    %v4425 = vsub.f32 %v1973, %v4424
    %v4426 = vand.u32 %v4425, 4294901760
    %4427 = vmatpush1.msra.mxu0 %v4426
    %4428 = vmatprep.subr.mxu0 0.0
    %v4429 = vand.u32 %v1974, 4294901760
    %v4430 = vsub.f32 %v1974, %v4429
    %v4431 = vand.u32 %v4430, 4294901760
    %4432 = vmatpush1.msra.mxu0 %v4431
    %4433 = vmatprep.subr.mxu0 0.0
    %v4434 = vand.u32 %v1975, 4294901760
    %v4435 = vsub.f32 %v1975, %v4434
    %v4436 = vand.u32 %v4435, 4294901760
    %4437 = vmatpush1.msra.mxu0 %v4436
    %4438 = vmatprep.subr.mxu0 0.0
    %v4439 = vand.u32 %v1976, 4294901760
    %v4440 = vsub.f32 %v1976, %v4439
    %v4441 = vand.u32 %v4440, 4294901760
    %4442 = vmatpush1.msra.mxu0 %v4441
    %4443 = vmatprep.subr.mxu0 0.0
    %v4444 = vand.u32 %v1977, 4294901760
    %v4445 = vsub.f32 %v1977, %v4444
    %v4446 = vand.u32 %v4445, 4294901760
    %4447 = vmatpush1.msra.mxu0 %v4446
    %4448 = vmatprep.subr.mxu0 0.0
    %v4449 = vand.u32 %v1978, 4294901760
    %v4450 = vsub.f32 %v1978, %v4449
    %v4451 = vand.u32 %v4450, 4294901760
    %4452 = vmatpush1.msra.mxu0 %v4451
    %4453 = vmatprep.subr.mxu0 0.0
    %v4454 = vand.u32 %v1979, 4294901760
    %v4455 = vsub.f32 %v1979, %v4454
    %v4456 = vand.u32 %v4455, 4294901760
    %4457 = vmatpush1.msra.mxu0 %v4456
    %4458 = vmatprep.subr.mxu0 0.0
    %v4459 = vand.u32 %v1980, 4294901760
    %v4460 = vsub.f32 %v1980, %v4459
    %v4461 = vand.u32 %v4460, 4294901760
    %4462 = vmatpush1.msra.mxu0 %v4461
    %4463 = vmatprep.subr.mxu0 0.0
    %v4464 = vand.u32 %v1981, 4294901760
    %v4465 = vsub.f32 %v1981, %v4464
    %v4466 = vand.u32 %v4465, 4294901760
    %4467 = vmatpush1.msra.mxu0 %v4466
    %4468 = vmatprep.subr.mxu0 0.0
    %v4469 = vand.u32 %v1982, 4294901760
    %v4470 = vsub.f32 %v1982, %v4469
    %v4471 = vand.u32 %v4470, 4294901760
    %4472 = vmatpush1.msra.mxu0 %v4471
    %4473 = vmatprep.subr.mxu0 0.0
    %v4474 = vand.u32 %v1983, 4294901760
    %v4475 = vsub.f32 %v1983, %v4474
    %v4476 = vand.u32 %v4475, 4294901760
    %4477 = vmatpush1.msra.mxu0 %v4476
    %4478 = vmatprep.subr.mxu0 0.0
    %v4479 = vand.u32 %v1984, 4294901760
    %v4480 = vsub.f32 %v1984, %v4479
    %v4481 = vand.u32 %v4480, 4294901760
    %4482 = vmatpush1.msra.mxu0 %v4481
    %4483 = vmatprep.subr.mxu0 0.0
    %v4484 = vand.u32 %v1985, 4294901760
    %v4485 = vsub.f32 %v1985, %v4484
    %v4486 = vand.u32 %v4485, 4294901760
    %4487 = vmatpush1.msra.mxu0 %v4486
    %4488 = vmatprep.subr.mxu0 0.0
    %v4489 = vand.u32 %v1986, 4294901760
    %v4490 = vsub.f32 %v1986, %v4489
    %v4491 = vand.u32 %v4490, 4294901760
    %4492 = vmatpush1.msra.mxu0 %v4491
    %4493 = vmatprep.subr.mxu0 0.0
    %v4494 = vand.u32 %v1987, 4294901760
    %v4495 = vsub.f32 %v1987, %v4494
    %v4496 = vand.u32 %v4495, 4294901760
    %4497 = vmatpush1.msra.mxu0 %v4496
    %4498 = vmatprep.subr.mxu0 0.0
    %v4499 = vand.u32 %v1988, 4294901760
    %v4500 = vsub.f32 %v1988, %v4499
    %v4501 = vand.u32 %v4500, 4294901760
    %4502 = vmatpush1.msra.mxu0 %v4501
    %4503 = vmatprep.subr.mxu0 0.0
    %v4504 = vand.u32 %v1989, 4294901760
    %v4505 = vsub.f32 %v1989, %v4504
    %v4506 = vand.u32 %v4505, 4294901760
    %4507 = vmatpush1.msra.mxu0 %v4506
    %4508 = vmatprep.subr.mxu0 0.0
    %v4509 = vand.u32 %v1990, 4294901760
    %v4510 = vsub.f32 %v1990, %v4509
    %v4511 = vand.u32 %v4510, 4294901760
    %4512 = vmatpush1.msra.mxu0 %v4511
    %4513 = vmatprep.subr.mxu0 0.0
    %v4514 = vand.u32 %v1991, 4294901760
    %v4515 = vsub.f32 %v1991, %v4514
    %v4516 = vand.u32 %v4515, 4294901760
    %4517 = vmatpush1.msra.mxu0 %v4516
    %4518 = vmatprep.subr.mxu0 0.0
    %v4519 = vand.u32 %v1992, 4294901760
    %v4520 = vsub.f32 %v1992, %v4519
    %v4521 = vand.u32 %v4520, 4294901760
    %4522 = vmatpush1.msra.mxu0 %v4521
    %4523 = vmatprep.subr.mxu0 0.0
    %v4524 = vand.u32 %v1993, 4294901760
    %v4525 = vsub.f32 %v1993, %v4524
    %v4526 = vand.u32 %v4525, 4294901760
    %4527 = vmatpush1.msra.mxu0 %v4526
    %4528 = vmatprep.subr.mxu0 0.0
    %v4529 = vand.u32 %v1994, 4294901760
    %v4530 = vsub.f32 %v1994, %v4529
    %v4531 = vand.u32 %v4530, 4294901760
    %4532 = vmatpush1.msra.mxu0 %v4531
    %4533 = vmatprep.subr.mxu0 0.0
    %v4534 = vand.u32 %v1995, 4294901760
    %v4535 = vsub.f32 %v1995, %v4534
    %v4536 = vand.u32 %v4535, 4294901760
    %4537 = vmatpush1.msra.mxu0 %v4536
    %4538 = vmatprep.subr.mxu0 0.0
    %v4539 = vand.u32 %v1996, 4294901760
    %v4540 = vsub.f32 %v1996, %v4539
    %v4541 = vand.u32 %v4540, 4294901760
    %4542 = vmatpush1.msra.mxu0 %v4541
    %4543 = vmatprep.subr.mxu0 0.0
    %v4544 = vand.u32 %v1997, 4294901760
    %v4545 = vsub.f32 %v1997, %v4544
    %v4546 = vand.u32 %v4545, 4294901760
    %4547 = vmatpush1.msra.mxu0 %v4546
    %4548 = vmatprep.subr.mxu0 0.0
    %v4549 = vand.u32 %v1998, 4294901760
    %v4550 = vsub.f32 %v1998, %v4549
    %v4551 = vand.u32 %v4550, 4294901760
    %4552 = vmatpush1.msra.mxu0 %v4551
    %4553 = vmatprep.subr.mxu0 0.0
    %v4554 = vand.u32 %v1999, 4294901760
    %v4555 = vsub.f32 %v1999, %v4554
    %v4556 = vand.u32 %v4555, 4294901760
    %4557 = vmatpush1.msra.mxu0 %v4556
    %4558 = vmatprep.subr.mxu0 0.0
    %v4559 = vand.u32 %v2000, 4294901760
    %v4560 = vsub.f32 %v2000, %v4559
    %v4561 = vand.u32 %v4560, 4294901760
    %4562 = vmatpush1.msra.mxu0 %v4561
    %4563 = vmatprep.subr.mxu0 0.0
    %v4564 = vand.u32 %v2001, 4294901760
    %v4565 = vsub.f32 %v2001, %v4564
    %v4566 = vand.u32 %v4565, 4294901760
    %4567 = vmatpush1.msra.mxu0 %v4566
    %4568 = vmatprep.subr.mxu0 0.0
    %v4569 = vand.u32 %v2002, 4294901760
    %v4570 = vsub.f32 %v2002, %v4569
    %v4571 = vand.u32 %v4570, 4294901760
    %4572 = vmatpush1.msra.mxu0 %v4571
    %4573 = vmatprep.subr.mxu0 0.0
    %v4574 = vand.u32 %v2003, 4294901760
    %v4575 = vsub.f32 %v2003, %v4574
    %v4576 = vand.u32 %v4575, 4294901760
    %4577 = vmatpush1.msra.mxu0 %v4576
    %v4578 = vand.u32 %v2103, 4294901760
    %4579 = vmatprep.mubr.f32.mxu0 %v4578
    %v4580 = vand.u32 %v2101, 4294901760
    %4581 = vmatmul.mubr.f32.gmra.mrb[0].mxu0 %v4580
    %v4582 = vpop.f32.mrb[0].mxu0
    %v4583 = vadd.f32 %v4415, %v4582
    %v4584 = vpop.f32.mrb[0].mxu0
    %4585 = vdwg.mxu0
    %4586 = vmatprep.subr.mxu0 0.0
    %v4587 = vand.u32 %v1972, 4294901760
    %4588 = vmatpush1.msra.mxu0 %v4587
    %4589 = vmatprep.subr.mxu0 0.0
    %v4590 = vand.u32 %v1973, 4294901760
    %4591 = vmatpush1.msra.mxu0 %v4590
    %4592 = vmatprep.subr.mxu0 0.0
    %v4593 = vand.u32 %v1974, 4294901760
    %4594 = vmatpush1.msra.mxu0 %v4593
    %4595 = vmatprep.subr.mxu0 0.0
    %v4596 = vand.u32 %v1975, 4294901760
    %4597 = vmatpush1.msra.mxu0 %v4596
    %4598 = vmatprep.subr.mxu0 0.0
    %v4599 = vand.u32 %v1976, 4294901760
    %4600 = vmatpush1.msra.mxu0 %v4599
    %4601 = vmatprep.subr.mxu0 0.0
    %v4602 = vand.u32 %v1977, 4294901760
    %4603 = vmatpush1.msra.mxu0 %v4602
    %4604 = vmatprep.subr.mxu0 0.0
    %v4605 = vand.u32 %v1978, 4294901760
    %4606 = vmatpush1.msra.mxu0 %v4605
    %4607 = vmatprep.subr.mxu0 0.0
    %v4608 = vand.u32 %v1979, 4294901760
    %4609 = vmatpush1.msra.mxu0 %v4608
    %4610 = vmatprep.subr.mxu0 0.0
    %v4611 = vand.u32 %v1980, 4294901760
    %4612 = vmatpush1.msra.mxu0 %v4611
    %4613 = vmatprep.subr.mxu0 0.0
    %v4614 = vand.u32 %v1981, 4294901760
    %4615 = vmatpush1.msra.mxu0 %v4614
    %4616 = vmatprep.subr.mxu0 0.0
    %v4617 = vand.u32 %v1982, 4294901760
    %4618 = vmatpush1.msra.mxu0 %v4617
    %4619 = vmatprep.subr.mxu0 0.0
    %v4620 = vand.u32 %v1983, 4294901760
    %4621 = vmatpush1.msra.mxu0 %v4620
    %4622 = vmatprep.subr.mxu0 0.0
    %v4623 = vand.u32 %v1984, 4294901760
    %4624 = vmatpush1.msra.mxu0 %v4623
    %4625 = vmatprep.subr.mxu0 0.0
    %v4626 = vand.u32 %v1985, 4294901760
    %4627 = vmatpush1.msra.mxu0 %v4626
    %4628 = vmatprep.subr.mxu0 0.0
    %v4629 = vand.u32 %v1986, 4294901760
    %4630 = vmatpush1.msra.mxu0 %v4629
    %4631 = vmatprep.subr.mxu0 0.0
    %v4632 = vand.u32 %v1987, 4294901760
    %4633 = vmatpush1.msra.mxu0 %v4632
    %4634 = vmatprep.subr.mxu0 0.0
    %v4635 = vand.u32 %v1988, 4294901760
    %4636 = vmatpush1.msra.mxu0 %v4635
    %4637 = vmatprep.subr.mxu0 0.0
    %v4638 = vand.u32 %v1989, 4294901760
    %4639 = vmatpush1.msra.mxu0 %v4638
    %4640 = vmatprep.subr.mxu0 0.0
    %v4641 = vand.u32 %v1990, 4294901760
    %4642 = vmatpush1.msra.mxu0 %v4641
    %4643 = vmatprep.subr.mxu0 0.0
    %v4644 = vand.u32 %v1991, 4294901760
    %4645 = vmatpush1.msra.mxu0 %v4644
    %4646 = vmatprep.subr.mxu0 0.0
    %v4647 = vand.u32 %v1992, 4294901760
    %4648 = vmatpush1.msra.mxu0 %v4647
    %4649 = vmatprep.subr.mxu0 0.0
    %v4650 = vand.u32 %v1993, 4294901760
    %4651 = vmatpush1.msra.mxu0 %v4650
    %4652 = vmatprep.subr.mxu0 0.0
    %v4653 = vand.u32 %v1994, 4294901760
    %4654 = vmatpush1.msra.mxu0 %v4653
    %4655 = vmatprep.subr.mxu0 0.0
    %v4656 = vand.u32 %v1995, 4294901760
    %4657 = vmatpush1.msra.mxu0 %v4656
    %4658 = vmatprep.subr.mxu0 0.0
    %v4659 = vand.u32 %v1996, 4294901760
    %4660 = vmatpush1.msra.mxu0 %v4659
    %4661 = vmatprep.subr.mxu0 0.0
    %v4662 = vand.u32 %v1997, 4294901760
    %4663 = vmatpush1.msra.mxu0 %v4662
    %4664 = vmatprep.subr.mxu0 0.0
    %v4665 = vand.u32 %v1998, 4294901760
    %4666 = vmatpush1.msra.mxu0 %v4665
    %4667 = vmatprep.subr.mxu0 0.0
    %v4668 = vand.u32 %v1999, 4294901760
    %4669 = vmatpush1.msra.mxu0 %v4668
    %4670 = vmatprep.subr.mxu0 0.0
    %v4671 = vand.u32 %v2000, 4294901760
    %4672 = vmatpush1.msra.mxu0 %v4671
    %4673 = vmatprep.subr.mxu0 0.0
    %v4674 = vand.u32 %v2001, 4294901760
    %4675 = vmatpush1.msra.mxu0 %v4674
    %4676 = vmatprep.subr.mxu0 0.0
    %v4677 = vand.u32 %v2002, 4294901760
    %4678 = vmatpush1.msra.mxu0 %v4677
    %4679 = vmatprep.subr.mxu0 0.0
    %v4680 = vand.u32 %v2003, 4294901760
    %4681 = vmatpush1.msra.mxu0 %v4680
    %v4682 = vand.u32 %v2103, 4294901760
    %4683 = vmatprep.mubr.f32.mxu0 %v4682
    %v4684 = vand.u32 %v2101, 4294901760
    %4685 = vmatmul.mubr.f32.gmra.mrb[0].mxu0 %v4684
    %v4686 = vpop.f32.mrb[0].mxu0
    %v4687 = vadd.f32 %v4583, %v4686
    %v4688 = vpop.f32.mrb[0].mxu0
    %4689 = vdwg.mxu0
    %v4690 = vrcp.pop %v4687
    %v4691 = vmul.f32 1.0, %v4690
    %vm4692 = vcmask 130048
    %v4694 = vsel %vm4692, %v4691, 0
    %v4696 = vand.u32 %v2062, 4294901760
    %4697 = vmatprep.subr.mxu0 %v4696
    %v4698 = vand.u32 %v2061, 4294901760
    %4699 = vmatpush1.msra.mxu0 %v4698
    %v4700 = vand.u32 %v2068, 4294901760
    %4701 = vmatprep.subr.mxu0 %v4700
    %v4702 = vand.u32 %v2067, 4294901760
    %4703 = vmatpush1.msra.mxu0 %v4702
    %4704 = vmatprep.subr.mxu0 0.0
    %4705 = vmatpush1.msra.mxu0 0.0
    %4706 = vmatprep.subr.mxu0 0.0
    %4707 = vmatpush1.msra.mxu0 0.0
    %4708 = vmatprep.subr.mxu0 0.0
    %4709 = vmatpush1.msra.mxu0 0.0
    %4710 = vmatprep.subr.mxu0 0.0
    %4711 = vmatpush1.msra.mxu0 0.0
    %4712 = vmatprep.subr.mxu0 0.0
    %4713 = vmatpush1.msra.mxu0 0.0
    %4714 = vmatprep.subr.mxu0 0.0
    %4715 = vmatpush1.msra.mxu0 0.0
    %4716 = vmatprep.subr.mxu0 0.0
    %4717 = vmatpush1.msra.mxu0 0.0
    %4718 = vmatprep.subr.mxu0 0.0
    %4719 = vmatpush1.msra.mxu0 0.0
    %4720 = vmatprep.subr.mxu0 0.0
    %4721 = vmatpush1.msra.mxu0 0.0
    %4722 = vmatprep.subr.mxu0 0.0
    %4723 = vmatpush1.msra.mxu0 0.0
    %4724 = vmatprep.subr.mxu0 0.0
    %4725 = vmatpush1.msra.mxu0 0.0
    %4726 = vmatprep.subr.mxu0 0.0
    %4727 = vmatpush1.msra.mxu0 0.0
    %4728 = vmatprep.subr.mxu0 0.0
    %4729 = vmatpush1.msra.mxu0 0.0
    %4730 = vmatprep.subr.mxu0 0.0
    %4731 = vmatpush1.msra.mxu0 0.0
    %4732 = vmatprep.subr.mxu0 0.0
    %4733 = vmatpush1.msra.mxu0 0.0
    %4734 = vmatprep.subr.mxu0 0.0
    %4735 = vmatpush1.msra.mxu0 0.0
    %4736 = vmatprep.subr.mxu0 0.0
    %4737 = vmatpush1.msra.mxu0 0.0
    %4738 = vmatprep.subr.mxu0 0.0
    %4739 = vmatpush1.msra.mxu0 0.0
    %4740 = vmatprep.subr.mxu0 0.0
    %4741 = vmatpush1.msra.mxu0 0.0
    %4742 = vmatprep.subr.mxu0 0.0
    %4743 = vmatpush1.msra.mxu0 0.0
    %4744 = vmatprep.subr.mxu0 0.0
    %4745 = vmatpush1.msra.mxu0 0.0
    %4746 = vmatprep.subr.mxu0 0.0
    %4747 = vmatpush1.msra.mxu0 0.0
    %4748 = vmatprep.subr.mxu0 0.0
    %4749 = vmatpush1.msra.mxu0 0.0
    %4750 = vmatprep.subr.mxu0 0.0
    %4751 = vmatpush1.msra.mxu0 0.0
    %4752 = vmatprep.subr.mxu0 0.0
    %4753 = vmatpush1.msra.mxu0 0.0
    %4754 = vmatprep.subr.mxu0 0.0
    %4755 = vmatpush1.msra.mxu0 0.0
    %4756 = vmatprep.subr.mxu0 0.0
    %4757 = vmatpush1.msra.mxu0 0.0
    %4758 = vmatprep.subr.mxu0 0.0
    %4759 = vmatpush1.msra.mxu0 0.0
    %4760 = vmatprep.subr.mxu0 0.0
    %4761 = vmatpush1.msra.mxu0 0.0
    %4762 = vmatprep.subr.mxu0 0.0
    %4763 = vmatpush1.msra.mxu0 0.0
    %4764 = vmatprep.mubr.f32.mxu0 0.0
    %v4765 = vand.u32 %v4694, 4294901760
    %v4766 = vsub.f32 %v4694, %v4765
    %v4767 = vand.u32 %v4766, 4294901760
    %v4768 = vsub.f32 %v4766, %v4767
    %v4769 = vand.u32 %v4768, 4294901760
    %4770 = vmatmul.mubr.f32.gmra.mrb[0].mxu0 %v4769
    %v4771 = vpop.f32.mrb[0].mxu0
    %v4772 = vadd.f32 0.0, %v4771
    %v4773 = vpop.f32.mrb[0].mxu0
    %v4774 = vadd.f32 0.0, %v4773
    %4775 = vdwg.mxu0
    %v4776 = vand.u32 %v2062, 4294901760
    %v4777 = vsub.f32 %v2062, %v4776
    %v4778 = vand.u32 %v4777, 4294901760
    %v4779 = vsub.f32 %v4777, %v4778
    %v4780 = vand.u32 %v4779, 4294901760
    %4781 = vmatprep.subr.mxu0 %v4780
    %v4782 = vand.u32 %v2061, 4294901760
    %v4783 = vsub.f32 %v2061, %v4782
    %v4784 = vand.u32 %v4783, 4294901760
    %v4785 = vsub.f32 %v4783, %v4784
    %v4786 = vand.u32 %v4785, 4294901760
    %4787 = vmatpush1.msra.mxu0 %v4786
    %v4788 = vand.u32 %v2068, 4294901760
    %v4789 = vsub.f32 %v2068, %v4788
    %v4790 = vand.u32 %v4789, 4294901760
    %v4791 = vsub.f32 %v4789, %v4790
    %v4792 = vand.u32 %v4791, 4294901760
    %4793 = vmatprep.subr.mxu0 %v4792
    %v4794 = vand.u32 %v2067, 4294901760
    %v4795 = vsub.f32 %v2067, %v4794
    %v4796 = vand.u32 %v4795, 4294901760
    %v4797 = vsub.f32 %v4795, %v4796
    %v4798 = vand.u32 %v4797, 4294901760
    %4799 = vmatpush1.msra.mxu0 %v4798
    %4800 = vmatprep.subr.mxu0 0.0
    %4801 = vmatpush1.msra.mxu0 0.0
    %4802 = vmatprep.subr.mxu0 0.0
    %4803 = vmatpush1.msra.mxu0 0.0
    %4804 = vmatprep.subr.mxu0 0.0
    %4805 = vmatpush1.msra.mxu0 0.0
    %4806 = vmatprep.subr.mxu0 0.0
    %4807 = vmatpush1.msra.mxu0 0.0
    %4808 = vmatprep.subr.mxu0 0.0
    %4809 = vmatpush1.msra.mxu0 0.0
    %4810 = vmatprep.subr.mxu0 0.0
    %4811 = vmatpush1.msra.mxu0 0.0
    %4812 = vmatprep.subr.mxu0 0.0
    %4813 = vmatpush1.msra.mxu0 0.0
    %4814 = vmatprep.subr.mxu0 0.0
    %4815 = vmatpush1.msra.mxu0 0.0
    %4816 = vmatprep.subr.mxu0 0.0
    %4817 = vmatpush1.msra.mxu0 0.0
    %4818 = vmatprep.subr.mxu0 0.0
    %4819 = vmatpush1.msra.mxu0 0.0
    %4820 = vmatprep.subr.mxu0 0.0
    %4821 = vmatpush1.msra.mxu0 0.0
    %4822 = vmatprep.subr.mxu0 0.0
    %4823 = vmatpush1.msra.mxu0 0.0
    %4824 = vmatprep.subr.mxu0 0.0
    %4825 = vmatpush1.msra.mxu0 0.0
    %4826 = vmatprep.subr.mxu0 0.0
    %4827 = vmatpush1.msra.mxu0 0.0
    %4828 = vmatprep.subr.mxu0 0.0
    %4829 = vmatpush1.msra.mxu0 0.0
    %4830 = vmatprep.subr.mxu0 0.0
    %4831 = vmatpush1.msra.mxu0 0.0
    %4832 = vmatprep.subr.mxu0 0.0
    %4833 = vmatpush1.msra.mxu0 0.0
    %4834 = vmatprep.subr.mxu0 0.0
    %4835 = vmatpush1.msra.mxu0 0.0
    %4836 = vmatprep.subr.mxu0 0.0
    %4837 = vmatpush1.msra.mxu0 0.0
    %4838 = vmatprep.subr.mxu0 0.0
    %4839 = vmatpush1.msra.mxu0 0.0
    %4840 = vmatprep.subr.mxu0 0.0
    %4841 = vmatpush1.msra.mxu0 0.0
    %4842 = vmatprep.subr.mxu0 0.0
    %4843 = vmatpush1.msra.mxu0 0.0
    %4844 = vmatprep.subr.mxu0 0.0
    %4845 = vmatpush1.msra.mxu0 0.0
    %4846 = vmatprep.subr.mxu0 0.0
    %4847 = vmatpush1.msra.mxu0 0.0
    %4848 = vmatprep.subr.mxu0 0.0
    %4849 = vmatpush1.msra.mxu0 0.0
    %4850 = vmatprep.subr.mxu0 0.0
    %4851 = vmatpush1.msra.mxu0 0.0
    %4852 = vmatprep.subr.mxu0 0.0
    %4853 = vmatpush1.msra.mxu0 0.0
    %4854 = vmatprep.subr.mxu0 0.0
    %4855 = vmatpush1.msra.mxu0 0.0
    %4856 = vmatprep.subr.mxu0 0.0
    %4857 = vmatpush1.msra.mxu0 0.0
    %4858 = vmatprep.subr.mxu0 0.0
    %4859 = vmatpush1.msra.mxu0 0.0
    %4860 = vmatprep.mubr.f32.mxu0 0.0
    %v4861 = vand.u32 %v4694, 4294901760
    %4862 = vmatmul.mubr.f32.gmra.mrb[0].mxu0 %v4861
    %v4863 = vpop.f32.mrb[0].mxu0
    %v4864 = vadd.f32 %v4772, %v4863
    %v4865 = vpop.f32.mrb[0].mxu0
    %v4866 = vadd.f32 %v4774, %v4865
    %4867 = vdwg.mxu0
    %v4868 = vand.u32 %v2062, 4294901760
    %v4869 = vsub.f32 %v2062, %v4868
    %4870 = vmatprep.subr.mxu0 %v4869
    %v4871 = vand.u32 %v2061, 4294901760
    %v4872 = vsub.f32 %v2061, %v4871
    %4873 = vmatpush1.msra.mxu0 %v4872
    %v4874 = vand.u32 %v2068, 4294901760
    %v4875 = vsub.f32 %v2068, %v4874
    %4876 = vmatprep.subr.mxu0 %v4875
    %v4877 = vand.u32 %v2067, 4294901760
    %v4878 = vsub.f32 %v2067, %v4877
    %4879 = vmatpush1.msra.mxu0 %v4878
    %4880 = vmatprep.subr.mxu0 0.0
    %4881 = vmatpush1.msra.mxu0 0.0
    %4882 = vmatprep.subr.mxu0 0.0
    %4883 = vmatpush1.msra.mxu0 0.0
    %4884 = vmatprep.subr.mxu0 0.0
    %4885 = vmatpush1.msra.mxu0 0.0
    %4886 = vmatprep.subr.mxu0 0.0
    %4887 = vmatpush1.msra.mxu0 0.0
    %4888 = vmatprep.subr.mxu0 0.0
    %4889 = vmatpush1.msra.mxu0 0.0
    %4890 = vmatprep.subr.mxu0 0.0
    %4891 = vmatpush1.msra.mxu0 0.0
    %4892 = vmatprep.subr.mxu0 0.0
    %4893 = vmatpush1.msra.mxu0 0.0
    %4894 = vmatprep.subr.mxu0 0.0
    %4895 = vmatpush1.msra.mxu0 0.0
    %4896 = vmatprep.subr.mxu0 0.0
    %4897 = vmatpush1.msra.mxu0 0.0
    %4898 = vmatprep.subr.mxu0 0.0
    %4899 = vmatpush1.msra.mxu0 0.0
    %4900 = vmatprep.subr.mxu0 0.0
    %4901 = vmatpush1.msra.mxu0 0.0
    %4902 = vmatprep.subr.mxu0 0.0
    %4903 = vmatpush1.msra.mxu0 0.0
    %4904 = vmatprep.subr.mxu0 0.0
    %4905 = vmatpush1.msra.mxu0 0.0
    %4906 = vmatprep.subr.mxu0 0.0
    %4907 = vmatpush1.msra.mxu0 0.0
    %4908 = vmatprep.subr.mxu0 0.0
    %4909 = vmatpush1.msra.mxu0 0.0
    %4910 = vmatprep.subr.mxu0 0.0
    %4911 = vmatpush1.msra.mxu0 0.0
    %4912 = vmatprep.subr.mxu0 0.0
    %4913 = vmatpush1.msra.mxu0 0.0
    %4914 = vmatprep.subr.mxu0 0.0
    %4915 = vmatpush1.msra.mxu0 0.0
    %4916 = vmatprep.subr.mxu0 0.0
    %4917 = vmatpush1.msra.mxu0 0.0
    %4918 = vmatprep.subr.mxu0 0.0
    %4919 = vmatpush1.msra.mxu0 0.0
    %4920 = vmatprep.subr.mxu0 0.0
    %4921 = vmatpush1.msra.mxu0 0.0
    %4922 = vmatprep.subr.mxu0 0.0
    %4923 = vmatpush1.msra.mxu0 0.0
    %4924 = vmatprep.subr.mxu0 0.0
    %4925 = vmatpush1.msra.mxu0 0.0
    %4926 = vmatprep.subr.mxu0 0.0
    %4927 = vmatpush1.msra.mxu0 0.0
    %4928 = vmatprep.subr.mxu0 0.0
    %4929 = vmatpush1.msra.mxu0 0.0
    %4930 = vmatprep.subr.mxu0 0.0
    %4931 = vmatpush1.msra.mxu0 0.0
    %4932 = vmatprep.subr.mxu0 0.0
    %4933 = vmatpush1.msra.mxu0 0.0
    %4934 = vmatprep.subr.mxu0 0.0
    %4935 = vmatpush1.msra.mxu0 0.0
    %4936 = vmatprep.subr.mxu0 0.0
    %4937 = vmatpush1.msra.mxu0 0.0
    %4938 = vmatprep.subr.mxu0 0.0
    %4939 = vmatpush1.msra.mxu0 0.0
    %4940 = vmatprep.mubr.f32.mxu0 0.0
    %v4941 = vand.u32 %v4694, 4294901760
    %v4942 = vsub.f32 %v4694, %v4941
    %4943 = vmatmul.mubr.f32.gmra.mrb[0].mxu0 %v4942
    %v4944 = vpop.f32.mrb[0].mxu0
    %v4945 = vadd.f32 %v4864, %v4944
    %v4946 = vpop.f32.mrb[0].mxu0
    %v4947 = vadd.f32 %v4866, %v4946
    %4948 = vdwg.mxu0
    %v4949 = vand.u32 %v2062, 4294901760
    %4950 = vmatprep.subr.mxu0 %v4949
    %v4951 = vand.u32 %v2061, 4294901760
    %4952 = vmatpush1.msra.mxu0 %v4951
    %v4953 = vand.u32 %v2068, 4294901760
    %4954 = vmatprep.subr.mxu0 %v4953
    %v4955 = vand.u32 %v2067, 4294901760
    %4956 = vmatpush1.msra.mxu0 %v4955
    %4957 = vmatprep.subr.mxu0 0.0
    %4958 = vmatpush1.msra.mxu0 0.0
    %4959 = vmatprep.subr.mxu0 0.0
    %4960 = vmatpush1.msra.mxu0 0.0
    %4961 = vmatprep.subr.mxu0 0.0
    %4962 = vmatpush1.msra.mxu0 0.0
    %4963 = vmatprep.subr.mxu0 0.0
    %4964 = vmatpush1.msra.mxu0 0.0
    %4965 = vmatprep.subr.mxu0 0.0
    %4966 = vmatpush1.msra.mxu0 0.0
    %4967 = vmatprep.subr.mxu0 0.0
    %4968 = vmatpush1.msra.mxu0 0.0
    %4969 = vmatprep.subr.mxu0 0.0
    %4970 = vmatpush1.msra.mxu0 0.0
    %4971 = vmatprep.subr.mxu0 0.0
    %4972 = vmatpush1.msra.mxu0 0.0
    %4973 = vmatprep.subr.mxu0 0.0
    %4974 = vmatpush1.msra.mxu0 0.0
    %4975 = vmatprep.subr.mxu0 0.0
    %4976 = vmatpush1.msra.mxu0 0.0
    %4977 = vmatprep.subr.mxu0 0.0
    %4978 = vmatpush1.msra.mxu0 0.0
    %4979 = vmatprep.subr.mxu0 0.0
    %4980 = vmatpush1.msra.mxu0 0.0
    %4981 = vmatprep.subr.mxu0 0.0
    %4982 = vmatpush1.msra.mxu0 0.0
    %4983 = vmatprep.subr.mxu0 0.0
    %4984 = vmatpush1.msra.mxu0 0.0
    %4985 = vmatprep.subr.mxu0 0.0
    %4986 = vmatpush1.msra.mxu0 0.0
    %4987 = vmatprep.subr.mxu0 0.0
    %4988 = vmatpush1.msra.mxu0 0.0
    %4989 = vmatprep.subr.mxu0 0.0
    %4990 = vmatpush1.msra.mxu0 0.0
    %4991 = vmatprep.subr.mxu0 0.0
    %4992 = vmatpush1.msra.mxu0 0.0
    %4993 = vmatprep.subr.mxu0 0.0
    %4994 = vmatpush1.msra.mxu0 0.0
    %4995 = vmatprep.subr.mxu0 0.0
    %4996 = vmatpush1.msra.mxu0 0.0
    %4997 = vmatprep.subr.mxu0 0.0
    %4998 = vmatpush1.msra.mxu0 0.0
    %4999 = vmatprep.subr.mxu0 0.0
    %5000 = vmatpush1.msra.mxu0 0.0
    %5001 = vmatprep.subr.mxu0 0.0
    %5002 = vmatpush1.msra.mxu0 0.0
    %5003 = vmatprep.subr.mxu0 0.0
    %5004 = vmatpush1.msra.mxu0 0.0
    %5005 = vmatprep.subr.mxu0 0.0
    %5006 = vmatpush1.msra.mxu0 0.0
    %5007 = vmatprep.subr.mxu0 0.0
    %5008 = vmatpush1.msra.mxu0 0.0
    %5009 = vmatprep.subr.mxu0 0.0
    %5010 = vmatpush1.msra.mxu0 0.0
    %5011 = vmatprep.subr.mxu0 0.0
    %5012 = vmatpush1.msra.mxu0 0.0
    %5013 = vmatprep.subr.mxu0 0.0
    %5014 = vmatpush1.msra.mxu0 0.0
    %5015 = vmatprep.subr.mxu0 0.0
    %5016 = vmatpush1.msra.mxu0 0.0
    %5017 = vmatprep.mubr.f32.mxu0 0.0
    %v5018 = vand.u32 %v4694, 4294901760
    %v5019 = vsub.f32 %v4694, %v5018
    %v5020 = vand.u32 %v5019, 4294901760
    %5021 = vmatmul.mubr.f32.gmra.mrb[0].mxu0 %v5020
    %v5022 = vpop.f32.mrb[0].mxu0
    %v5023 = vadd.f32 %v4945, %v5022
    %v5024 = vpop.f32.mrb[0].mxu0
    %v5025 = vadd.f32 %v4947, %v5024
    %5026 = vdwg.mxu0
    %v5027 = vand.u32 %v2062, 4294901760
    %v5028 = vsub.f32 %v2062, %v5027
    %v5029 = vand.u32 %v5028, 4294901760
    %5030 = vmatprep.subr.mxu0 %v5029
    %v5031 = vand.u32 %v2061, 4294901760
    %v5032 = vsub.f32 %v2061, %v5031
    %v5033 = vand.u32 %v5032, 4294901760
    %5034 = vmatpush1.msra.mxu0 %v5033
    %v5035 = vand.u32 %v2068, 4294901760
    %v5036 = vsub.f32 %v2068, %v5035
    %v5037 = vand.u32 %v5036, 4294901760
    %5038 = vmatprep.subr.mxu0 %v5037
    %v5039 = vand.u32 %v2067, 4294901760
    %v5040 = vsub.f32 %v2067, %v5039
    %v5041 = vand.u32 %v5040, 4294901760
    %5042 = vmatpush1.msra.mxu0 %v5041
    %5043 = vmatprep.subr.mxu0 0.0
    %5044 = vmatpush1.msra.mxu0 0.0
    %5045 = vmatprep.subr.mxu0 0.0
    %5046 = vmatpush1.msra.mxu0 0.0
    %5047 = vmatprep.subr.mxu0 0.0
    %5048 = vmatpush1.msra.mxu0 0.0
    %5049 = vmatprep.subr.mxu0 0.0
    %5050 = vmatpush1.msra.mxu0 0.0
    %5051 = vmatprep.subr.mxu0 0.0
    %5052 = vmatpush1.msra.mxu0 0.0
    %5053 = vmatprep.subr.mxu0 0.0
    %5054 = vmatpush1.msra.mxu0 0.0
    %5055 = vmatprep.subr.mxu0 0.0
    %5056 = vmatpush1.msra.mxu0 0.0
    %5057 = vmatprep.subr.mxu0 0.0
    %5058 = vmatpush1.msra.mxu0 0.0
    %5059 = vmatprep.subr.mxu0 0.0
    %5060 = vmatpush1.msra.mxu0 0.0
    %5061 = vmatprep.subr.mxu0 0.0
    %5062 = vmatpush1.msra.mxu0 0.0
    %5063 = vmatprep.subr.mxu0 0.0
    %5064 = vmatpush1.msra.mxu0 0.0
    %5065 = vmatprep.subr.mxu0 0.0
    %5066 = vmatpush1.msra.mxu0 0.0
    %5067 = vmatprep.subr.mxu0 0.0
    %5068 = vmatpush1.msra.mxu0 0.0
    %5069 = vmatprep.subr.mxu0 0.0
    %5070 = vmatpush1.msra.mxu0 0.0
    %5071 = vmatprep.subr.mxu0 0.0
    %5072 = vmatpush1.msra.mxu0 0.0
    %5073 = vmatprep.subr.mxu0 0.0
    %5074 = vmatpush1.msra.mxu0 0.0
    %5075 = vmatprep.subr.mxu0 0.0
    %5076 = vmatpush1.msra.mxu0 0.0
    %5077 = vmatprep.subr.mxu0 0.0
    %5078 = vmatpush1.msra.mxu0 0.0
    %5079 = vmatprep.subr.mxu0 0.0
    %5080 = vmatpush1.msra.mxu0 0.0
    %5081 = vmatprep.subr.mxu0 0.0
    %5082 = vmatpush1.msra.mxu0 0.0
    %5083 = vmatprep.subr.mxu0 0.0
    %5084 = vmatpush1.msra.mxu0 0.0
    %5085 = vmatprep.subr.mxu0 0.0
    %5086 = vmatpush1.msra.mxu0 0.0
    %5087 = vmatprep.subr.mxu0 0.0
    %5088 = vmatpush1.msra.mxu0 0.0
    %5089 = vmatprep.subr.mxu0 0.0
    %5090 = vmatpush1.msra.mxu0 0.0
    %5091 = vmatprep.subr.mxu0 0.0
    %5092 = vmatpush1.msra.mxu0 0.0
    %5093 = vmatprep.subr.mxu0 0.0
    %5094 = vmatpush1.msra.mxu0 0.0
    %5095 = vmatprep.subr.mxu0 0.0
    %5096 = vmatpush1.msra.mxu0 0.0
    %5097 = vmatprep.subr.mxu0 0.0
    %5098 = vmatpush1.msra.mxu0 0.0
    %5099 = vmatprep.subr.mxu0 0.0
    %5100 = vmatpush1.msra.mxu0 0.0
    %5101 = vmatprep.subr.mxu0 0.0
    %5102 = vmatpush1.msra.mxu0 0.0
    %5103 = vmatprep.mubr.f32.mxu0 0.0
    %v5104 = vand.u32 %v4694, 4294901760
    %5105 = vmatmul.mubr.f32.gmra.mrb[0].mxu0 %v5104
    %v5106 = vpop.f32.mrb[0].mxu0
    %v5107 = vadd.f32 %v5023, %v5106
    %v5108 = vpop.f32.mrb[0].mxu0
    %v5109 = vadd.f32 %v5025, %v5108
    %5110 = vdwg.mxu0
    %v5111 = vand.u32 %v2062, 4294901760
    %5112 = vmatprep.subr.mxu0 %v5111
    %v5113 = vand.u32 %v2061, 4294901760
    %5114 = vmatpush1.msra.mxu0 %v5113
    %v5115 = vand.u32 %v2068, 4294901760
    %5116 = vmatprep.subr.mxu0 %v5115
    %v5117 = vand.u32 %v2067, 4294901760
    %5118 = vmatpush1.msra.mxu0 %v5117
    %5119 = vmatprep.subr.mxu0 0.0
    %5120 = vmatpush1.msra.mxu0 0.0
    %5121 = vmatprep.subr.mxu0 0.0
    %5122 = vmatpush1.msra.mxu0 0.0
    %5123 = vmatprep.subr.mxu0 0.0
    %5124 = vmatpush1.msra.mxu0 0.0
    %5125 = vmatprep.subr.mxu0 0.0
    %5126 = vmatpush1.msra.mxu0 0.0
    %5127 = vmatprep.subr.mxu0 0.0
    %5128 = vmatpush1.msra.mxu0 0.0
    %5129 = vmatprep.subr.mxu0 0.0
    %5130 = vmatpush1.msra.mxu0 0.0
    %5131 = vmatprep.subr.mxu0 0.0
    %5132 = vmatpush1.msra.mxu0 0.0
    %5133 = vmatprep.subr.mxu0 0.0
    %5134 = vmatpush1.msra.mxu0 0.0
    %5135 = vmatprep.subr.mxu0 0.0
    %5136 = vmatpush1.msra.mxu0 0.0
    %5137 = vmatprep.subr.mxu0 0.0
    %5138 = vmatpush1.msra.mxu0 0.0
    %5139 = vmatprep.subr.mxu0 0.0
    %5140 = vmatpush1.msra.mxu0 0.0
    %5141 = vmatprep.subr.mxu0 0.0
    %5142 = vmatpush1.msra.mxu0 0.0
    %5143 = vmatprep.subr.mxu0 0.0
    %5144 = vmatpush1.msra.mxu0 0.0
    %5145 = vmatprep.subr.mxu0 0.0
    %5146 = vmatpush1.msra.mxu0 0.0
    %5147 = vmatprep.subr.mxu0 0.0
    %5148 = vmatpush1.msra.mxu0 0.0
    %5149 = vmatprep.subr.mxu0 0.0
    %5150 = vmatpush1.msra.mxu0 0.0
    %5151 = vmatprep.subr.mxu0 0.0
    %5152 = vmatpush1.msra.mxu0 0.0
    %5153 = vmatprep.subr.mxu0 0.0
    %5154 = vmatpush1.msra.mxu0 0.0
    %5155 = vmatprep.subr.mxu0 0.0
    %5156 = vmatpush1.msra.mxu0 0.0
    %5157 = vmatprep.subr.mxu0 0.0
    %5158 = vmatpush1.msra.mxu0 0.0
    %5159 = vmatprep.subr.mxu0 0.0
    %5160 = vmatpush1.msra.mxu0 0.0
    %5161 = vmatprep.subr.mxu0 0.0
    %5162 = vmatpush1.msra.mxu0 0.0
    %5163 = vmatprep.subr.mxu0 0.0
    %5164 = vmatpush1.msra.mxu0 0.0
    %5165 = vmatprep.subr.mxu0 0.0
    %5166 = vmatpush1.msra.mxu0 0.0
    %5167 = vmatprep.subr.mxu0 0.0
    %5168 = vmatpush1.msra.mxu0 0.0
    %5169 = vmatprep.subr.mxu0 0.0
    %5170 = vmatpush1.msra.mxu0 0.0
    %5171 = vmatprep.subr.mxu0 0.0
    %5172 = vmatpush1.msra.mxu0 0.0
    %5173 = vmatprep.subr.mxu0 0.0
    %5174 = vmatpush1.msra.mxu0 0.0
    %5175 = vmatprep.subr.mxu0 0.0
    %5176 = vmatpush1.msra.mxu0 0.0
    %5177 = vmatprep.subr.mxu0 0.0
    %5178 = vmatpush1.msra.mxu0 0.0
    %5179 = vmatprep.mubr.f32.mxu0 0.0
    %v5180 = vand.u32 %v4694, 4294901760
    %5181 = vmatmul.mubr.f32.gmra.mrb[0].mxu0 %v5180
    %v5182 = vpop.f32.mrb[0].mxu0
    %v5183 = vadd.f32 %v5107, %v5182
    %v5184 = vpop.f32.mrb[0].mxu0
    %v5185 = vadd.f32 %v5109, %v5184
    %5186 = vdwg.mxu0
    %v5187 = vand.u32 %v2064, 4294901760
    %5188 = vmatprep.subr.mxu0 %v5187
    %v5189 = vand.u32 %v2063, 4294901760
    %5190 = vmatpush1.msra.mxu0 %v5189
    %v5191 = vand.u32 %v2070, 4294901760
    %5192 = vmatprep.subr.mxu0 %v5191
    %v5193 = vand.u32 %v2069, 4294901760
    %5194 = vmatpush1.msra.mxu0 %v5193
    %5195 = vmatprep.subr.mxu0 0.0
    %5196 = vmatpush1.msra.mxu0 0.0
    %5197 = vmatprep.subr.mxu0 0.0
    %5198 = vmatpush1.msra.mxu0 0.0
    %5199 = vmatprep.subr.mxu0 0.0
    %5200 = vmatpush1.msra.mxu0 0.0
    %5201 = vmatprep.subr.mxu0 0.0
    %5202 = vmatpush1.msra.mxu0 0.0
    %5203 = vmatprep.subr.mxu0 0.0
    %5204 = vmatpush1.msra.mxu0 0.0
    %5205 = vmatprep.subr.mxu0 0.0
    %5206 = vmatpush1.msra.mxu0 0.0
    %5207 = vmatprep.subr.mxu0 0.0
    %5208 = vmatpush1.msra.mxu0 0.0
    %5209 = vmatprep.subr.mxu0 0.0
    %5210 = vmatpush1.msra.mxu0 0.0
    %5211 = vmatprep.subr.mxu0 0.0
    %5212 = vmatpush1.msra.mxu0 0.0
    %5213 = vmatprep.subr.mxu0 0.0
    %5214 = vmatpush1.msra.mxu0 0.0
    %5215 = vmatprep.subr.mxu0 0.0
    %5216 = vmatpush1.msra.mxu0 0.0
    %5217 = vmatprep.subr.mxu0 0.0
    %5218 = vmatpush1.msra.mxu0 0.0
    %5219 = vmatprep.subr.mxu0 0.0
    %5220 = vmatpush1.msra.mxu0 0.0
    %5221 = vmatprep.subr.mxu0 0.0
    %5222 = vmatpush1.msra.mxu0 0.0
    %5223 = vmatprep.subr.mxu0 0.0
    %5224 = vmatpush1.msra.mxu0 0.0
    %5225 = vmatprep.subr.mxu0 0.0
    %5226 = vmatpush1.msra.mxu0 0.0
    %5227 = vmatprep.subr.mxu0 0.0
    %5228 = vmatpush1.msra.mxu0 0.0
    %5229 = vmatprep.subr.mxu0 0.0
    %5230 = vmatpush1.msra.mxu0 0.0
    %5231 = vmatprep.subr.mxu0 0.0
    %5232 = vmatpush1.msra.mxu0 0.0
    %5233 = vmatprep.subr.mxu0 0.0
    %5234 = vmatpush1.msra.mxu0 0.0
    %5235 = vmatprep.subr.mxu0 0.0
    %5236 = vmatpush1.msra.mxu0 0.0
    %5237 = vmatprep.subr.mxu0 0.0
    %5238 = vmatpush1.msra.mxu0 0.0
    %5239 = vmatprep.subr.mxu0 0.0
    %5240 = vmatpush1.msra.mxu0 0.0
    %5241 = vmatprep.subr.mxu0 0.0
    %5242 = vmatpush1.msra.mxu0 0.0
    %5243 = vmatprep.subr.mxu0 0.0
    %5244 = vmatpush1.msra.mxu0 0.0
    %5245 = vmatprep.subr.mxu0 0.0
    %5246 = vmatpush1.msra.mxu0 0.0
    %5247 = vmatprep.subr.mxu0 0.0
    %5248 = vmatpush1.msra.mxu0 0.0
    %5249 = vmatprep.subr.mxu0 0.0
    %5250 = vmatpush1.msra.mxu0 0.0
    %5251 = vmatprep.subr.mxu0 0.0
    %5252 = vmatpush1.msra.mxu0 0.0
    %5253 = vmatprep.subr.mxu0 0.0
    %5254 = vmatpush1.msra.mxu0 0.0
    %5255 = vmatprep.mubr.f32.mxu0 0.0
    %v5256 = vand.u32 %v4694, 4294901760
    %v5257 = vsub.f32 %v4694, %v5256
    %v5258 = vand.u32 %v5257, 4294901760
    %v5259 = vsub.f32 %v5257, %v5258
    %v5260 = vand.u32 %v5259, 4294901760
    %5261 = vmatmul.mubr.f32.gmra.mrb[0].mxu0 %v5260
    %v5262 = vpop.f32.mrb[0].mxu0
    %v5263 = vadd.f32 0.0, %v5262
    %v5264 = vpop.f32.mrb[0].mxu0
    %v5265 = vadd.f32 0.0, %v5264
    %5266 = vdwg.mxu0
    %v5267 = vand.u32 %v2064, 4294901760
    %v5268 = vsub.f32 %v2064, %v5267
    %v5269 = vand.u32 %v5268, 4294901760
    %v5270 = vsub.f32 %v5268, %v5269
    %v5271 = vand.u32 %v5270, 4294901760
    %5272 = vmatprep.subr.mxu0 %v5271
    %v5273 = vand.u32 %v2063, 4294901760
    %v5274 = vsub.f32 %v2063, %v5273
    %v5275 = vand.u32 %v5274, 4294901760
    %v5276 = vsub.f32 %v5274, %v5275
    %v5277 = vand.u32 %v5276, 4294901760
    %5278 = vmatpush1.msra.mxu0 %v5277
    %v5279 = vand.u32 %v2070, 4294901760
    %v5280 = vsub.f32 %v2070, %v5279
    %v5281 = vand.u32 %v5280, 4294901760
    %v5282 = vsub.f32 %v5280, %v5281
    %v5283 = vand.u32 %v5282, 4294901760
    %5284 = vmatprep.subr.mxu0 %v5283
    %v5285 = vand.u32 %v2069, 4294901760
    %v5286 = vsub.f32 %v2069, %v5285
    %v5287 = vand.u32 %v5286, 4294901760
    %v5288 = vsub.f32 %v5286, %v5287
    %v5289 = vand.u32 %v5288, 4294901760
    %5290 = vmatpush1.msra.mxu0 %v5289
    %5291 = vmatprep.subr.mxu0 0.0
    %5292 = vmatpush1.msra.mxu0 0.0
    %5293 = vmatprep.subr.mxu0 0.0
    %5294 = vmatpush1.msra.mxu0 0.0
    %5295 = vmatprep.subr.mxu0 0.0
    %5296 = vmatpush1.msra.mxu0 0.0
    %5297 = vmatprep.subr.mxu0 0.0
    %5298 = vmatpush1.msra.mxu0 0.0
    %5299 = vmatprep.subr.mxu0 0.0
    %5300 = vmatpush1.msra.mxu0 0.0
    %5301 = vmatprep.subr.mxu0 0.0
    %5302 = vmatpush1.msra.mxu0 0.0
    %5303 = vmatprep.subr.mxu0 0.0
    %5304 = vmatpush1.msra.mxu0 0.0
    %5305 = vmatprep.subr.mxu0 0.0
    %5306 = vmatpush1.msra.mxu0 0.0
    %5307 = vmatprep.subr.mxu0 0.0
    %5308 = vmatpush1.msra.mxu0 0.0
    %5309 = vmatprep.subr.mxu0 0.0
    %5310 = vmatpush1.msra.mxu0 0.0
    %5311 = vmatprep.subr.mxu0 0.0
    %5312 = vmatpush1.msra.mxu0 0.0
    %5313 = vmatprep.subr.mxu0 0.0
    %5314 = vmatpush1.msra.mxu0 0.0
    %5315 = vmatprep.subr.mxu0 0.0
    %5316 = vmatpush1.msra.mxu0 0.0
    %5317 = vmatprep.subr.mxu0 0.0
    %5318 = vmatpush1.msra.mxu0 0.0
    %5319 = vmatprep.subr.mxu0 0.0
    %5320 = vmatpush1.msra.mxu0 0.0
    %5321 = vmatprep.subr.mxu0 0.0
    %5322 = vmatpush1.msra.mxu0 0.0
    %5323 = vmatprep.subr.mxu0 0.0
    %5324 = vmatpush1.msra.mxu0 0.0
    %5325 = vmatprep.subr.mxu0 0.0
    %5326 = vmatpush1.msra.mxu0 0.0
    %5327 = vmatprep.subr.mxu0 0.0
    %5328 = vmatpush1.msra.mxu0 0.0
    %5329 = vmatprep.subr.mxu0 0.0
    %5330 = vmatpush1.msra.mxu0 0.0
    %5331 = vmatprep.subr.mxu0 0.0
    %5332 = vmatpush1.msra.mxu0 0.0
    %5333 = vmatprep.subr.mxu0 0.0
    %5334 = vmatpush1.msra.mxu0 0.0
    %5335 = vmatprep.subr.mxu0 0.0
    %5336 = vmatpush1.msra.mxu0 0.0
    %5337 = vmatprep.subr.mxu0 0.0
    %5338 = vmatpush1.msra.mxu0 0.0
    %5339 = vmatprep.subr.mxu0 0.0
    %5340 = vmatpush1.msra.mxu0 0.0
    %5341 = vmatprep.subr.mxu0 0.0
    %5342 = vmatpush1.msra.mxu0 0.0
    %5343 = vmatprep.subr.mxu0 0.0
    %5344 = vmatpush1.msra.mxu0 0.0
    %5345 = vmatprep.subr.mxu0 0.0
    %5346 = vmatpush1.msra.mxu0 0.0
    %5347 = vmatprep.subr.mxu0 0.0
    %5348 = vmatpush1.msra.mxu0 0.0
    %5349 = vmatprep.subr.mxu0 0.0
    %5350 = vmatpush1.msra.mxu0 0.0
    %5351 = vmatprep.mubr.f32.mxu0 0.0
    %v5352 = vand.u32 %v4694, 4294901760
    %5353 = vmatmul.mubr.f32.gmra.mrb[0].mxu0 %v5352
    %v5354 = vpop.f32.mrb[0].mxu0
    %v5355 = vadd.f32 %v5263, %v5354
    %v5356 = vpop.f32.mrb[0].mxu0
    %v5357 = vadd.f32 %v5265, %v5356
    %5358 = vdwg.mxu0
    %v5359 = vand.u32 %v2064, 4294901760
    %v5360 = vsub.f32 %v2064, %v5359
    %5361 = vmatprep.subr.mxu0 %v5360
    %v5362 = vand.u32 %v2063, 4294901760
    %v5363 = vsub.f32 %v2063, %v5362
    %5364 = vmatpush1.msra.mxu0 %v5363
    %v5365 = vand.u32 %v2070, 4294901760
    %v5366 = vsub.f32 %v2070, %v5365
    %5367 = vmatprep.subr.mxu0 %v5366
    %v5368 = vand.u32 %v2069, 4294901760
    %v5369 = vsub.f32 %v2069, %v5368
    %5370 = vmatpush1.msra.mxu0 %v5369
    %5371 = vmatprep.subr.mxu0 0.0
    %5372 = vmatpush1.msra.mxu0 0.0
    %5373 = vmatprep.subr.mxu0 0.0
    %5374 = vmatpush1.msra.mxu0 0.0
    %5375 = vmatprep.subr.mxu0 0.0
    %5376 = vmatpush1.msra.mxu0 0.0
    %5377 = vmatprep.subr.mxu0 0.0
    %5378 = vmatpush1.msra.mxu0 0.0
    %5379 = vmatprep.subr.mxu0 0.0
    %5380 = vmatpush1.msra.mxu0 0.0
    %5381 = vmatprep.subr.mxu0 0.0
    %5382 = vmatpush1.msra.mxu0 0.0
    %5383 = vmatprep.subr.mxu0 0.0
    %5384 = vmatpush1.msra.mxu0 0.0
    %5385 = vmatprep.subr.mxu0 0.0
    %5386 = vmatpush1.msra.mxu0 0.0
    %5387 = vmatprep.subr.mxu0 0.0
    %5388 = vmatpush1.msra.mxu0 0.0
    %5389 = vmatprep.subr.mxu0 0.0
    %5390 = vmatpush1.msra.mxu0 0.0
    %5391 = vmatprep.subr.mxu0 0.0
    %5392 = vmatpush1.msra.mxu0 0.0
    %5393 = vmatprep.subr.mxu0 0.0
    %5394 = vmatpush1.msra.mxu0 0.0
    %5395 = vmatprep.subr.mxu0 0.0
    %5396 = vmatpush1.msra.mxu0 0.0
    %5397 = vmatprep.subr.mxu0 0.0
    %5398 = vmatpush1.msra.mxu0 0.0
    %5399 = vmatprep.subr.mxu0 0.0
    %5400 = vmatpush1.msra.mxu0 0.0
    %5401 = vmatprep.subr.mxu0 0.0
    %5402 = vmatpush1.msra.mxu0 0.0
    %5403 = vmatprep.subr.mxu0 0.0
    %5404 = vmatpush1.msra.mxu0 0.0
    %5405 = vmatprep.subr.mxu0 0.0
    %5406 = vmatpush1.msra.mxu0 0.0
    %5407 = vmatprep.subr.mxu0 0.0
    %5408 = vmatpush1.msra.mxu0 0.0
    %5409 = vmatprep.subr.mxu0 0.0
    %5410 = vmatpush1.msra.mxu0 0.0
    %5411 = vmatprep.subr.mxu0 0.0
    %5412 = vmatpush1.msra.mxu0 0.0
    %5413 = vmatprep.subr.mxu0 0.0
    %5414 = vmatpush1.msra.mxu0 0.0
    %5415 = vmatprep.subr.mxu0 0.0
    %5416 = vmatpush1.msra.mxu0 0.0
    %5417 = vmatprep.subr.mxu0 0.0
    %5418 = vmatpush1.msra.mxu0 0.0
    %5419 = vmatprep.subr.mxu0 0.0
    %5420 = vmatpush1.msra.mxu0 0.0
    %5421 = vmatprep.subr.mxu0 0.0
    %5422 = vmatpush1.msra.mxu0 0.0
    %5423 = vmatprep.subr.mxu0 0.0
    %5424 = vmatpush1.msra.mxu0 0.0
    %5425 = vmatprep.subr.mxu0 0.0
    %5426 = vmatpush1.msra.mxu0 0.0
    %5427 = vmatprep.subr.mxu0 0.0
    %5428 = vmatpush1.msra.mxu0 0.0
    %5429 = vmatprep.subr.mxu0 0.0
    %5430 = vmatpush1.msra.mxu0 0.0
    %5431 = vmatprep.mubr.f32.mxu0 0.0
    %v5432 = vand.u32 %v4694, 4294901760
    %v5433 = vsub.f32 %v4694, %v5432
    %5434 = vmatmul.mubr.f32.gmra.mrb[0].mxu0 %v5433
    %v5435 = vpop.f32.mrb[0].mxu0
    %v5436 = vadd.f32 %v5355, %v5435
    %v5437 = vpop.f32.mrb[0].mxu0
    %v5438 = vadd.f32 %v5357, %v5437
    %5439 = vdwg.mxu0
    %v5440 = vand.u32 %v2064, 4294901760
    %5441 = vmatprep.subr.mxu0 %v5440
    %v5442 = vand.u32 %v2063, 4294901760
    %5443 = vmatpush1.msra.mxu0 %v5442
    %v5444 = vand.u32 %v2070, 4294901760
    %5445 = vmatprep.subr.mxu0 %v5444
    %v5446 = vand.u32 %v2069, 4294901760
    %5447 = vmatpush1.msra.mxu0 %v5446
    %5448 = vmatprep.subr.mxu0 0.0
    %5449 = vmatpush1.msra.mxu0 0.0
    %5450 = vmatprep.subr.mxu0 0.0
    %5451 = vmatpush1.msra.mxu0 0.0
    %5452 = vmatprep.subr.mxu0 0.0
    %5453 = vmatpush1.msra.mxu0 0.0
    %5454 = vmatprep.subr.mxu0 0.0
    %5455 = vmatpush1.msra.mxu0 0.0
    %5456 = vmatprep.subr.mxu0 0.0
    %5457 = vmatpush1.msra.mxu0 0.0
    %5458 = vmatprep.subr.mxu0 0.0
    %5459 = vmatpush1.msra.mxu0 0.0
    %5460 = vmatprep.subr.mxu0 0.0
    %5461 = vmatpush1.msra.mxu0 0.0
    %5462 = vmatprep.subr.mxu0 0.0
    %5463 = vmatpush1.msra.mxu0 0.0
    %5464 = vmatprep.subr.mxu0 0.0
    %5465 = vmatpush1.msra.mxu0 0.0
    %5466 = vmatprep.subr.mxu0 0.0
    %5467 = vmatpush1.msra.mxu0 0.0
    %5468 = vmatprep.subr.mxu0 0.0
    %5469 = vmatpush1.msra.mxu0 0.0
    %5470 = vmatprep.subr.mxu0 0.0
    %5471 = vmatpush1.msra.mxu0 0.0
    %5472 = vmatprep.subr.mxu0 0.0
    %5473 = vmatpush1.msra.mxu0 0.0
    %5474 = vmatprep.subr.mxu0 0.0
    %5475 = vmatpush1.msra.mxu0 0.0
    %5476 = vmatprep.subr.mxu0 0.0
    %5477 = vmatpush1.msra.mxu0 0.0
    %5478 = vmatprep.subr.mxu0 0.0
    %5479 = vmatpush1.msra.mxu0 0.0
    %5480 = vmatprep.subr.mxu0 0.0
    %5481 = vmatpush1.msra.mxu0 0.0
    %5482 = vmatprep.subr.mxu0 0.0
    %5483 = vmatpush1.msra.mxu0 0.0
    %5484 = vmatprep.subr.mxu0 0.0
    %5485 = vmatpush1.msra.mxu0 0.0
    %5486 = vmatprep.subr.mxu0 0.0
    %5487 = vmatpush1.msra.mxu0 0.0
    %5488 = vmatprep.subr.mxu0 0.0
    %5489 = vmatpush1.msra.mxu0 0.0
    %5490 = vmatprep.subr.mxu0 0.0
    %5491 = vmatpush1.msra.mxu0 0.0
    %5492 = vmatprep.subr.mxu0 0.0
    %5493 = vmatpush1.msra.mxu0 0.0
    %5494 = vmatprep.subr.mxu0 0.0
    %5495 = vmatpush1.msra.mxu0 0.0
    %5496 = vmatprep.subr.mxu0 0.0
    %5497 = vmatpush1.msra.mxu0 0.0
    %5498 = vmatprep.subr.mxu0 0.0
    %5499 = vmatpush1.msra.mxu0 0.0
    %5500 = vmatprep.subr.mxu0 0.0
    %5501 = vmatpush1.msra.mxu0 0.0
    %5502 = vmatprep.subr.mxu0 0.0
    %5503 = vmatpush1.msra.mxu0 0.0
    %5504 = vmatprep.subr.mxu0 0.0
    %5505 = vmatpush1.msra.mxu0 0.0
    %5506 = vmatprep.subr.mxu0 0.0
    %5507 = vmatpush1.msra.mxu0 0.0
    %5508 = vmatprep.mubr.f32.mxu0 0.0
    %v5509 = vand.u32 %v4694, 4294901760
    %v5510 = vsub.f32 %v4694, %v5509
    %v5511 = vand.u32 %v5510, 4294901760
    %5512 = vmatmul.mubr.f32.gmra.mrb[0].mxu0 %v5511
    %v5513 = vpop.f32.mrb[0].mxu0
    %v5514 = vadd.f32 %v5436, %v5513
    %v5515 = vpop.f32.mrb[0].mxu0
    %v5516 = vadd.f32 %v5438, %v5515
    %5517 = vdwg.mxu0
    %v5518 = vand.u32 %v2064, 4294901760
    %v5519 = vsub.f32 %v2064, %v5518
    %v5520 = vand.u32 %v5519, 4294901760
    %5521 = vmatprep.subr.mxu0 %v5520
    %v5522 = vand.u32 %v2063, 4294901760
    %v5523 = vsub.f32 %v2063, %v5522
    %v5524 = vand.u32 %v5523, 4294901760
    %5525 = vmatpush1.msra.mxu0 %v5524
    %v5526 = vand.u32 %v2070, 4294901760
    %v5527 = vsub.f32 %v2070, %v5526
    %v5528 = vand.u32 %v5527, 4294901760
    %5529 = vmatprep.subr.mxu0 %v5528
    %v5530 = vand.u32 %v2069, 4294901760
    %v5531 = vsub.f32 %v2069, %v5530
    %v5532 = vand.u32 %v5531, 4294901760
    %5533 = vmatpush1.msra.mxu0 %v5532
    %5534 = vmatprep.subr.mxu0 0.0
    %5535 = vmatpush1.msra.mxu0 0.0
    %5536 = vmatprep.subr.mxu0 0.0
    %5537 = vmatpush1.msra.mxu0 0.0
    %5538 = vmatprep.subr.mxu0 0.0
    %5539 = vmatpush1.msra.mxu0 0.0
    %5540 = vmatprep.subr.mxu0 0.0
    %5541 = vmatpush1.msra.mxu0 0.0
    %5542 = vmatprep.subr.mxu0 0.0
    %5543 = vmatpush1.msra.mxu0 0.0
    %5544 = vmatprep.subr.mxu0 0.0
    %5545 = vmatpush1.msra.mxu0 0.0
    %5546 = vmatprep.subr.mxu0 0.0
    %5547 = vmatpush1.msra.mxu0 0.0
    %5548 = vmatprep.subr.mxu0 0.0
    %5549 = vmatpush1.msra.mxu0 0.0
    %5550 = vmatprep.subr.mxu0 0.0
    %5551 = vmatpush1.msra.mxu0 0.0
    %5552 = vmatprep.subr.mxu0 0.0
    %5553 = vmatpush1.msra.mxu0 0.0
    %5554 = vmatprep.subr.mxu0 0.0
    %5555 = vmatpush1.msra.mxu0 0.0
    %5556 = vmatprep.subr.mxu0 0.0
    %5557 = vmatpush1.msra.mxu0 0.0
    %5558 = vmatprep.subr.mxu0 0.0
    %5559 = vmatpush1.msra.mxu0 0.0
    %5560 = vmatprep.subr.mxu0 0.0
    %5561 = vmatpush1.msra.mxu0 0.0
    %5562 = vmatprep.subr.mxu0 0.0
    %5563 = vmatpush1.msra.mxu0 0.0
    %5564 = vmatprep.subr.mxu0 0.0
    %5565 = vmatpush1.msra.mxu0 0.0
    %5566 = vmatprep.subr.mxu0 0.0
    %5567 = vmatpush1.msra.mxu0 0.0
    %5568 = vmatprep.subr.mxu0 0.0
    %5569 = vmatpush1.msra.mxu0 0.0
    %5570 = vmatprep.subr.mxu0 0.0
    %5571 = vmatpush1.msra.mxu0 0.0
    %5572 = vmatprep.subr.mxu0 0.0
    %5573 = vmatpush1.msra.mxu0 0.0
    %5574 = vmatprep.subr.mxu0 0.0
    %5575 = vmatpush1.msra.mxu0 0.0
    %5576 = vmatprep.subr.mxu0 0.0
    %5577 = vmatpush1.msra.mxu0 0.0
    %5578 = vmatprep.subr.mxu0 0.0
    %5579 = vmatpush1.msra.mxu0 0.0
    %5580 = vmatprep.subr.mxu0 0.0
    %5581 = vmatpush1.msra.mxu0 0.0
    %5582 = vmatprep.subr.mxu0 0.0
    %5583 = vmatpush1.msra.mxu0 0.0
    %5584 = vmatprep.subr.mxu0 0.0
    %5585 = vmatpush1.msra.mxu0 0.0
    %5586 = vmatprep.subr.mxu0 0.0
    %5587 = vmatpush1.msra.mxu0 0.0
    %5588 = vmatprep.subr.mxu0 0.0
    %5589 = vmatpush1.msra.mxu0 0.0
    %5590 = vmatprep.subr.mxu0 0.0
    %5591 = vmatpush1.msra.mxu0 0.0
    %5592 = vmatprep.subr.mxu0 0.0
    %5593 = vmatpush1.msra.mxu0 0.0
    %5594 = vmatprep.mubr.f32.mxu0 0.0
    %v5595 = vand.u32 %v4694, 4294901760
    %5596 = vmatmul.mubr.f32.gmra.mrb[0].mxu0 %v5595
    %v5597 = vpop.f32.mrb[0].mxu0
    %v5598 = vadd.f32 %v5514, %v5597
    %v5599 = vpop.f32.mrb[0].mxu0
    %v5600 = vadd.f32 %v5516, %v5599
    %5601 = vdwg.mxu0
    %v5602 = vand.u32 %v2064, 4294901760
    %5603 = vmatprep.subr.mxu0 %v5602
    %v5604 = vand.u32 %v2063, 4294901760
    %5605 = vmatpush1.msra.mxu0 %v5604
    %v5606 = vand.u32 %v2070, 4294901760
    %5607 = vmatprep.subr.mxu0 %v5606
    %v5608 = vand.u32 %v2069, 4294901760
    %5609 = vmatpush1.msra.mxu0 %v5608
    %5610 = vmatprep.subr.mxu0 0.0
    %5611 = vmatpush1.msra.mxu0 0.0
    %5612 = vmatprep.subr.mxu0 0.0
    %5613 = vmatpush1.msra.mxu0 0.0
    %5614 = vmatprep.subr.mxu0 0.0
    %5615 = vmatpush1.msra.mxu0 0.0
    %5616 = vmatprep.subr.mxu0 0.0
    %5617 = vmatpush1.msra.mxu0 0.0
    %5618 = vmatprep.subr.mxu0 0.0
    %5619 = vmatpush1.msra.mxu0 0.0
    %5620 = vmatprep.subr.mxu0 0.0
    %5621 = vmatpush1.msra.mxu0 0.0
    %5622 = vmatprep.subr.mxu0 0.0
    %5623 = vmatpush1.msra.mxu0 0.0
    %5624 = vmatprep.subr.mxu0 0.0
    %5625 = vmatpush1.msra.mxu0 0.0
    %5626 = vmatprep.subr.mxu0 0.0
    %5627 = vmatpush1.msra.mxu0 0.0
    %5628 = vmatprep.subr.mxu0 0.0
    %5629 = vmatpush1.msra.mxu0 0.0
    %5630 = vmatprep.subr.mxu0 0.0
    %5631 = vmatpush1.msra.mxu0 0.0
    %5632 = vmatprep.subr.mxu0 0.0
    %5633 = vmatpush1.msra.mxu0 0.0
    %5634 = vmatprep.subr.mxu0 0.0
    %5635 = vmatpush1.msra.mxu0 0.0
    %5636 = vmatprep.subr.mxu0 0.0
    %5637 = vmatpush1.msra.mxu0 0.0
    %5638 = vmatprep.subr.mxu0 0.0
    %5639 = vmatpush1.msra.mxu0 0.0
    %5640 = vmatprep.subr.mxu0 0.0
    %5641 = vmatpush1.msra.mxu0 0.0
    %5642 = vmatprep.subr.mxu0 0.0
    %5643 = vmatpush1.msra.mxu0 0.0
    %5644 = vmatprep.subr.mxu0 0.0
    %5645 = vmatpush1.msra.mxu0 0.0
    %5646 = vmatprep.subr.mxu0 0.0
    %5647 = vmatpush1.msra.mxu0 0.0
    %5648 = vmatprep.subr.mxu0 0.0
    %5649 = vmatpush1.msra.mxu0 0.0
    %5650 = vmatprep.subr.mxu0 0.0
    %5651 = vmatpush1.msra.mxu0 0.0
    %5652 = vmatprep.subr.mxu0 0.0
    %5653 = vmatpush1.msra.mxu0 0.0
    %5654 = vmatprep.subr.mxu0 0.0
    %5655 = vmatpush1.msra.mxu0 0.0
    %5656 = vmatprep.subr.mxu0 0.0
    %5657 = vmatpush1.msra.mxu0 0.0
    %5658 = vmatprep.subr.mxu0 0.0
    %5659 = vmatpush1.msra.mxu0 0.0
    %5660 = vmatprep.subr.mxu0 0.0
    %5661 = vmatpush1.msra.mxu0 0.0
    %5662 = vmatprep.subr.mxu0 0.0
    %5663 = vmatpush1.msra.mxu0 0.0
    %5664 = vmatprep.subr.mxu0 0.0
    %5665 = vmatpush1.msra.mxu0 0.0
    %5666 = vmatprep.subr.mxu0 0.0
    %5667 = vmatpush1.msra.mxu0 0.0
    %5668 = vmatprep.subr.mxu0 0.0
    %5669 = vmatpush1.msra.mxu0 0.0
    %5670 = vmatprep.mubr.f32.mxu0 0.0
    %v5671 = vand.u32 %v4694, 4294901760
    %5672 = vmatmul.mubr.f32.gmra.mrb[0].mxu0 %v5671
    %v5673 = vpop.f32.mrb[0].mxu0
    %v5674 = vadd.f32 %v5598, %v5673
    %v5675 = vpop.f32.mrb[0].mxu0
    %v5676 = vadd.f32 %v5600, %v5675
    %5677 = vdwg.mxu0
    %v5678 = vand.u32 %v2066, 4294901760
    %5679 = vmatprep.subr.mxu0 %v5678
    %v5680 = vand.u32 %v2065, 4294901760
    %5681 = vmatpush1.msra.mxu0 %v5680
    %v5682 = vand.u32 %v2072, 4294901760
    %5683 = vmatprep.subr.mxu0 %v5682
    %v5684 = vand.u32 %v2071, 4294901760
    %5685 = vmatpush1.msra.mxu0 %v5684
    %5686 = vmatprep.subr.mxu0 0.0
    %5687 = vmatpush1.msra.mxu0 0.0
    %5688 = vmatprep.subr.mxu0 0.0
    %5689 = vmatpush1.msra.mxu0 0.0
    %5690 = vmatprep.subr.mxu0 0.0
    %5691 = vmatpush1.msra.mxu0 0.0
    %5692 = vmatprep.subr.mxu0 0.0
    %5693 = vmatpush1.msra.mxu0 0.0
    %5694 = vmatprep.subr.mxu0 0.0
    %5695 = vmatpush1.msra.mxu0 0.0
    %5696 = vmatprep.subr.mxu0 0.0
    %5697 = vmatpush1.msra.mxu0 0.0
    %5698 = vmatprep.subr.mxu0 0.0
    %5699 = vmatpush1.msra.mxu0 0.0
    %5700 = vmatprep.subr.mxu0 0.0
    %5701 = vmatpush1.msra.mxu0 0.0
    %5702 = vmatprep.subr.mxu0 0.0
    %5703 = vmatpush1.msra.mxu0 0.0
    %5704 = vmatprep.subr.mxu0 0.0
    %5705 = vmatpush1.msra.mxu0 0.0
    %5706 = vmatprep.subr.mxu0 0.0
    %5707 = vmatpush1.msra.mxu0 0.0
    %5708 = vmatprep.subr.mxu0 0.0
    %5709 = vmatpush1.msra.mxu0 0.0
    %5710 = vmatprep.subr.mxu0 0.0
    %5711 = vmatpush1.msra.mxu0 0.0
    %5712 = vmatprep.subr.mxu0 0.0
    %5713 = vmatpush1.msra.mxu0 0.0
    %5714 = vmatprep.subr.mxu0 0.0
    %5715 = vmatpush1.msra.mxu0 0.0
    %5716 = vmatprep.subr.mxu0 0.0
    %5717 = vmatpush1.msra.mxu0 0.0
    %5718 = vmatprep.subr.mxu0 0.0
    %5719 = vmatpush1.msra.mxu0 0.0
    %5720 = vmatprep.subr.mxu0 0.0
    %5721 = vmatpush1.msra.mxu0 0.0
    %5722 = vmatprep.subr.mxu0 0.0
    %5723 = vmatpush1.msra.mxu0 0.0
    %5724 = vmatprep.subr.mxu0 0.0
    %5725 = vmatpush1.msra.mxu0 0.0
    %5726 = vmatprep.subr.mxu0 0.0
    %5727 = vmatpush1.msra.mxu0 0.0
    %5728 = vmatprep.subr.mxu0 0.0
    %5729 = vmatpush1.msra.mxu0 0.0
    %5730 = vmatprep.subr.mxu0 0.0
    %5731 = vmatpush1.msra.mxu0 0.0
    %5732 = vmatprep.subr.mxu0 0.0
    %5733 = vmatpush1.msra.mxu0 0.0
    %5734 = vmatprep.subr.mxu0 0.0
    %5735 = vmatpush1.msra.mxu0 0.0
    %5736 = vmatprep.subr.mxu0 0.0
    %5737 = vmatpush1.msra.mxu0 0.0
    %5738 = vmatprep.subr.mxu0 0.0
    %5739 = vmatpush1.msra.mxu0 0.0
    %5740 = vmatprep.subr.mxu0 0.0
    %5741 = vmatpush1.msra.mxu0 0.0
    %5742 = vmatprep.subr.mxu0 0.0
    %5743 = vmatpush1.msra.mxu0 0.0
    %5744 = vmatprep.subr.mxu0 0.0
    %5745 = vmatpush1.msra.mxu0 0.0
    %5746 = vmatprep.mubr.f32.mxu0 0.0
    %v5747 = vand.u32 %v4694, 4294901760
    %v5748 = vsub.f32 %v4694, %v5747
    %v5749 = vand.u32 %v5748, 4294901760
    %v5750 = vsub.f32 %v5748, %v5749
    %v5751 = vand.u32 %v5750, 4294901760
    %5752 = vmatmul.mubr.f32.gmra.mrb[0].mxu0 %v5751
    %v5753 = vpop.f32.mrb[0].mxu0
    %v5754 = vadd.f32 0.0, %v5753
    %v5755 = vpop.f32.mrb[0].mxu0
    %v5756 = vadd.f32 0.0, %v5755
    %5757 = vdwg.mxu0
    %v5758 = vand.u32 %v2066, 4294901760
    %v5759 = vsub.f32 %v2066, %v5758
    %v5760 = vand.u32 %v5759, 4294901760
    %v5761 = vsub.f32 %v5759, %v5760
    %v5762 = vand.u32 %v5761, 4294901760
    %5763 = vmatprep.subr.mxu0 %v5762
    %v5764 = vand.u32 %v2065, 4294901760
    %v5765 = vsub.f32 %v2065, %v5764
    %v5766 = vand.u32 %v5765, 4294901760
    %v5767 = vsub.f32 %v5765, %v5766
    %v5768 = vand.u32 %v5767, 4294901760
    %5769 = vmatpush1.msra.mxu0 %v5768
    %v5770 = vand.u32 %v2072, 4294901760
    %v5771 = vsub.f32 %v2072, %v5770
    %v5772 = vand.u32 %v5771, 4294901760
    %v5773 = vsub.f32 %v5771, %v5772
    %v5774 = vand.u32 %v5773, 4294901760
    %5775 = vmatprep.subr.mxu0 %v5774
    %v5776 = vand.u32 %v2071, 4294901760
    %v5777 = vsub.f32 %v2071, %v5776
    %v5778 = vand.u32 %v5777, 4294901760
    %v5779 = vsub.f32 %v5777, %v5778
    %v5780 = vand.u32 %v5779, 4294901760
    %5781 = vmatpush1.msra.mxu0 %v5780
    %5782 = vmatprep.subr.mxu0 0.0
    %5783 = vmatpush1.msra.mxu0 0.0
    %5784 = vmatprep.subr.mxu0 0.0
    %5785 = vmatpush1.msra.mxu0 0.0
    %5786 = vmatprep.subr.mxu0 0.0
    %5787 = vmatpush1.msra.mxu0 0.0
    %5788 = vmatprep.subr.mxu0 0.0
    %5789 = vmatpush1.msra.mxu0 0.0
    %5790 = vmatprep.subr.mxu0 0.0
    %5791 = vmatpush1.msra.mxu0 0.0
    %5792 = vmatprep.subr.mxu0 0.0
    %5793 = vmatpush1.msra.mxu0 0.0
    %5794 = vmatprep.subr.mxu0 0.0
    %5795 = vmatpush1.msra.mxu0 0.0
    %5796 = vmatprep.subr.mxu0 0.0
    %5797 = vmatpush1.msra.mxu0 0.0
    %5798 = vmatprep.subr.mxu0 0.0
    %5799 = vmatpush1.msra.mxu0 0.0
    %5800 = vmatprep.subr.mxu0 0.0
    %5801 = vmatpush1.msra.mxu0 0.0
    %5802 = vmatprep.subr.mxu0 0.0
    %5803 = vmatpush1.msra.mxu0 0.0
    %5804 = vmatprep.subr.mxu0 0.0
    %5805 = vmatpush1.msra.mxu0 0.0
    %5806 = vmatprep.subr.mxu0 0.0
    %5807 = vmatpush1.msra.mxu0 0.0
    %5808 = vmatprep.subr.mxu0 0.0
    %5809 = vmatpush1.msra.mxu0 0.0
    %5810 = vmatprep.subr.mxu0 0.0
    %5811 = vmatpush1.msra.mxu0 0.0
    %5812 = vmatprep.subr.mxu0 0.0
    %5813 = vmatpush1.msra.mxu0 0.0
    %5814 = vmatprep.subr.mxu0 0.0
    %5815 = vmatpush1.msra.mxu0 0.0
    %5816 = vmatprep.subr.mxu0 0.0
    %5817 = vmatpush1.msra.mxu0 0.0
    %5818 = vmatprep.subr.mxu0 0.0
    %5819 = vmatpush1.msra.mxu0 0.0
    %5820 = vmatprep.subr.mxu0 0.0
    %5821 = vmatpush1.msra.mxu0 0.0
    %5822 = vmatprep.subr.mxu0 0.0
    %5823 = vmatpush1.msra.mxu0 0.0
    %5824 = vmatprep.subr.mxu0 0.0
    %5825 = vmatpush1.msra.mxu0 0.0
    %5826 = vmatprep.subr.mxu0 0.0
    %5827 = vmatpush1.msra.mxu0 0.0
    %5828 = vmatprep.subr.mxu0 0.0
    %5829 = vmatpush1.msra.mxu0 0.0
    %5830 = vmatprep.subr.mxu0 0.0
    %5831 = vmatpush1.msra.mxu0 0.0
    %5832 = vmatprep.subr.mxu0 0.0
    %5833 = vmatpush1.msra.mxu0 0.0
    %5834 = vmatprep.subr.mxu0 0.0
    %5835 = vmatpush1.msra.mxu0 0.0
    %5836 = vmatprep.subr.mxu0 0.0
    %5837 = vmatpush1.msra.mxu0 0.0
    %5838 = vmatprep.subr.mxu0 0.0
    %5839 = vmatpush1.msra.mxu0 0.0
    %5840 = vmatprep.subr.mxu0 0.0
    %5841 = vmatpush1.msra.mxu0 0.0
    %5842 = vmatprep.mubr.f32.mxu0 0.0
    %v5843 = vand.u32 %v4694, 4294901760
    %5844 = vmatmul.mubr.f32.gmra.mrb[0].mxu0 %v5843
    %v5845 = vpop.f32.mrb[0].mxu0
    %v5846 = vadd.f32 %v5754, %v5845
    %v5847 = vpop.f32.mrb[0].mxu0
    %v5848 = vadd.f32 %v5756, %v5847
    %5849 = vdwg.mxu0
    %v5850 = vand.u32 %v2066, 4294901760
    %v5851 = vsub.f32 %v2066, %v5850
    %5852 = vmatprep.subr.mxu0 %v5851
    %v5853 = vand.u32 %v2065, 4294901760
    %v5854 = vsub.f32 %v2065, %v5853
    %5855 = vmatpush1.msra.mxu0 %v5854
    %v5856 = vand.u32 %v2072, 4294901760
    %v5857 = vsub.f32 %v2072, %v5856
    %5858 = vmatprep.subr.mxu0 %v5857
    %v5859 = vand.u32 %v2071, 4294901760
    %v5860 = vsub.f32 %v2071, %v5859
    %5861 = vmatpush1.msra.mxu0 %v5860
    %5862 = vmatprep.subr.mxu0 0.0
    %5863 = vmatpush1.msra.mxu0 0.0
    %5864 = vmatprep.subr.mxu0 0.0
    %5865 = vmatpush1.msra.mxu0 0.0
    %5866 = vmatprep.subr.mxu0 0.0
    %5867 = vmatpush1.msra.mxu0 0.0
    %5868 = vmatprep.subr.mxu0 0.0
    %5869 = vmatpush1.msra.mxu0 0.0
    %5870 = vmatprep.subr.mxu0 0.0
    %5871 = vmatpush1.msra.mxu0 0.0
    %5872 = vmatprep.subr.mxu0 0.0
    %5873 = vmatpush1.msra.mxu0 0.0
    %5874 = vmatprep.subr.mxu0 0.0
    %5875 = vmatpush1.msra.mxu0 0.0
    %5876 = vmatprep.subr.mxu0 0.0
    %5877 = vmatpush1.msra.mxu0 0.0
    %5878 = vmatprep.subr.mxu0 0.0
    %5879 = vmatpush1.msra.mxu0 0.0
    %5880 = vmatprep.subr.mxu0 0.0
    %5881 = vmatpush1.msra.mxu0 0.0
    %5882 = vmatprep.subr.mxu0 0.0
    %5883 = vmatpush1.msra.mxu0 0.0
    %5884 = vmatprep.subr.mxu0 0.0
    %5885 = vmatpush1.msra.mxu0 0.0
    %5886 = vmatprep.subr.mxu0 0.0
    %5887 = vmatpush1.msra.mxu0 0.0
    %5888 = vmatprep.subr.mxu0 0.0
    %5889 = vmatpush1.msra.mxu0 0.0
    %5890 = vmatprep.subr.mxu0 0.0
    %5891 = vmatpush1.msra.mxu0 0.0
    %5892 = vmatprep.subr.mxu0 0.0
    %5893 = vmatpush1.msra.mxu0 0.0
    %5894 = vmatprep.subr.mxu0 0.0
    %5895 = vmatpush1.msra.mxu0 0.0
    %5896 = vmatprep.subr.mxu0 0.0
    %5897 = vmatpush1.msra.mxu0 0.0
    %5898 = vmatprep.subr.mxu0 0.0
    %5899 = vmatpush1.msra.mxu0 0.0
    %5900 = vmatprep.subr.mxu0 0.0
    %5901 = vmatpush1.msra.mxu0 0.0
    %5902 = vmatprep.subr.mxu0 0.0
    %5903 = vmatpush1.msra.mxu0 0.0
    %5904 = vmatprep.subr.mxu0 0.0
    %5905 = vmatpush1.msra.mxu0 0.0
    %5906 = vmatprep.subr.mxu0 0.0
    %5907 = vmatpush1.msra.mxu0 0.0
    %5908 = vmatprep.subr.mxu0 0.0
    %5909 = vmatpush1.msra.mxu0 0.0
    %5910 = vmatprep.subr.mxu0 0.0
    %5911 = vmatpush1.msra.mxu0 0.0
    %5912 = vmatprep.subr.mxu0 0.0
    %5913 = vmatpush1.msra.mxu0 0.0
    %5914 = vmatprep.subr.mxu0 0.0
    %5915 = vmatpush1.msra.mxu0 0.0
    %5916 = vmatprep.subr.mxu0 0.0
    %5917 = vmatpush1.msra.mxu0 0.0
    %5918 = vmatprep.subr.mxu0 0.0
    %5919 = vmatpush1.msra.mxu0 0.0
    %5920 = vmatprep.subr.mxu0 0.0
    %5921 = vmatpush1.msra.mxu0 0.0
    %5922 = vmatprep.mubr.f32.mxu0 0.0
    %v5923 = vand.u32 %v4694, 4294901760
    %v5924 = vsub.f32 %v4694, %v5923
    %5925 = vmatmul.mubr.f32.gmra.mrb[0].mxu0 %v5924
    %v5926 = vpop.f32.mrb[0].mxu0
    %v5927 = vadd.f32 %v5846, %v5926
    %v5928 = vpop.f32.mrb[0].mxu0
    %v5929 = vadd.f32 %v5848, %v5928
    %5930 = vdwg.mxu0
    %v5931 = vand.u32 %v2066, 4294901760
    %5932 = vmatprep.subr.mxu0 %v5931
    %v5933 = vand.u32 %v2065, 4294901760
    %5934 = vmatpush1.msra.mxu0 %v5933
    %v5935 = vand.u32 %v2072, 4294901760
    %5936 = vmatprep.subr.mxu0 %v5935
    %v5937 = vand.u32 %v2071, 4294901760
    %5938 = vmatpush1.msra.mxu0 %v5937
    %5939 = vmatprep.subr.mxu0 0.0
    %5940 = vmatpush1.msra.mxu0 0.0
    %5941 = vmatprep.subr.mxu0 0.0
    %5942 = vmatpush1.msra.mxu0 0.0
    %5943 = vmatprep.subr.mxu0 0.0
    %5944 = vmatpush1.msra.mxu0 0.0
    %5945 = vmatprep.subr.mxu0 0.0
    %5946 = vmatpush1.msra.mxu0 0.0
    %5947 = vmatprep.subr.mxu0 0.0
    %5948 = vmatpush1.msra.mxu0 0.0
    %5949 = vmatprep.subr.mxu0 0.0
    %5950 = vmatpush1.msra.mxu0 0.0
    %5951 = vmatprep.subr.mxu0 0.0
    %5952 = vmatpush1.msra.mxu0 0.0
    %5953 = vmatprep.subr.mxu0 0.0
    %5954 = vmatpush1.msra.mxu0 0.0
    %5955 = vmatprep.subr.mxu0 0.0
    %5956 = vmatpush1.msra.mxu0 0.0
    %5957 = vmatprep.subr.mxu0 0.0
    %5958 = vmatpush1.msra.mxu0 0.0
    %5959 = vmatprep.subr.mxu0 0.0
    %5960 = vmatpush1.msra.mxu0 0.0
    %5961 = vmatprep.subr.mxu0 0.0
    %5962 = vmatpush1.msra.mxu0 0.0
    %5963 = vmatprep.subr.mxu0 0.0
    %5964 = vmatpush1.msra.mxu0 0.0
    %5965 = vmatprep.subr.mxu0 0.0
    %5966 = vmatpush1.msra.mxu0 0.0
    %5967 = vmatprep.subr.mxu0 0.0
    %5968 = vmatpush1.msra.mxu0 0.0
    %5969 = vmatprep.subr.mxu0 0.0
    %5970 = vmatpush1.msra.mxu0 0.0
    %5971 = vmatprep.subr.mxu0 0.0
    %5972 = vmatpush1.msra.mxu0 0.0
    %5973 = vmatprep.subr.mxu0 0.0
    %5974 = vmatpush1.msra.mxu0 0.0
    %5975 = vmatprep.subr.mxu0 0.0
    %5976 = vmatpush1.msra.mxu0 0.0
    %5977 = vmatprep.subr.mxu0 0.0
    %5978 = vmatpush1.msra.mxu0 0.0
    %5979 = vmatprep.subr.mxu0 0.0
    %5980 = vmatpush1.msra.mxu0 0.0
    %5981 = vmatprep.subr.mxu0 0.0
    %5982 = vmatpush1.msra.mxu0 0.0
    %5983 = vmatprep.subr.mxu0 0.0
    %5984 = vmatpush1.msra.mxu0 0.0
    %5985 = vmatprep.subr.mxu0 0.0
    %5986 = vmatpush1.msra.mxu0 0.0
    %5987 = vmatprep.subr.mxu0 0.0
    %5988 = vmatpush1.msra.mxu0 0.0
    %5989 = vmatprep.subr.mxu0 0.0
    %5990 = vmatpush1.msra.mxu0 0.0
    %5991 = vmatprep.subr.mxu0 0.0
    %5992 = vmatpush1.msra.mxu0 0.0
    %5993 = vmatprep.subr.mxu0 0.0
    %5994 = vmatpush1.msra.mxu0 0.0
    %5995 = vmatprep.subr.mxu0 0.0
    %5996 = vmatpush1.msra.mxu0 0.0
    %5997 = vmatprep.subr.mxu0 0.0
    %5998 = vmatpush1.msra.mxu0 0.0
    %5999 = vmatprep.mubr.f32.mxu0 0.0
    %v6000 = vand.u32 %v4694, 4294901760
    %v6001 = vsub.f32 %v4694, %v6000
    %v6002 = vand.u32 %v6001, 4294901760
    %6003 = vmatmul.mubr.f32.gmra.mrb[0].mxu0 %v6002
    %v6004 = vpop.f32.mrb[0].mxu0
    %v6005 = vadd.f32 %v5927, %v6004
    %v6006 = vpop.f32.mrb[0].mxu0
    %v6007 = vadd.f32 %v5929, %v6006
    %6008 = vdwg.mxu0
    %v6009 = vand.u32 %v2066, 4294901760
    %v6010 = vsub.f32 %v2066, %v6009
    %v6011 = vand.u32 %v6010, 4294901760
    %6012 = vmatprep.subr.mxu0 %v6011
    %v6013 = vand.u32 %v2065, 4294901760
    %v6014 = vsub.f32 %v2065, %v6013
    %v6015 = vand.u32 %v6014, 4294901760
    %6016 = vmatpush1.msra.mxu0 %v6015
    %v6017 = vand.u32 %v2072, 4294901760
    %v6018 = vsub.f32 %v2072, %v6017
    %v6019 = vand.u32 %v6018, 4294901760
    %6020 = vmatprep.subr.mxu0 %v6019
    %v6021 = vand.u32 %v2071, 4294901760
    %v6022 = vsub.f32 %v2071, %v6021
    %v6023 = vand.u32 %v6022, 4294901760
    %6024 = vmatpush1.msra.mxu0 %v6023
    %6025 = vmatprep.subr.mxu0 0.0
    %6026 = vmatpush1.msra.mxu0 0.0
    %6027 = vmatprep.subr.mxu0 0.0
    %6028 = vmatpush1.msra.mxu0 0.0
    %6029 = vmatprep.subr.mxu0 0.0
    %6030 = vmatpush1.msra.mxu0 0.0
    %6031 = vmatprep.subr.mxu0 0.0
    %6032 = vmatpush1.msra.mxu0 0.0
    %6033 = vmatprep.subr.mxu0 0.0
    %6034 = vmatpush1.msra.mxu0 0.0
    %6035 = vmatprep.subr.mxu0 0.0
    %6036 = vmatpush1.msra.mxu0 0.0
    %6037 = vmatprep.subr.mxu0 0.0
    %6038 = vmatpush1.msra.mxu0 0.0
    %6039 = vmatprep.subr.mxu0 0.0
    %6040 = vmatpush1.msra.mxu0 0.0
    %6041 = vmatprep.subr.mxu0 0.0
    %6042 = vmatpush1.msra.mxu0 0.0
    %6043 = vmatprep.subr.mxu0 0.0
    %6044 = vmatpush1.msra.mxu0 0.0
    %6045 = vmatprep.subr.mxu0 0.0
    %6046 = vmatpush1.msra.mxu0 0.0
    %6047 = vmatprep.subr.mxu0 0.0
    %6048 = vmatpush1.msra.mxu0 0.0
    %6049 = vmatprep.subr.mxu0 0.0
    %6050 = vmatpush1.msra.mxu0 0.0
    %6051 = vmatprep.subr.mxu0 0.0
    %6052 = vmatpush1.msra.mxu0 0.0
    %6053 = vmatprep.subr.mxu0 0.0
    %6054 = vmatpush1.msra.mxu0 0.0
    %6055 = vmatprep.subr.mxu0 0.0
    %6056 = vmatpush1.msra.mxu0 0.0
    %6057 = vmatprep.subr.mxu0 0.0
    %6058 = vmatpush1.msra.mxu0 0.0
    %6059 = vmatprep.subr.mxu0 0.0
    %6060 = vmatpush1.msra.mxu0 0.0
    %6061 = vmatprep.subr.mxu0 0.0
    %6062 = vmatpush1.msra.mxu0 0.0
    %6063 = vmatprep.subr.mxu0 0.0
    %6064 = vmatpush1.msra.mxu0 0.0
    %6065 = vmatprep.subr.mxu0 0.0
    %6066 = vmatpush1.msra.mxu0 0.0
    %6067 = vmatprep.subr.mxu0 0.0
    %6068 = vmatpush1.msra.mxu0 0.0
    %6069 = vmatprep.subr.mxu0 0.0
    %6070 = vmatpush1.msra.mxu0 0.0
    %6071 = vmatprep.subr.mxu0 0.0
    %6072 = vmatpush1.msra.mxu0 0.0
    %6073 = vmatprep.subr.mxu0 0.0
    %6074 = vmatpush1.msra.mxu0 0.0
    %6075 = vmatprep.subr.mxu0 0.0
    %6076 = vmatpush1.msra.mxu0 0.0
    %6077 = vmatprep.subr.mxu0 0.0
    %6078 = vmatpush1.msra.mxu0 0.0
    %6079 = vmatprep.subr.mxu0 0.0
    %6080 = vmatpush1.msra.mxu0 0.0
    %6081 = vmatprep.subr.mxu0 0.0
    %6082 = vmatpush1.msra.mxu0 0.0
    %6083 = vmatprep.subr.mxu0 0.0
    %6084 = vmatpush1.msra.mxu0 0.0
    %6085 = vmatprep.mubr.f32.mxu0 0.0
    %v6086 = vand.u32 %v4694, 4294901760
    %6087 = vmatmul.mubr.f32.gmra.mrb[0].mxu0 %v6086
    %v6088 = vpop.f32.mrb[0].mxu0
    %v6089 = vadd.f32 %v6005, %v6088
    %v6090 = vpop.f32.mrb[0].mxu0
    %v6091 = vadd.f32 %v6007, %v6090
    %6092 = vdwg.mxu0
    %v6093 = vand.u32 %v2066, 4294901760
    %6094 = vmatprep.subr.mxu0 %v6093
    %v6095 = vand.u32 %v2065, 4294901760
    %6096 = vmatpush1.msra.mxu0 %v6095
    %v6097 = vand.u32 %v2072, 4294901760
    %6098 = vmatprep.subr.mxu0 %v6097
    %v6099 = vand.u32 %v2071, 4294901760
    %6100 = vmatpush1.msra.mxu0 %v6099
    %6101 = vmatprep.subr.mxu0 0.0
    %6102 = vmatpush1.msra.mxu0 0.0
    %6103 = vmatprep.subr.mxu0 0.0
    %6104 = vmatpush1.msra.mxu0 0.0
    %6105 = vmatprep.subr.mxu0 0.0
    %6106 = vmatpush1.msra.mxu0 0.0
    %6107 = vmatprep.subr.mxu0 0.0
    %6108 = vmatpush1.msra.mxu0 0.0
    %6109 = vmatprep.subr.mxu0 0.0
    %6110 = vmatpush1.msra.mxu0 0.0
    %6111 = vmatprep.subr.mxu0 0.0
    %6112 = vmatpush1.msra.mxu0 0.0
    %6113 = vmatprep.subr.mxu0 0.0
    %6114 = vmatpush1.msra.mxu0 0.0
    %6115 = vmatprep.subr.mxu0 0.0
    %6116 = vmatpush1.msra.mxu0 0.0
    %6117 = vmatprep.subr.mxu0 0.0
    %6118 = vmatpush1.msra.mxu0 0.0
    %6119 = vmatprep.subr.mxu0 0.0
    %6120 = vmatpush1.msra.mxu0 0.0
    %6121 = vmatprep.subr.mxu0 0.0
    %6122 = vmatpush1.msra.mxu0 0.0
    %6123 = vmatprep.subr.mxu0 0.0
    %6124 = vmatpush1.msra.mxu0 0.0
    %6125 = vmatprep.subr.mxu0 0.0
    %6126 = vmatpush1.msra.mxu0 0.0
    %6127 = vmatprep.subr.mxu0 0.0
    %6128 = vmatpush1.msra.mxu0 0.0
    %6129 = vmatprep.subr.mxu0 0.0
    %6130 = vmatpush1.msra.mxu0 0.0
    %6131 = vmatprep.subr.mxu0 0.0
    %6132 = vmatpush1.msra.mxu0 0.0
    %6133 = vmatprep.subr.mxu0 0.0
    %6134 = vmatpush1.msra.mxu0 0.0
    %6135 = vmatprep.subr.mxu0 0.0
    %6136 = vmatpush1.msra.mxu0 0.0
    %6137 = vmatprep.subr.mxu0 0.0
    %6138 = vmatpush1.msra.mxu0 0.0
    %6139 = vmatprep.subr.mxu0 0.0
    %6140 = vmatpush1.msra.mxu0 0.0
    %6141 = vmatprep.subr.mxu0 0.0
    %6142 = vmatpush1.msra.mxu0 0.0
    %6143 = vmatprep.subr.mxu0 0.0
    %6144 = vmatpush1.msra.mxu0 0.0
    %6145 = vmatprep.subr.mxu0 0.0
    %6146 = vmatpush1.msra.mxu0 0.0
    %6147 = vmatprep.subr.mxu0 0.0
    %6148 = vmatpush1.msra.mxu0 0.0
    %6149 = vmatprep.subr.mxu0 0.0
    %6150 = vmatpush1.msra.mxu0 0.0
    %6151 = vmatprep.subr.mxu0 0.0
    %6152 = vmatpush1.msra.mxu0 0.0
    %6153 = vmatprep.subr.mxu0 0.0
    %6154 = vmatpush1.msra.mxu0 0.0
    %6155 = vmatprep.subr.mxu0 0.0
    %6156 = vmatpush1.msra.mxu0 0.0
    %6157 = vmatprep.subr.mxu0 0.0
    %6158 = vmatpush1.msra.mxu0 0.0
    %6159 = vmatprep.subr.mxu0 0.0
    %6160 = vmatpush1.msra.mxu0 0.0
    %6161 = vmatprep.mubr.f32.mxu0 0.0
    %v6162 = vand.u32 %v4694, 4294901760
    %6163 = vmatmul.mubr.f32.gmra.mrb[0].mxu0 %v6162
    %v6164 = vpop.f32.mrb[0].mxu0
    %v6165 = vadd.f32 %v6089, %v6164
    %v6166 = vpop.f32.mrb[0].mxu0
    %v6167 = vadd.f32 %v6091, %v6166
    %6168 = vdwg.mxu0
    %v6169 = vmul.f32 %v2093, %v5183
    %v6170 = vmul.f32 %v2095, %v5185
    %v6171 = vmul.f32 %v2097, %v5674
    %v6172 = vmul.f32 %v2099, %v5676
    %v6173 = vmul.f32 %v2101, %v6165
    %v6174 = vmul.f32 %v2103, %v6167
    %6175 = vst [vmem:[#allocation11] sm:$0xff] %v6169
    %6176 = vst [vmem:[#allocation11 + $0x8] sm:$0xff] %v6170
    %6177 = vst [vmem:[#allocation11 + $0x10] sm:$0xff] %v6171
    %6178 = vst [vmem:[#allocation11 + $0x18] sm:$0xff] %v6172
    %6179 = vst [vmem:[#allocation11 + $0x20] sm:$0xff] %v6173
    %6180 = vst [vmem:[#allocation11 + $0x28] sm:$0xff] %v6174
    // Predicated region
    $region58: #{tpu_custom_call.1} parent=1 // pred_check
      _
    $region59: #{tpu_custom_call.1} parent=1 // pred_check_branch
      %6182 = sbr.rel (0) target = $region61
    $region60: #{tpu_custom_call.1} parent=1 // pred_region
      %s6184 = ssub.s32 768, 768
      %6185 = vsyncadd [#allocation4], %s6184
      %s6187 = sshll.u32 [#allocation11], 4
      %s6188 = int_to_ptr.vmem [resolvable:$true] %s6187
      %6190 = dma.vmem_to_hbm [thread:$0]  %s6188, 768, %s9, [#allocation4]
    $region61: #{tpu_custom_call.1} parent=1 // pred_fallthru
      _
    // Predicated region
    $region62: #{tpu_custom_call.1} parent=1 // pred_check
      _
    $region63: #{tpu_custom_call.1} parent=1 // pred_check_branch
      %6192 = sbr.rel (0) target = $region65
    $region64: #{tpu_custom_call.1} parent=1 // pred_region
      %6193 = dma.done [#allocation4], 768
    $region65: #{tpu_custom_call.1} parent=1 // pred_fallthru
      _
    %6194 = vsyncpa [#allocation3], 1
    %6195 = vsyncpa [#allocation6], 1
    %6196 = vsyncpa [#allocation9], 1
    %6197 = vsyncpa [#allocation4], 1

</llo_original>
